<compile_context>
chip_gen: v6e
topology: v6e:2x2x1
jax: 0.10.0
libtpu: 0.0.40
codegen_flags: <defaults>
</compile_context>

<pallas_src>
import functools
import math

import jax
import jax.numpy as jnp
import numpy as np
from jax import lax
from jax.experimental import pallas as pl
from jax.experimental.pallas import tpu as pltpu


_LN_EPS = 1e-6  # matches norm_layer(..., eps=1e-06) in the PyTorch module


# ----------------------------------------------------------------------------
# In-kernel helpers
# ----------------------------------------------------------------------------
def _layer_norm(x, g, b, eps=_LN_EPS):
    mu = jnp.mean(x, axis=-1, keepdims=True)
    d = x - mu
    var = jnp.mean(d * d, axis=-1, keepdims=True)
    return d * lax.rsqrt(var + eps) * g + b


# ----------------------------------------------------------------------------
# Fused kernel: grid = (B/b_blk, L); one grid step = one layer for b_blk rows.
# ----------------------------------------------------------------------------
def transformer_kernel(
    x_ref,                         # (b_blk, N, W)  input activations (read at layer 0)
    ln1g_ref, ln1b_ref,            # (1, 1, W)
    wqkv_ref, bqkv_ref,            # (1, W, 3W), (1, 1, 3W)   [Q|K|V] blocked, Q pre-scaled
    wo_ref, bo_ref,                # (1, W, W),  (1, 1, W)
    ln2g_ref, ln2b_ref,            # (1, 1, W)
    wfc_ref, bfc_ref,              # (1, W, FF), (1, 1, FF)
    wp2_ref, bp2_ref,              # (1, FF, W), (1, 1, W)
    o_ref,                         # (b_blk, N, W)
    acc_ref,                       # (b_blk*N, W) f32 scratch — activations across layers
    *,
    heads: int,
    mlp_chunk: int,
    kv_chunk: int,
    b_blk: int,
    seq_len: int,
):
    layer = pl.program_id(1)
    n_layers = pl.num_programs(1)

    N = seq_len
    W = x_ref.shape[2]
    BN = b_blk * N
    hd = W // heads
    BH = b_blk * heads
    cdt = wqkv_ref.dtype                               # MXU input dtype (bf16 or f32)

    @pl.when(layer == 0)
    def _():
        acc_ref[...] = x_ref[...].reshape(BN, W).astype(jnp.float32)

    x = acc_ref[...]                                   # (BN, W) f32

    # ---- attention branch: x + c_proj(attn(c_qkv(ln_1(x)))) ------------------
    h = _layer_norm(x, ln1g_ref[0], ln1b_ref[0])
    qkv = (jnp.dot(h.astype(cdt), wqkv_ref[0],
                   preferred_element_type=jnp.float32) + bqkv_ref[0]).astype(cdt)  # (BN, 3W)

    def split_heads(cols):                             # (BN, W) -> (BH, N, hd)
        t = cols.reshape(b_blk, N, heads, hd)
        return jnp.swapaxes(t, 1, 2).reshape(BH, N, hd)

    # [Q|K|V] blocked layout -> lane-aligned full-width slices.  1/sqrt(hd) is
    # already folded into the Q columns of wqkv/bqkv host-side.
    q = split_heads(qkv[:, 0 * W:1 * W])
    k = split_heads(qkv[:, 1 * W:2 * W])
    v = split_heads(qkv[:, 2 * W:3 * W])

    # Online-softmax attention over KV chunks (never materializes (H,N,N) f32).
    m_i = jnp.full((BH, N, 1), -jnp.inf, jnp.float32)
    l_i = jnp.zeros((BH, N, 1), jnp.float32)
    ctx = jnp.zeros((BH, N, hd), jnp.float32)
    for c in range(0, N, kv_chunk):                    # static, small trip count
        kc = k[:, c:c + kv_chunk, :]
        vc = v[:, c:c + kv_chunk, :]
        s = jnp.einsum("hqd,hkd->hqk", q, kc,
                       preferred_element_type=jnp.float32)          # (BH, N, kv_chunk)
        m_new = jnp.maximum(m_i, jnp.max(s, axis=-1, keepdims=True))
        alpha = jnp.exp(m_i - m_new)
        p = jnp.exp(s - m_new)
        l_i = alpha * l_i + jnp.sum(p, axis=-1, keepdims=True)
        ctx = alpha * ctx + jnp.einsum("hqk,hkd->hqd", p.astype(cdt), vc,
                                       preferred_element_type=jnp.float32)
        m_i = m_new
    ctx = ctx * pl.reciprocal(l_i, approx=True)                      # (BH, N, hd)

    attn = jnp.swapaxes(ctx.reshape(b_blk, heads, N, hd), 1, 2).reshape(BN, W)
    attn = jnp.dot(attn.astype(cdt), wo_ref[0],
                   preferred_element_type=jnp.float32) + bo_ref[0]
    x = x + attn

    # ---- MLP branch: x + c_proj(gelu(c_fc(ln_2(x)))) -------------------------
    h2 = _layer_norm(x, ln2g_ref[0], ln2b_ref[0]).astype(cdt)
    ff = wfc_ref.shape[2]
    x = x + bp2_ref[0]                                 # accumulate MLP directly into x
    inv_sqrt2 = 1.0 / math.sqrt(2.0)
    for c in range(0, ff, mlp_chunk):                  # static, lane-aligned chunks
        fc = (jnp.dot(h2, wfc_ref[0, :, c:c + mlp_chunk],
                      preferred_element_type=jnp.float32)
              + bfc_ref[0, :, c:c + mlp_chunk])
        # exact GELU (erf based), matching torch.nn.GELU() default
        fc = 0.5 * fc * (1.0 + lax.erf(fc * inv_sqrt2))
        x = x + jnp.dot(fc.astype(cdt), wp2_ref[0, c:c + mlp_chunk, :],
                        preferred_element_type=jnp.float32)

    acc_ref[...] = x

    @pl.when(layer == n_layers - 1)
    def _():
        o_ref[...] = x.reshape(b_blk, N, W).astype(o_ref.dtype)


# ----------------------------------------------------------------------------
# Host-side preparation & wrapper
# ----------------------------------------------------------------------------
def _pick_mlp_chunk(ff):
    for cand in (512, 1024, 256, 128):
        if ff % cand == 0:
            return cand
    return ff


def _pick_kv_chunk(n):
    for cand in (512, 256, 128):
        if n > cand and n % cand == 0:
            return cand
    return n


def _pick_b_blk(batch, n, w):
    best = 1
    for cand in range(1, min(batch, 8) + 1):
        if batch % cand == 0 and cand * n * w * 4 <= (4 << 20):
            best = cand
    return best


def _qkv_blocked_permutation(width, heads):
    """Column permutation: PyTorch per-head [q|k|v] interleave -> [Q|K|V] blocks."""
    hd = width // heads
    idx = np.arange(3 * width).reshape(heads, 3, hd)   # [head][part][d] original order
    return idx.transpose(1, 0, 2).reshape(3 * width)   # new order: [part][head][d]


def _vmem_cap_bytes():
    try:
        info = pltpu.get_tpu_info()
        phys = int(getattr(info, "vmem_capacity_bytes", 0) or 0)
        if phys > 0:
            return max(phys - (24 << 20), 32 << 20)
    except Exception:
        pass
    return 100 << 20


def _vmem_limit_bytes(b_blk, N, W, ff, heads, kv_chunk, mlp_chunk, x_itemsize, w_itemsize):
    BN = b_blk * N
    hd = W // heads
    BH = b_blk * heads
    big_w = (3 * W * W + W * W + W * ff + ff * W) * w_itemsize * 2     # double-buffered
    small_w = (6 * W + 3 * W + ff) * 4 * 2
    acts = 2 * (BN * W * x_itemsize) * 2 + BN * W * 4                  # x/o blocks + acc
    inter = (BN * 3 * W * w_itemsize                                   # qkv (cdt)
             + 3 * BH * N * hd * w_itemsize                            # q, k, v
             + 2 * BH * N * kv_chunk * 4                               # s, p (per chunk)
             + BH * N * hd * 4                                         # ctx accumulator
             + 4 * BN * W * 4                                          # h, attn, misc
             + 2 * BN * mlp_chunk * 4)                                 # fc chunk
    est = big_w + small_w + acts + inter + (8 << 20)
    return int(min(max(est, 32 << 20), _vmem_cap_bytes()))


def transformer_pallas(x, layer_params, heads, *, compute_dtype=jnp.bfloat16,
                       b_blk=None, interpret=False):
    """x: (B, N, W).  layer_params: list of per-layer dicts in PyTorch layout
    (weights stored as (in_features, out_features) = nn.Linear.weight.T; biases
    and LayerNorm params 1-D)."""
    B, N, W = x.shape
    L = len(layer_params)
    ff = layer_params[0]["wfc"].shape[1]
    mlp_chunk = _pick_mlp_chunk(ff)
    kv_chunk = _pick_kv_chunk(N)
    if b_blk is None:
        b_blk = _pick_b_blk(B, N, W)
    assert B % b_blk == 0

    cdt = np.dtype(compute_dtype)
    hd = W // heads
    scale = 1.0 / math.sqrt(hd)
    perm = _qkv_blocked_permutation(W, heads)
    # Fold the attention scale into the Q columns (blocked layout: first W cols).
    col_scale = jnp.concatenate([jnp.full((W,), scale, jnp.float32),
                                 jnp.ones((2 * W,), jnp.float32)])

    def stack_mat(name):                                   # (L, in, out)
        return jnp.stack([p[name] for p in layer_params], axis=0)

    def stack_vec(name):                                   # (L, 1, F)
        return jnp.stack([p[name].reshape(1, -1) for p in layer_params], axis=0)

    wqkv = jnp.stack([p["wqkv"][:, perm] * col_scale for p in layer_params], axis=0)
    bqkv = jnp.stack([(p["bqkv"][perm] * col_scale).reshape(1, -1)
                      for p in layer_params], axis=0)

    weights = (
        stack_vec("ln1g"), stack_vec("ln1b"),
        wqkv.astype(cdt), bqkv,
        stack_mat("wo").astype(cdt), stack_vec("bo"),
        stack_vec("ln2g"), stack_vec("ln2b"),
        stack_mat("wfc").astype(cdt), stack_vec("bfc"),
        stack_mat("wp2").astype(cdt), stack_vec("bp2"),
    )

    def w_spec(a):   # block = (1, full, full): layer axis indexed by l, rest whole
        return pl.BlockSpec((1,) + a.shape[1:], lambda b, l: (l, 0, 0))

    x_spec = pl.BlockSpec((b_blk, N, W), lambda b, l: (b, 0, 0))

    kernel = functools.partial(transformer_kernel, heads=heads, mlp_chunk=mlp_chunk,
                               kv_chunk=kv_chunk, b_blk=b_blk, seq_len=N)

    vmem_bytes = _vmem_limit_bytes(b_blk, N, W, ff, heads, kv_chunk, mlp_chunk,
                                   x.dtype.itemsize, cdt.itemsize)

    return pl.pallas_call(
        kernel,
        out_shape=jax.ShapeDtypeStruct((B, N, W), x.dtype),
        grid_spec=pltpu.PrefetchScalarGridSpec(
            num_scalar_prefetch=0,
            grid=(B // b_blk, L),
            in_specs=[x_spec] + [w_spec(a) for a in weights],
            out_specs=x_spec,
            scratch_shapes=[pltpu.VMEM((b_blk * N, W), jnp.float32)],
        ),
        compiler_params=pltpu.CompilerParams(
            dimension_semantics=("parallel", "arbitrary"),
            vmem_limit_bytes=vmem_bytes,
        ),
        interpret=interpret,
    )(x, *weights)


# ----------------------------------------------------------------------------
# Pure-JAX reference (mirrors the PyTorch module exactly) for validation.
# Uses the ORIGINAL per-head-interleaved qkv layout and explicit score scaling;
# the Pallas wrapper's weight permutation + scale fold are therefore validated.
# ----------------------------------------------------------------------------
def _ln_ref(h, g, b, eps=_LN_EPS):
    mu = h.mean(-1, keepdims=True)
    var = ((h - mu) ** 2).mean(-1, keepdims=True)
    return (h - mu) / jnp.sqrt(var + eps) * g + b


def resblock_ref(x, p, heads):
    B, N, W = x.shape
    hd = W // heads
    h = _ln_ref(x, p["ln1g"], p["ln1b"])
    qkv = h @ p["wqkv"] + p["bqkv"]                        # (B, N, 3W) per-head [q|k|v]
    qkv = qkv.reshape(B, N, heads, 3 * hd)
    q, k, v = qkv[..., :hd], qkv[..., hd:2 * hd], qkv[..., 2 * hd:]
    q, k, v = (t.transpose(0, 2, 1, 3) for t in (q, k, v))
    s = (q @ k.transpose(0, 1, 3, 2)) / math.sqrt(hd)
    a = jax.nn.softmax(s, axis=-1)
    o = (a @ v).transpose(0, 2, 1, 3).reshape(B, N, W)
    x = x + o @ p["wo"] + p["bo"]
    h2 = _ln_ref(x, p["ln2g"], p["ln2b"])
    fc = h2 @ p["wfc"] + p["bfc"]
    fc = 0.5 * fc * (1.0 + lax.erf(fc / math.sqrt(2.0)))
    return x + fc @ p["wp2"] + p["bp2"]


def transformer_ref(x, layer_params, heads):
    for p in layer_params:
        x = resblock_ref(x, p, heads)
    return x


# ----------------------------------------------------------------------------
# Deterministic synthetic parameters (PyTorch layout).
# ----------------------------------------------------------------------------
def make_layer_params(key, width, expand=4):
    ks = jax.random.split(key, 10)
    s = 0.05
    return {
        "ln1g": jnp.ones((width,), jnp.float32),
        "ln1b": jnp.zeros((width,), jnp.float32),
        "wqkv": s * jax.random.normal(ks[0], (width, 3 * width), jnp.float32),
        "bqkv": s * jax.random.normal(ks[1], (3 * width,), jnp.float32),
        "wo":   s * jax.random.normal(ks[2], (width, width), jnp.float32),
        "bo":   s * jax.random.normal(ks[3], (width,), jnp.float32),
        "ln2g": jnp.ones((width,), jnp.float32) + 0.1 * jax.random.normal(ks[4], (width,), jnp.float32),
        "ln2b": 0.1 * jax.random.normal(ks[5], (width,), jnp.float32),
        "wfc":  s * jax.random.normal(ks[6], (width, expand * width), jnp.float32),
        "bfc":  s * jax.random.normal(ks[7], (expand * width,), jnp.float32),
        "wp2":  s * jax.random.normal(ks[8], (expand * width, width), jnp.float32),
        "bp2":  s * jax.random.normal(ks[9], (width,), jnp.float32),
    }


if __name__ == "__main__":
    def run_case(case_key, B, N, W, H, LAYERS, compute_dtype, tol):
        kx, kp = jax.random.split(case_key)
        x = jax.random.normal(kx, (B, N, W), jnp.float32)
        layer_params = [make_layer_params(k, W) for k in jax.random.split(kp, LAYERS)]
        out = jax.block_until_ready(
            transformer_pallas(x, layer_params, heads=H, compute_dtype=compute_dtype))
        ref = transformer_ref(x, layer_params, H)
        np.testing.assert_allclose(np.asarray(out), np.asarray(ref), rtol=tol, atol=tol)

    k_small, k_aligned, k_bf16 = jax.random.split(jax.random.PRNGKey(0), 3)
    # Strict parity (f32 MXU path), small smoke shape: exercises b_blk=2.
    run_case(k_small, B=2, N=8, W=32, H=4, LAYERS=2,
             compute_dtype=jnp.float32, tol=2e-3)
    # Strict parity, lane-aligned shape (N, W multiples of 128), b_blk=1.
    run_case(k_aligned, B=1, N=128, W=128, H=4, LAYERS=2,
             compute_dtype=jnp.float32, tol=2e-3)
    # Default fast path (bf16 weights / MXU inputs) — looser tolerance vs f32 ref.
    run_case(k_bf16, B=2, N=128, W=128, H=4, LAYERS=2,
             compute_dtype=jnp.bfloat16, tol=8e-2)
    print("KERNEL_OK")
</pallas_src>

<mosaic_0001>
module attributes {stable_mosaic.version = 11 : i64} {
  func.func @transformer_kernel(%arg0: i32, %arg1: i32, %arg2: memref<2x8x32xf32, #tpu.memory_space<vmem>>, %arg3: memref<1x1x32xf32, #tpu.memory_space<vmem>>, %arg4: memref<1x1x32xf32, #tpu.memory_space<vmem>>, %arg5: memref<1x32x96xf32, #tpu.memory_space<vmem>>, %arg6: memref<1x1x96xf32, #tpu.memory_space<vmem>>, %arg7: memref<1x32x32xf32, #tpu.memory_space<vmem>>, %arg8: memref<1x1x32xf32, #tpu.memory_space<vmem>>, %arg9: memref<1x1x32xf32, #tpu.memory_space<vmem>>, %arg10: memref<1x1x32xf32, #tpu.memory_space<vmem>>, %arg11: memref<1x32x128xf32, #tpu.memory_space<vmem>>, %arg12: memref<1x1x128xf32, #tpu.memory_space<vmem>>, %arg13: memref<1x128x32xf32, #tpu.memory_space<vmem>>, %arg14: memref<1x1x32xf32, #tpu.memory_space<vmem>>, %arg15: memref<2x8x32xf32, #tpu.memory_space<vmem>>, %arg16: memref<16x32xf32, #tpu.memory_space<vmem>>) attributes {dimension_semantics = [#tpu.dimension_semantics<parallel>, #tpu.dimension_semantics<arbitrary>], iteration_bounds = array<i64: 1, 2>, scalar_prefetch = 0 : i64, scratch_operands = 1 : i64, tpu.core_type = #tpu.core_type<tc>, window_params = [{transform_indices = @transform_0, window_bounds = array<i64: 2, 8, 32>}, {transform_indices = @transform_1, window_bounds = array<i64: 1, 1, 32>}, {transform_indices = @transform_2, window_bounds = array<i64: 1, 1, 32>}, {transform_indices = @transform_3, window_bounds = array<i64: 1, 32, 96>}, {transform_indices = @transform_4, window_bounds = array<i64: 1, 1, 96>}, {transform_indices = @transform_5, window_bounds = array<i64: 1, 32, 32>}, {transform_indices = @transform_6, window_bounds = array<i64: 1, 1, 32>}, {transform_indices = @transform_7, window_bounds = array<i64: 1, 1, 32>}, {transform_indices = @transform_8, window_bounds = array<i64: 1, 1, 32>}, {transform_indices = @transform_9, window_bounds = array<i64: 1, 32, 128>}, {transform_indices = @transform_10, window_bounds = array<i64: 1, 1, 128>}, {transform_indices = @transform_11, window_bounds = array<i64: 1, 128, 32>}, {transform_indices = @transform_12, window_bounds = array<i64: 1, 1, 32>}, {transform_indices = @transform_13, window_bounds = array<i64: 2, 8, 32>}]} {
    %c0_i32 = arith.constant 0 : i32
    %0 = arith.cmpi eq, %arg1, %c0_i32 : i32
    %1 = arith.extui %0 : i1 to i32
    %c0_i32_0 = arith.constant 0 : i32
    %2 = arith.cmpi ne, %1, %c0_i32_0 : i32
    scf.if %2 {
      %c0_64 = arith.constant 0 : index
      %c0_65 = arith.constant 0 : index
      %c0_66 = arith.constant 0 : index
      %132 = vector.load %arg2[%c0_64, %c0_65, %c0_66] : memref<2x8x32xf32, #tpu.memory_space<vmem>>, vector<2x8x32xf32>
      %133 = vector.shape_cast %132 : vector<2x8x32xf32> to vector<16x32xf32>
      %c0_67 = arith.constant 0 : index
      %c0_68 = arith.constant 0 : index
      %134 = vector.load %arg16[%c0_67, %c0_68] : memref<16x32xf32, #tpu.memory_space<vmem>>, vector<16x32xf32>
      tpu.vector_store %arg16[%c0_67, %c0_68], %133 {strides = array<i32>} : memref<16x32xf32, #tpu.memory_space<vmem>>, vector<16x32xf32>,
    } else {
    }
    %c0 = arith.constant 0 : index
    %c0_1 = arith.constant 0 : index
    %3 = vector.load %arg16[%c0, %c0_1] : memref<16x32xf32, #tpu.memory_space<vmem>>, vector<16x32xf32>
    %c0_2 = arith.constant 0 : index
    %c0_3 = arith.constant 0 : index
    %c0_4 = arith.constant 0 : index
    %4 = vector.load %arg3[%c0_2, %c0_3, %c0_4] : memref<1x1x32xf32, #tpu.memory_space<vmem>>, vector<1x1x32xf32>
    %5 = vector.shape_cast %4 : vector<1x1x32xf32> to vector<1x32xf32>
    %c0_5 = arith.constant 0 : index
    %c0_6 = arith.constant 0 : index
    %c0_7 = arith.constant 0 : index
    %6 = vector.load %arg4[%c0_5, %c0_6, %c0_7] : memref<1x1x32xf32, #tpu.memory_space<vmem>>, vector<1x1x32xf32>
    %7 = vector.shape_cast %6 : vector<1x1x32xf32> to vector<1x32xf32>
    %cst = arith.constant dense<0.000000e+00> : vector<16xf32>
    %8 = vector.multi_reduction <add>, %3, %cst [1] : vector<16x32xf32> to vector<16xf32>
    %9 = vector.shape_cast %8 : vector<16xf32> to vector<16x1xf32>
    %cst_8 = arith.constant 3.200000e+01 : f32
    %10 = vector.broadcast %cst_8 : f32 to vector<16x1xf32>
    %11 = arith.divf %9, %10 : vector<16x1xf32>
    %12 = vector.broadcast %11 : vector<16x1xf32> to vector<16x32xf32>
    %13 = arith.subf %3, %12 : vector<16x32xf32>
    %14 = arith.mulf %13, %13 : vector<16x32xf32>
    %cst_9 = arith.constant dense<0.000000e+00> : vector<16xf32>
    %15 = vector.multi_reduction <add>, %14, %cst_9 [1] : vector<16x32xf32> to vector<16xf32>
    %16 = vector.shape_cast %15 : vector<16xf32> to vector<16x1xf32>
    %cst_10 = arith.constant 3.200000e+01 : f32
    %17 = vector.broadcast %cst_10 : f32 to vector<16x1xf32>
    %18 = arith.divf %16, %17 : vector<16x1xf32>
    %cst_11 = arith.constant 9.99999997E-7 : f32
    %19 = vector.broadcast %cst_11 : f32 to vector<16x1xf32>
    %20 = arith.addf %18, %19 : vector<16x1xf32>
    %21 = math.rsqrt %20 : vector<16x1xf32>
    %22 = vector.broadcast %21 : vector<16x1xf32> to vector<16x32xf32>
    %23 = arith.mulf %13, %22 : vector<16x32xf32>
    %24 = vector.broadcast %5 : vector<1x32xf32> to vector<16x32xf32>
    %25 = arith.mulf %23, %24 : vector<16x32xf32>
    %26 = vector.broadcast %7 : vector<1x32xf32> to vector<16x32xf32>
    %27 = arith.addf %25, %26 : vector<16x32xf32>
    %c0_12 = arith.constant 0 : index
    %c0_13 = arith.constant 0 : index
    %c0_14 = arith.constant 0 : index
    %28 = vector.load %arg5[%c0_12, %c0_13, %c0_14] : memref<1x32x96xf32, #tpu.memory_space<vmem>>, vector<1x32x96xf32>
    %29 = vector.shape_cast %28 : vector<1x32x96xf32> to vector<32x96xf32>
    %cst_15 = arith.constant dense<0.000000e+00> : vector<16x96xf32>
    %30 = tpu.matmul %27, %29, %cst_15 {dimension_numbers = #tpu.dot_dimension_numbers<[1], [0], [0], [1], [0, 0, 1, 1], [], []>} : vector<16x32xf32>, vector<32x96xf32>, vector<16x96xf32> -> vector<16x96xf32>
    %c0_16 = arith.constant 0 : index
    %c0_17 = arith.constant 0 : index
    %c0_18 = arith.constant 0 : index
    %31 = vector.load %arg6[%c0_16, %c0_17, %c0_18] : memref<1x1x96xf32, #tpu.memory_space<vmem>>, vector<1x1x96xf32>
    %32 = vector.shape_cast %31 : vector<1x1x96xf32> to vector<1x96xf32>
    %33 = vector.broadcast %32 : vector<1x96xf32> to vector<16x96xf32>
    %34 = arith.addf %30, %33 : vector<16x96xf32>
    %35 = vector.extract_strided_slice %34 {offsets = [0, 0], sizes = [16, 32], strides = [1, 1]} : vector<16x96xf32> to vector<16x32xf32>
    %36 = vector.shape_cast %35 : vector<16x32xf32> to vector<2x8x4x8xf32>
    %37 = tpu.transpose %36, [0, 2, 1, 3] : vector<2x8x4x8xf32> -> vector<2x4x8x8xf32>
    %38 = vector.shape_cast %37 : vector<2x4x8x8xf32> to vector<8x8x8xf32>
    %39 = vector.extract_strided_slice %34 {offsets = [0, 32], sizes = [16, 32], strides = [1, 1]} : vector<16x96xf32> to vector<16x32xf32>
    %40 = vector.shape_cast %39 : vector<16x32xf32> to vector<2x8x4x8xf32>
    %41 = tpu.transpose %40, [0, 2, 1, 3] : vector<2x8x4x8xf32> -> vector<2x4x8x8xf32>
    %42 = vector.shape_cast %41 : vector<2x4x8x8xf32> to vector<8x8x8xf32>
    %43 = vector.extract_strided_slice %34 {offsets = [0, 64], sizes = [16, 32], strides = [1, 1]} : vector<16x96xf32> to vector<16x32xf32>
    %44 = vector.shape_cast %43 : vector<16x32xf32> to vector<2x8x4x8xf32>
    %45 = tpu.transpose %44, [0, 2, 1, 3] : vector<2x8x4x8xf32> -> vector<2x4x8x8xf32>
    %46 = vector.shape_cast %45 : vector<2x4x8x8xf32> to vector<8x8x8xf32>
    %cst_19 = arith.constant 0xFF800000 : f32
    %47 = vector.broadcast %cst_19 : f32 to vector<8x8x1xf32>
    %cst_20 = arith.constant 0.000000e+00 : f32
    %48 = vector.broadcast %cst_20 : f32 to vector<8x8x1xf32>
    %cst_21 = arith.constant 0.000000e+00 : f32
    %49 = vector.broadcast %cst_21 : f32 to vector<8x8x8xf32>
    "tpu.trace_start"() <{level = 10 : i32, message = "hqd,hkd->hqk"}> : () -> ()
    %cst_22 = arith.constant dense<0.000000e+00> : vector<8x8x8xf32>
    %50 = tpu.matmul %38, %42, %cst_22 {dimension_numbers = #tpu.dot_dimension_numbers<[2], [2], [1], [1], [0, 0, 0, 1, 1, 1], [0], [0]>} : vector<8x8x8xf32>, vector<8x8x8xf32>, vector<8x8x8xf32> -> vector<8x8x8xf32>
    "tpu.trace_stop"() : () -> ()
    %cst_23 = arith.constant dense<0xFF800000> : vector<8x8xf32>
    %51 = vector.multi_reduction <maximumf>, %50, %cst_23 [2] : vector<8x8x8xf32> to vector<8x8xf32>
    %52 = vector.shape_cast %51 : vector<8x8xf32> to vector<8x8x1xf32>
    %53 = arith.maximumf %47, %52 : vector<8x8x1xf32>
    %54 = arith.subf %47, %53 : vector<8x8x1xf32>
    %55 = math.exp %54 : vector<8x8x1xf32>
    %56 = vector.broadcast %53 : vector<8x8x1xf32> to vector<8x8x8xf32>
    %57 = arith.subf %50, %56 : vector<8x8x8xf32>
    %58 = math.exp %57 : vector<8x8x8xf32>
    %59 = arith.mulf %55, %48 : vector<8x8x1xf32>
    %cst_24 = arith.constant dense<0.000000e+00> : vector<8x8xf32>
    %60 = vector.multi_reduction <add>, %58, %cst_24 [2] : vector<8x8x8xf32> to vector<8x8xf32>
    %61 = vector.shape_cast %60 : vector<8x8xf32> to vector<8x8x1xf32>
    %62 = arith.addf %59, %61 : vector<8x8x1xf32>
    %63 = vector.broadcast %55 : vector<8x8x1xf32> to vector<8x8x8xf32>
    %64 = arith.mulf %63, %49 : vector<8x8x8xf32>
    "tpu.trace_start"() <{level = 10 : i32, message = "hqk,hkd->hqd"}> : () -> ()
    %cst_25 = arith.constant dense<0.000000e+00> : vector<8x8x8xf32>
    %65 = tpu.matmul %58, %46, %cst_25 {dimension_numbers = #tpu.dot_dimension_numbers<[2], [1], [1], [2], [0, 0, 0, 1, 1, 2], [0], [0]>} : vector<8x8x8xf32>, vector<8x8x8xf32>, vector<8x8x8xf32> -> vector<8x8x8xf32>
    "tpu.trace_stop"() : () -> ()
    %66 = arith.addf %64, %65 : vector<8x8x8xf32>
    %67 = tpu.reciprocal %62 {approx = true} : vector<8x8x1xf32> -> vector<8x8x1xf32>
    %68 = vector.broadcast %67 : vector<8x8x1xf32> to vector<8x8x8xf32>
    %69 = arith.mulf %66, %68 : vector<8x8x8xf32>
    %70 = vector.shape_cast %69 : vector<8x8x8xf32> to vector<2x4x8x8xf32>
    %71 = tpu.transpose %70, [0, 2, 1, 3] : vector<2x4x8x8xf32> -> vector<2x8x4x8xf32>
    %72 = vector.shape_cast %71 : vector<2x8x4x8xf32> to vector<16x32xf32>
    %c0_26 = arith.constant 0 : index
    %c0_27 = arith.constant 0 : index
    %c0_28 = arith.constant 0 : index
    %73 = vector.load %arg7[%c0_26, %c0_27, %c0_28] : memref<1x32x32xf32, #tpu.memory_space<vmem>>, vector<1x32x32xf32>
    %74 = vector.shape_cast %73 : vector<1x32x32xf32> to vector<32x32xf32>
    %cst_29 = arith.constant dense<0.000000e+00> : vector<16x32xf32>
    %75 = tpu.matmul %72, %74, %cst_29 {dimension_numbers = #tpu.dot_dimension_numbers<[1], [0], [0], [1], [0, 0, 1, 1], [], []>} : vector<16x32xf32>, vector<32x32xf32>, vector<16x32xf32> -> vector<16x32xf32>
    %c0_30 = arith.constant 0 : index
    %c0_31 = arith.constant 0 : index
    %c0_32 = arith.constant 0 : index
    %76 = vector.load %arg8[%c0_30, %c0_31, %c0_32] : memref<1x1x32xf32, #tpu.memory_space<vmem>>, vector<1x1x32xf32>
    %77 = vector.shape_cast %76 : vector<1x1x32xf32> to vector<1x32xf32>
    %78 = vector.broadcast %77 : vector<1x32xf32> to vector<16x32xf32>
    %79 = arith.addf %75, %78 : vector<16x32xf32>
    %80 = arith.addf %3, %79 : vector<16x32xf32>
    %c0_33 = arith.constant 0 : index
    %c0_34 = arith.constant 0 : index
    %c0_35 = arith.constant 0 : index
    %81 = vector.load %arg9[%c0_33, %c0_34, %c0_35] : memref<1x1x32xf32, #tpu.memory_space<vmem>>, vector<1x1x32xf32>
    %82 = vector.shape_cast %81 : vector<1x1x32xf32> to vector<1x32xf32>
    %c0_36 = arith.constant 0 : index
    %c0_37 = arith.constant 0 : index
    %c0_38 = arith.constant 0 : index
    %83 = vector.load %arg10[%c0_36, %c0_37, %c0_38] : memref<1x1x32xf32, #tpu.memory_space<vmem>>, vector<1x1x32xf32>
    %84 = vector.shape_cast %83 : vector<1x1x32xf32> to vector<1x32xf32>
    %cst_39 = arith.constant dense<0.000000e+00> : vector<16xf32>
    %85 = vector.multi_reduction <add>, %80, %cst_39 [1] : vector<16x32xf32> to vector<16xf32>
    %86 = vector.shape_cast %85 : vector<16xf32> to vector<16x1xf32>
    %cst_40 = arith.constant 3.200000e+01 : f32
    %87 = vector.broadcast %cst_40 : f32 to vector<16x1xf32>
    %88 = arith.divf %86, %87 : vector<16x1xf32>
    %89 = vector.broadcast %88 : vector<16x1xf32> to vector<16x32xf32>
    %90 = arith.subf %80, %89 : vector<16x32xf32>
    %91 = arith.mulf %90, %90 : vector<16x32xf32>
    %cst_41 = arith.constant dense<0.000000e+00> : vector<16xf32>
    %92 = vector.multi_reduction <add>, %91, %cst_41 [1] : vector<16x32xf32> to vector<16xf32>
    %93 = vector.shape_cast %92 : vector<16xf32> to vector<16x1xf32>
    %cst_42 = arith.constant 3.200000e+01 : f32
    %94 = vector.broadcast %cst_42 : f32 to vector<16x1xf32>
    %95 = arith.divf %93, %94 : vector<16x1xf32>
    %cst_43 = arith.constant 9.99999997E-7 : f32
    %96 = vector.broadcast %cst_43 : f32 to vector<16x1xf32>
    %97 = arith.addf %95, %96 : vector<16x1xf32>
    %98 = math.rsqrt %97 : vector<16x1xf32>
    %99 = vector.broadcast %98 : vector<16x1xf32> to vector<16x32xf32>
    %100 = arith.mulf %90, %99 : vector<16x32xf32>
    %101 = vector.broadcast %82 : vector<1x32xf32> to vector<16x32xf32>
    %102 = arith.mulf %100, %101 : vector<16x32xf32>
    %103 = vector.broadcast %84 : vector<1x32xf32> to vector<16x32xf32>
    %104 = arith.addf %102, %103 : vector<16x32xf32>
    %c0_44 = arith.constant 0 : index
    %c0_45 = arith.constant 0 : index
    %c0_46 = arith.constant 0 : index
    %105 = vector.load %arg14[%c0_44, %c0_45, %c0_46] : memref<1x1x32xf32, #tpu.memory_space<vmem>>, vector<1x1x32xf32>
    %106 = vector.shape_cast %105 : vector<1x1x32xf32> to vector<1x32xf32>
    %107 = vector.broadcast %106 : vector<1x32xf32> to vector<16x32xf32>
    %108 = arith.addf %80, %107 : vector<16x32xf32>
    %c0_47 = arith.constant 0 : index
    %c0_48 = arith.constant 0 : index
    %c0_49 = arith.constant 0 : index
    %109 = vector.load %arg11[%c0_47, %c0_48, %c0_49] : memref<1x32x128xf32, #tpu.memory_space<vmem>>, vector<1x32x128xf32>
    %110 = vector.shape_cast %109 : vector<1x32x128xf32> to vector<32x128xf32>
    %cst_50 = arith.constant dense<0.000000e+00> : vector<16x128xf32>
    %111 = tpu.matmul %104, %110, %cst_50 {dimension_numbers = #tpu.dot_dimension_numbers<[1], [0], [0], [1], [0, 0, 1, 1], [], []>} : vector<16x32xf32>, vector<32x128xf32>, vector<16x128xf32> -> vector<16x128xf32>
    %c0_51 = arith.constant 0 : index
    %c0_52 = arith.constant 0 : index
    %c0_53 = arith.constant 0 : index
    %112 = vector.load %arg12[%c0_51, %c0_52, %c0_53] : memref<1x1x128xf32, #tpu.memory_space<vmem>>, vector<1x1x128xf32>
    %113 = vector.shape_cast %112 : vector<1x1x128xf32> to vector<1x128xf32>
    %114 = vector.broadcast %113 : vector<1x128xf32> to vector<16x128xf32>
    %115 = arith.addf %111, %114 : vector<16x128xf32>
    %cst_54 = arith.constant 5.000000e-01 : f32
    %116 = vector.broadcast %cst_54 : f32 to vector<16x128xf32>
    %117 = arith.mulf %116, %115 : vector<16x128xf32>
    %cst_55 = arith.constant 0.707106769 : f32
    %118 = vector.broadcast %cst_55 : f32 to vector<16x128xf32>
    %119 = arith.mulf %115, %118 : vector<16x128xf32>
    %120 = math.erf %119 : vector<16x128xf32>
    %cst_56 = arith.constant 1.000000e+00 : f32
    %121 = vector.broadcast %cst_56 : f32 to vector<16x128xf32>
    %122 = arith.addf %121, %120 : vector<16x128xf32>
    %123 = arith.mulf %117, %122 : vector<16x128xf32>
    %c0_57 = arith.constant 0 : index
    %c0_58 = arith.constant 0 : index
    %c0_59 = arith.constant 0 : index
    %124 = vector.load %arg13[%c0_57, %c0_58, %c0_59] : memref<1x128x32xf32, #tpu.memory_space<vmem>>, vector<1x128x32xf32>
    %125 = vector.shape_cast %124 : vector<1x128x32xf32> to vector<128x32xf32>
    %cst_60 = arith.constant dense<0.000000e+00> : vector<16x32xf32>
    %126 = tpu.matmul %123, %125, %cst_60 {dimension_numbers = #tpu.dot_dimension_numbers<[1], [0], [0], [1], [0, 0, 1, 1], [], []>} : vector<16x128xf32>, vector<128x32xf32>, vector<16x32xf32> -> vector<16x32xf32>
    %127 = arith.addf %108, %126 : vector<16x32xf32>
    %c0_61 = arith.constant 0 : index
    %c0_62 = arith.constant 0 : index
    %128 = vector.load %arg16[%c0_61, %c0_62] : memref<16x32xf32, #tpu.memory_space<vmem>>, vector<16x32xf32>
    tpu.vector_store %arg16[%c0_61, %c0_62], %127 {strides = array<i32>} : memref<16x32xf32, #tpu.memory_space<vmem>>, vector<16x32xf32>,
    %c1_i32 = arith.constant 1 : i32
    %129 = arith.cmpi eq, %arg1, %c1_i32 : i32
    %130 = arith.extui %129 : i1 to i32
    %c0_i32_63 = arith.constant 0 : i32
    %131 = arith.cmpi ne, %130, %c0_i32_63 : i32
    scf.if %131 {
      %132 = vector.shape_cast %127 : vector<16x32xf32> to vector<2x8x32xf32>
      %c0_64 = arith.constant 0 : index
      %c0_65 = arith.constant 0 : index
      %c0_66 = arith.constant 0 : index
      %133 = vector.load %arg15[%c0_64, %c0_65, %c0_66] : memref<2x8x32xf32, #tpu.memory_space<vmem>>, vector<2x8x32xf32>
      tpu.vector_store %arg15[%c0_64, %c0_65, %c0_66], %132 {strides = array<i32>} : memref<2x8x32xf32, #tpu.memory_space<vmem>>, vector<2x8x32xf32>,
    } else {
    }
    return
  }
  func.func @transform_0(%arg0: i32, %arg1: i32) -> (i32, i32, i32) {
    %c0_i32 = arith.constant 0 : i32
    %c0_i32_0 = arith.constant 0 : i32
    %c0_i32_1 = arith.constant 0 : i32
    return %arg0, %c0_i32, %c0_i32_0 : i32, i32, i32
  }
  func.func @transform_1(%arg0: i32, %arg1: i32) -> (i32, i32, i32) {
    %c0_i32 = arith.constant 0 : i32
    %c0_i32_0 = arith.constant 0 : i32
    %c0_i32_1 = arith.constant 0 : i32
    return %arg1, %c0_i32, %c0_i32_0 : i32, i32, i32
  }
  func.func @transform_2(%arg0: i32, %arg1: i32) -> (i32, i32, i32) {
    %c0_i32 = arith.constant 0 : i32
    %c0_i32_0 = arith.constant 0 : i32
    %c0_i32_1 = arith.constant 0 : i32
    return %arg1, %c0_i32, %c0_i32_0 : i32, i32, i32
  }
  func.func @transform_3(%arg0: i32, %arg1: i32) -> (i32, i32, i32) {
    %c0_i32 = arith.constant 0 : i32
    %c0_i32_0 = arith.constant 0 : i32
    %c0_i32_1 = arith.constant 0 : i32
    return %arg1, %c0_i32, %c0_i32_0 : i32, i32, i32
  }
  func.func @transform_4(%arg0: i32, %arg1: i32) -> (i32, i32, i32) {
    %c0_i32 = arith.constant 0 : i32
    %c0_i32_0 = arith.constant 0 : i32
    %c0_i32_1 = arith.constant 0 : i32
    return %arg1, %c0_i32, %c0_i32_0 : i32, i32, i32
  }
  func.func @transform_5(%arg0: i32, %arg1: i32) -> (i32, i32, i32) {
    %c0_i32 = arith.constant 0 : i32
    %c0_i32_0 = arith.constant 0 : i32
    %c0_i32_1 = arith.constant 0 : i32
    return %arg1, %c0_i32, %c0_i32_0 : i32, i32, i32
  }
  func.func @transform_6(%arg0: i32, %arg1: i32) -> (i32, i32, i32) {
    %c0_i32 = arith.constant 0 : i32
    %c0_i32_0 = arith.constant 0 : i32
    %c0_i32_1 = arith.constant 0 : i32
    return %arg1, %c0_i32, %c0_i32_0 : i32, i32, i32
  }
  func.func @transform_7(%arg0: i32, %arg1: i32) -> (i32, i32, i32) {
    %c0_i32 = arith.constant 0 : i32
    %c0_i32_0 = arith.constant 0 : i32
    %c0_i32_1 = arith.constant 0 : i32
    return %arg1, %c0_i32, %c0_i32_0 : i32, i32, i32
  }
  func.func @transform_8(%arg0: i32, %arg1: i32) -> (i32, i32, i32) {
    %c0_i32 = arith.constant 0 : i32
    %c0_i32_0 = arith.constant 0 : i32
    %c0_i32_1 = arith.constant 0 : i32
    return %arg1, %c0_i32, %c0_i32_0 : i32, i32, i32
  }
  func.func @transform_9(%arg0: i32, %arg1: i32) -> (i32, i32, i32) {
    %c0_i32 = arith.constant 0 : i32
    %c0_i32_0 = arith.constant 0 : i32
    %c0_i32_1 = arith.constant 0 : i32
    return %arg1, %c0_i32, %c0_i32_0 : i32, i32, i32
  }
  func.func @transform_10(%arg0: i32, %arg1: i32) -> (i32, i32, i32) {
    %c0_i32 = arith.constant 0 : i32
    %c0_i32_0 = arith.constant 0 : i32
    %c0_i32_1 = arith.constant 0 : i32
    return %arg1, %c0_i32, %c0_i32_0 : i32, i32, i32
  }
  func.func @transform_11(%arg0: i32, %arg1: i32) -> (i32, i32, i32) {
    %c0_i32 = arith.constant 0 : i32
    %c0_i32_0 = arith.constant 0 : i32
    %c0_i32_1 = arith.constant 0 : i32
    return %arg1, %c0_i32, %c0_i32_0 : i32, i32, i32
  }
  func.func @transform_12(%arg0: i32, %arg1: i32) -> (i32, i32, i32) {
    %c0_i32 = arith.constant 0 : i32
    %c0_i32_0 = arith.constant 0 : i32
    %c0_i32_1 = arith.constant 0 : i32
    return %arg1, %c0_i32, %c0_i32_0 : i32, i32, i32
  }
  func.func @transform_13(%arg0: i32, %arg1: i32) -> (i32, i32, i32) {
    %c0_i32 = arith.constant 0 : i32
    %c0_i32_0 = arith.constant 0 : i32
    %c0_i32_1 = arith.constant 0 : i32
    return %arg0, %c0_i32, %c0_i32_0 : i32, i32, i32
  }
}

</mosaic_0001>

<llo_original>
// kernel: tpu_custom_call.1
$region0: #{tpu_custom_call.1}
  #allocation0 [shape = 'u32[]', space=smem, size = 0x4, offset = 0x4, fixed_abs, tag = 'smem constant byte address 0x4 - core index']
  #allocation1 [shape = 'u32[144,128]{1,0:T(1,128)}', space=vmem, size = 0x12000, scoped, tag = 'internal scratch']
  #allocation2 [shape = 'f32[16,32]{1,0:T(8,128)}', space=vmem, size = 0x2000, scoped, tag = 'scratch operand']
  %s0 = inlined_call_operand.vmem [shape: f32[2,8,32], index: 0, kind: input, shape index: {}]
  %s1 = inlined_call_operand.vmem [shape: f32[2,1,32], index: 1, kind: input, shape index: {}]
  %s2 = inlined_call_operand.vmem [shape: f32[2,1,32], index: 2, kind: input, shape index: {}]
  %s3 = inlined_call_operand.vmem [shape: f32[2,32,96], index: 3, kind: input, shape index: {}]
  %s4 = inlined_call_operand.vmem [shape: f32[2,1,96], index: 4, kind: input, shape index: {}]
  %s5 = inlined_call_operand.vmem [shape: f32[2,32,32], index: 5, kind: input, shape index: {}]
  %s6 = inlined_call_operand.vmem [shape: f32[2,1,32], index: 6, kind: input, shape index: {}]
  %s7 = inlined_call_operand.vmem [shape: f32[2,1,32], index: 7, kind: input, shape index: {}]
  %s8 = inlined_call_operand.vmem [shape: f32[2,1,32], index: 8, kind: input, shape index: {}]
  %s9 = inlined_call_operand.vmem [shape: f32[2,32,128], index: 9, kind: input, shape index: {}]
  %s10 = inlined_call_operand.vmem [shape: f32[2,1,128], index: 10, kind: input, shape index: {}]
  %s11 = inlined_call_operand.vmem [shape: f32[2,128,32], index: 11, kind: input, shape index: {}]
  %s12 = inlined_call_operand.vmem [shape: f32[2,1,32], index: 12, kind: input, shape index: {}]
  %s13 = inlined_call_operand.hbm [shape: f32[2,8,32], index: 13, kind: output, shape index: {}]
  %s14 = sld [smem:[#allocation0]]
  $region93: #{tpu_custom_call.1} parent=0
    _
  %s16 = ssub.s32 1, %s14
  %s17 = scalar_select 0, %s16, %s14
  $region1: #{tpu_custom_call.1} parent=0
    #allocation3 [shape = 'u8[8192]{0}', space=vmem, size = 0x2000, scoped, tag = 'output window, operand 0, single buffered']
    #allocation4 [shape = 's32[2]{0}', space=sflag, size = 0x8, scoped, tag = 'scoped memory for tpu_custom_call.1']
    %18 = vsyncpa [#allocation4], 0
    loop: start=0, step=1, limit=4
    $region2: #{tpu_custom_call.1} parent=1 // loop_pre_header
      _
    $region3: #{tpu_custom_call.1} parent=1 // loop_header
      %s20 = sphi 0, %s24
      %p21 = scmp.ge.s32.totalorder %s20, 4
      %s27 = sphi 0, %s39
      %s28 = sphi 0, %s35
      %s29 = sphi 0, %s27
      %s30 = sphi 0, %s28
      %s31 = sphi 0, %s29
      %s32 = sphi 0, %s30
      %s42 = sphi 0, %s44
      %s45 = sphi 0, %s42
      %s46 = sphi 0, %s45
      %s62 = sphi 0, %s46
      %s68 = sphi 0, %s70
      %s71 = sphi 0, %s68
      %s72 = sphi 0, %s71
      %s88 = sphi 0, %s72
      %s94 = sphi 0, %s96
      %s97 = sphi 0, %s94
      %s98 = sphi 0, %s97
      %s114 = sphi 0, %s98
      %s120 = sphi 0, %s122
      %s123 = sphi 0, %s120
      %s124 = sphi 0, %s123
      %s140 = sphi 0, %s124
      %s146 = sphi 0, %s148
      %s149 = sphi 0, %s146
      %s150 = sphi 0, %s149
      %s166 = sphi 0, %s150
      %s172 = sphi 0, %s174
      %s175 = sphi 0, %s172
      %s176 = sphi 0, %s175
      %s192 = sphi 0, %s176
      %s198 = sphi 0, %s200
      %s201 = sphi 0, %s198
      %s202 = sphi 0, %s201
      %s218 = sphi 0, %s202
      %s224 = sphi 0, %s226
      %s227 = sphi 0, %s224
      %s228 = sphi 0, %s227
      %s244 = sphi 0, %s228
      %s250 = sphi 0, %s252
      %s253 = sphi 0, %s250
      %s254 = sphi 0, %s253
      %s270 = sphi 0, %s254
      %s276 = sphi 0, %s278
      %s279 = sphi 0, %s276
      %s280 = sphi 0, %s279
      %s296 = sphi 0, %s280
      %s302 = sphi 0, %s304
      %s305 = sphi 0, %s302
      %s306 = sphi 0, %s305
      %s322 = sphi 0, %s306
      %s328 = sphi 0, %s330
      %s331 = sphi 0, %s328
      %s332 = sphi 0, %s331
      %s348 = sphi 0, %s332
      %s354 = sphi 0, %s356
      %s357 = sphi 0, %s354
      %s358 = sphi 0, %s357
      %s374 = sphi 0, %s358
      %s380 = sphi 0, %s382
      %s383 = sphi 0, %s380
      %s384 = sphi 0, %s383
      %s400 = sphi 0, %s384
    $region4: #{tpu_custom_call.1} parent=1 // loop_header_branch
      %23 = sbr.rel (%p21) target = $region8
    $region5: #{tpu_custom_call.1} parent=1 // loop_body
      %s25 = ssub.s32 %s20, 1
      %s26 = ssub.s32 %s20, 2
      %s33 = sadd.s32 1, %s28
      %p34 = scmp.ge.s32.totalorder %s33, 2
      %s35 = scalar_select %p34, 0, %s33
      %s36 = sadd.s32 1, %s27
      %s37 = scalar_select %p34, %s36, %s27
      %p38 = scmp.ge.s32.totalorder %s37, 1
      %s39 = scalar_select %p38, 0, %s37
      %s40 = ssub.s32 %s27, %s39
      %p41 = scmp.eq.s32.totalorder %s40, 0
      %s43 = sadd.s32 %s42, 1
      %s44 = scalar_select %p41, %s42, %s43
      %p47 = pneg %p41
      %p48 = scmp.eq.s32.totalorder %s20, 1
      %p49 = por %p47, %p48
      %p50 = scmp.ne.s32.totalorder %s42, %s45
      %p51 = scmp.eq.s32.totalorder %s20, 0
      %p52 = por %p50, %p51
      %p53 = scmp.ne.s32.totalorder %s42, %s45
      %p54 = scmp.eq.s32.totalorder %s25, 1
      %p55 = por %p53, %p54
      %p56 = scmp.ne.s32.totalorder %s45, %s46
      %p57 = scmp.eq.s32.totalorder %s25, 0
      %p58 = por %p56, %p57
      %p59 = scmp.ne.s32.totalorder %s45, %s46
      %p60 = scmp.eq.s32.totalorder %s26, 1
      %p61 = por %p59, %p60
      %p63 = scmp.ne.s32.totalorder %s46, %s62
      %p64 = scmp.eq.s32.totalorder %s26, 0
      %p65 = por %p63, %p64
      %s66 = ssub.s32 %s28, %s35
      %p67 = scmp.eq.s32.totalorder %s66, 0
      %s69 = sadd.s32 %s68, 1
      %s70 = scalar_select %p67, %s68, %s69
      %p73 = pneg %p67
      %p74 = scmp.eq.s32.totalorder %s20, 1
      %p75 = por %p73, %p74
      %p76 = scmp.ne.s32.totalorder %s68, %s71
      %p77 = scmp.eq.s32.totalorder %s20, 0
      %p78 = por %p76, %p77
      %p79 = scmp.ne.s32.totalorder %s68, %s71
      %p80 = scmp.eq.s32.totalorder %s25, 1
      %p81 = por %p79, %p80
      %p82 = scmp.ne.s32.totalorder %s71, %s72
      %p83 = scmp.eq.s32.totalorder %s25, 0
      %p84 = por %p82, %p83
      %p85 = scmp.ne.s32.totalorder %s71, %s72
      %p86 = scmp.eq.s32.totalorder %s26, 1
      %p87 = por %p85, %p86
      %p89 = scmp.ne.s32.totalorder %s72, %s88
      %p90 = scmp.eq.s32.totalorder %s26, 0
      %p91 = por %p89, %p90
      %s92 = ssub.s32 %s28, %s35
      %p93 = scmp.eq.s32.totalorder %s92, 0
      %s95 = sadd.s32 %s94, 1
      %s96 = scalar_select %p93, %s94, %s95
      %p99 = pneg %p93
      %p100 = scmp.eq.s32.totalorder %s20, 1
      %p101 = por %p99, %p100
      %p102 = scmp.ne.s32.totalorder %s94, %s97
      %p103 = scmp.eq.s32.totalorder %s20, 0
      %p104 = por %p102, %p103
      %p105 = scmp.ne.s32.totalorder %s94, %s97
      %p106 = scmp.eq.s32.totalorder %s25, 1
      %p107 = por %p105, %p106
      %p108 = scmp.ne.s32.totalorder %s97, %s98
      %p109 = scmp.eq.s32.totalorder %s25, 0
      %p110 = por %p108, %p109
      %p111 = scmp.ne.s32.totalorder %s97, %s98
      %p112 = scmp.eq.s32.totalorder %s26, 1
      %p113 = por %p111, %p112
      %p115 = scmp.ne.s32.totalorder %s98, %s114
      %p116 = scmp.eq.s32.totalorder %s26, 0
      %p117 = por %p115, %p116
      %s118 = ssub.s32 %s28, %s35
      %p119 = scmp.eq.s32.totalorder %s118, 0
      %s121 = sadd.s32 %s120, 1
      %s122 = scalar_select %p119, %s120, %s121
      %p125 = pneg %p119
      %p126 = scmp.eq.s32.totalorder %s20, 1
      %p127 = por %p125, %p126
      %p128 = scmp.ne.s32.totalorder %s120, %s123
      %p129 = scmp.eq.s32.totalorder %s20, 0
      %p130 = por %p128, %p129
      %p131 = scmp.ne.s32.totalorder %s120, %s123
      %p132 = scmp.eq.s32.totalorder %s25, 1
      %p133 = por %p131, %p132
      %p134 = scmp.ne.s32.totalorder %s123, %s124
      %p135 = scmp.eq.s32.totalorder %s25, 0
      %p136 = por %p134, %p135
      %p137 = scmp.ne.s32.totalorder %s123, %s124
      %p138 = scmp.eq.s32.totalorder %s26, 1
      %p139 = por %p137, %p138
      %p141 = scmp.ne.s32.totalorder %s124, %s140
      %p142 = scmp.eq.s32.totalorder %s26, 0
      %p143 = por %p141, %p142
      %s144 = ssub.s32 %s28, %s35
      %p145 = scmp.eq.s32.totalorder %s144, 0
      %s147 = sadd.s32 %s146, 1
      %s148 = scalar_select %p145, %s146, %s147
      %p151 = pneg %p145
      %p152 = scmp.eq.s32.totalorder %s20, 1
      %p153 = por %p151, %p152
      %p154 = scmp.ne.s32.totalorder %s146, %s149
      %p155 = scmp.eq.s32.totalorder %s20, 0
      %p156 = por %p154, %p155
      %p157 = scmp.ne.s32.totalorder %s146, %s149
      %p158 = scmp.eq.s32.totalorder %s25, 1
      %p159 = por %p157, %p158
      %p160 = scmp.ne.s32.totalorder %s149, %s150
      %p161 = scmp.eq.s32.totalorder %s25, 0
      %p162 = por %p160, %p161
      %p163 = scmp.ne.s32.totalorder %s149, %s150
      %p164 = scmp.eq.s32.totalorder %s26, 1
      %p165 = por %p163, %p164
      %p167 = scmp.ne.s32.totalorder %s150, %s166
      %p168 = scmp.eq.s32.totalorder %s26, 0
      %p169 = por %p167, %p168
      %s170 = ssub.s32 %s28, %s35
      %p171 = scmp.eq.s32.totalorder %s170, 0
      %s173 = sadd.s32 %s172, 1
      %s174 = scalar_select %p171, %s172, %s173
      %p177 = pneg %p171
      %p178 = scmp.eq.s32.totalorder %s20, 1
      %p179 = por %p177, %p178
      %p180 = scmp.ne.s32.totalorder %s172, %s175
      %p181 = scmp.eq.s32.totalorder %s20, 0
      %p182 = por %p180, %p181
      %p183 = scmp.ne.s32.totalorder %s172, %s175
      %p184 = scmp.eq.s32.totalorder %s25, 1
      %p185 = por %p183, %p184
      %p186 = scmp.ne.s32.totalorder %s175, %s176
      %p187 = scmp.eq.s32.totalorder %s25, 0
      %p188 = por %p186, %p187
      %p189 = scmp.ne.s32.totalorder %s175, %s176
      %p190 = scmp.eq.s32.totalorder %s26, 1
      %p191 = por %p189, %p190
      %p193 = scmp.ne.s32.totalorder %s176, %s192
      %p194 = scmp.eq.s32.totalorder %s26, 0
      %p195 = por %p193, %p194
      %s196 = ssub.s32 %s28, %s35
      %p197 = scmp.eq.s32.totalorder %s196, 0
      %s199 = sadd.s32 %s198, 1
      %s200 = scalar_select %p197, %s198, %s199
      %p203 = pneg %p197
      %p204 = scmp.eq.s32.totalorder %s20, 1
      %p205 = por %p203, %p204
      %p206 = scmp.ne.s32.totalorder %s198, %s201
      %p207 = scmp.eq.s32.totalorder %s20, 0
      %p208 = por %p206, %p207
      %p209 = scmp.ne.s32.totalorder %s198, %s201
      %p210 = scmp.eq.s32.totalorder %s25, 1
      %p211 = por %p209, %p210
      %p212 = scmp.ne.s32.totalorder %s201, %s202
      %p213 = scmp.eq.s32.totalorder %s25, 0
      %p214 = por %p212, %p213
      %p215 = scmp.ne.s32.totalorder %s201, %s202
      %p216 = scmp.eq.s32.totalorder %s26, 1
      %p217 = por %p215, %p216
      %p219 = scmp.ne.s32.totalorder %s202, %s218
      %p220 = scmp.eq.s32.totalorder %s26, 0
      %p221 = por %p219, %p220
      %s222 = ssub.s32 %s28, %s35
      %p223 = scmp.eq.s32.totalorder %s222, 0
      %s225 = sadd.s32 %s224, 1
      %s226 = scalar_select %p223, %s224, %s225
      %p229 = pneg %p223
      %p230 = scmp.eq.s32.totalorder %s20, 1
      %p231 = por %p229, %p230
      %p232 = scmp.ne.s32.totalorder %s224, %s227
      %p233 = scmp.eq.s32.totalorder %s20, 0
      %p234 = por %p232, %p233
      %p235 = scmp.ne.s32.totalorder %s224, %s227
      %p236 = scmp.eq.s32.totalorder %s25, 1
      %p237 = por %p235, %p236
      %p238 = scmp.ne.s32.totalorder %s227, %s228
      %p239 = scmp.eq.s32.totalorder %s25, 0
      %p240 = por %p238, %p239
      %p241 = scmp.ne.s32.totalorder %s227, %s228
      %p242 = scmp.eq.s32.totalorder %s26, 1
      %p243 = por %p241, %p242
      %p245 = scmp.ne.s32.totalorder %s228, %s244
      %p246 = scmp.eq.s32.totalorder %s26, 0
      %p247 = por %p245, %p246
      %s248 = ssub.s32 %s28, %s35
      %p249 = scmp.eq.s32.totalorder %s248, 0
      %s251 = sadd.s32 %s250, 1
      %s252 = scalar_select %p249, %s250, %s251
      %p255 = pneg %p249
      %p256 = scmp.eq.s32.totalorder %s20, 1
      %p257 = por %p255, %p256
      %p258 = scmp.ne.s32.totalorder %s250, %s253
      %p259 = scmp.eq.s32.totalorder %s20, 0
      %p260 = por %p258, %p259
      %p261 = scmp.ne.s32.totalorder %s250, %s253
      %p262 = scmp.eq.s32.totalorder %s25, 1
      %p263 = por %p261, %p262
      %p264 = scmp.ne.s32.totalorder %s253, %s254
      %p265 = scmp.eq.s32.totalorder %s25, 0
      %p266 = por %p264, %p265
      %p267 = scmp.ne.s32.totalorder %s253, %s254
      %p268 = scmp.eq.s32.totalorder %s26, 1
      %p269 = por %p267, %p268
      %p271 = scmp.ne.s32.totalorder %s254, %s270
      %p272 = scmp.eq.s32.totalorder %s26, 0
      %p273 = por %p271, %p272
      %s274 = ssub.s32 %s28, %s35
      %p275 = scmp.eq.s32.totalorder %s274, 0
      %s277 = sadd.s32 %s276, 1
      %s278 = scalar_select %p275, %s276, %s277
      %p281 = pneg %p275
      %p282 = scmp.eq.s32.totalorder %s20, 1
      %p283 = por %p281, %p282
      %p284 = scmp.ne.s32.totalorder %s276, %s279
      %p285 = scmp.eq.s32.totalorder %s20, 0
      %p286 = por %p284, %p285
      %p287 = scmp.ne.s32.totalorder %s276, %s279
      %p288 = scmp.eq.s32.totalorder %s25, 1
      %p289 = por %p287, %p288
      %p290 = scmp.ne.s32.totalorder %s279, %s280
      %p291 = scmp.eq.s32.totalorder %s25, 0
      %p292 = por %p290, %p291
      %p293 = scmp.ne.s32.totalorder %s279, %s280
      %p294 = scmp.eq.s32.totalorder %s26, 1
      %p295 = por %p293, %p294
      %p297 = scmp.ne.s32.totalorder %s280, %s296
      %p298 = scmp.eq.s32.totalorder %s26, 0
      %p299 = por %p297, %p298
      %s300 = ssub.s32 %s28, %s35
      %p301 = scmp.eq.s32.totalorder %s300, 0
      %s303 = sadd.s32 %s302, 1
      %s304 = scalar_select %p301, %s302, %s303
      %p307 = pneg %p301
      %p308 = scmp.eq.s32.totalorder %s20, 1
      %p309 = por %p307, %p308
      %p310 = scmp.ne.s32.totalorder %s302, %s305
      %p311 = scmp.eq.s32.totalorder %s20, 0
      %p312 = por %p310, %p311
      %p313 = scmp.ne.s32.totalorder %s302, %s305
      %p314 = scmp.eq.s32.totalorder %s25, 1
      %p315 = por %p313, %p314
      %p316 = scmp.ne.s32.totalorder %s305, %s306
      %p317 = scmp.eq.s32.totalorder %s25, 0
      %p318 = por %p316, %p317
      %p319 = scmp.ne.s32.totalorder %s305, %s306
      %p320 = scmp.eq.s32.totalorder %s26, 1
      %p321 = por %p319, %p320
      %p323 = scmp.ne.s32.totalorder %s306, %s322
      %p324 = scmp.eq.s32.totalorder %s26, 0
      %p325 = por %p323, %p324
      %s326 = ssub.s32 %s28, %s35
      %p327 = scmp.eq.s32.totalorder %s326, 0
      %s329 = sadd.s32 %s328, 1
      %s330 = scalar_select %p327, %s328, %s329
      %p333 = pneg %p327
      %p334 = scmp.eq.s32.totalorder %s20, 1
      %p335 = por %p333, %p334
      %p336 = scmp.ne.s32.totalorder %s328, %s331
      %p337 = scmp.eq.s32.totalorder %s20, 0
      %p338 = por %p336, %p337
      %p339 = scmp.ne.s32.totalorder %s328, %s331
      %p340 = scmp.eq.s32.totalorder %s25, 1
      %p341 = por %p339, %p340
      %p342 = scmp.ne.s32.totalorder %s331, %s332
      %p343 = scmp.eq.s32.totalorder %s25, 0
      %p344 = por %p342, %p343
      %p345 = scmp.ne.s32.totalorder %s331, %s332
      %p346 = scmp.eq.s32.totalorder %s26, 1
      %p347 = por %p345, %p346
      %p349 = scmp.ne.s32.totalorder %s332, %s348
      %p350 = scmp.eq.s32.totalorder %s26, 0
      %p351 = por %p349, %p350
      %s352 = ssub.s32 %s28, %s35
      %p353 = scmp.eq.s32.totalorder %s352, 0
      %s355 = sadd.s32 %s354, 1
      %s356 = scalar_select %p353, %s354, %s355
      %p359 = pneg %p353
      %p360 = scmp.eq.s32.totalorder %s20, 1
      %p361 = por %p359, %p360
      %p362 = scmp.ne.s32.totalorder %s354, %s357
      %p363 = scmp.eq.s32.totalorder %s20, 0
      %p364 = por %p362, %p363
      %p365 = scmp.ne.s32.totalorder %s354, %s357
      %p366 = scmp.eq.s32.totalorder %s25, 1
      %p367 = por %p365, %p366
      %p368 = scmp.ne.s32.totalorder %s357, %s358
      %p369 = scmp.eq.s32.totalorder %s25, 0
      %p370 = por %p368, %p369
      %p371 = scmp.ne.s32.totalorder %s357, %s358
      %p372 = scmp.eq.s32.totalorder %s26, 1
      %p373 = por %p371, %p372
      %p375 = scmp.ne.s32.totalorder %s358, %s374
      %p376 = scmp.eq.s32.totalorder %s26, 0
      %p377 = por %p375, %p376
      %s378 = ssub.s32 %s27, %s39
      %p379 = scmp.eq.s32.totalorder %s378, 0
      %s381 = sadd.s32 %s380, 1
      %s382 = scalar_select %p379, %s380, %s381
      %p385 = pneg %p379
      %p386 = scmp.eq.s32.totalorder %s20, 1
      %p387 = por %p385, %p386
      %p388 = scmp.ne.s32.totalorder %s380, %s383
      %p389 = scmp.eq.s32.totalorder %s20, 0
      %p390 = por %p388, %p389
      %p391 = scmp.ne.s32.totalorder %s380, %s383
      %p392 = scmp.eq.s32.totalorder %s25, 1
      %p393 = por %p391, %p392
      %p394 = scmp.ne.s32.totalorder %s383, %s384
      %p395 = scmp.eq.s32.totalorder %s25, 0
      %p396 = por %p394, %p395
      %p397 = scmp.ne.s32.totalorder %s383, %s384
      %p398 = scmp.eq.s32.totalorder %s26, 1
      %p399 = por %p397, %p398
      %p401 = scmp.ne.s32.totalorder %s384, %s400
      %p402 = scmp.eq.s32.totalorder %s26, 0
      %p403 = por %p401, %p402
      %p404 = scmp.le.s32.totalorder 1, %s20
      %p405 = scmp.lt.s32.totalorder %s20, 3
      %p406 = pnand %p404, %p405
      %p407 = pneg %p406
      // Predicated region
      $region9: #{tpu_custom_call.1} parent=5 // pred_check
        _
      $region10: #{tpu_custom_call.1} parent=5 // pred_check_branch
        %409 = sbr.rel (%p406) target = $region12
      $region11: #{tpu_custom_call.1} parent=5 // pred_region
        %s410 = ssub.s32 %s20, 1
        // Predicated region
        $region13: #{tpu_custom_call.1} parent=11 // pred_check
          %p411 = pneg %p58
        $region14: #{tpu_custom_call.1} parent=11 // pred_check_branch
          %413 = sbr.rel (%p411) target = $region16
        $region15: #{tpu_custom_call.1} parent=11 // pred_region
          %s414 = smul.u32 2, %s29
          %p415 = scmp.lt.s32.totalorder %s414, 1
          %s416 = scalar_select %p415, %s414, 1
          %s417 = smul.addr %s416, 8
          %s418 = scalar_lea.vmem %s0, %s417
          %s419 = smul.u32 2, %s29
        $region16: #{tpu_custom_call.1} parent=11 // pred_fallthru
          _
      $region12: #{tpu_custom_call.1} parent=5 // pred_fallthru
        _
      %p420 = scmp.lt.s32.totalorder %s20, 2
      // Predicated region
      $region17: #{tpu_custom_call.1} parent=5 // pred_check
        %p421 = pneg %p420
      $region18: #{tpu_custom_call.1} parent=5 // pred_check_branch
        %423 = sbr.rel (%p421) target = $region20
      $region19: #{tpu_custom_call.1} parent=5 // pred_region
        // Predicated region
        $region21: #{tpu_custom_call.1} parent=19 // pred_check
          %p424 = pneg %p78
        $region22: #{tpu_custom_call.1} parent=19 // pred_check_branch
          %426 = sbr.rel (%p424) target = $region24
        $region23: #{tpu_custom_call.1} parent=19 // pred_region
          %p427 = scmp.lt.s32.totalorder %s28, 1
          %s428 = scalar_select %p427, %s28, 1
          %s429 = scalar_lea.vmem %s1, %s428
        $region24: #{tpu_custom_call.1} parent=19 // pred_fallthru
          _
        // Predicated region
        $region25: #{tpu_custom_call.1} parent=19 // pred_check
          %p430 = pneg %p104
        $region26: #{tpu_custom_call.1} parent=19 // pred_check_branch
          %432 = sbr.rel (%p430) target = $region28
        $region27: #{tpu_custom_call.1} parent=19 // pred_region
          %p433 = scmp.lt.s32.totalorder %s28, 1
          %s434 = scalar_select %p433, %s28, 1
          %s435 = scalar_lea.vmem %s2, %s434
        $region28: #{tpu_custom_call.1} parent=19 // pred_fallthru
          _
        // Predicated region
        $region29: #{tpu_custom_call.1} parent=19 // pred_check
          %p436 = pneg %p130
        $region30: #{tpu_custom_call.1} parent=19 // pred_check_branch
          %438 = sbr.rel (%p436) target = $region32
        $region31: #{tpu_custom_call.1} parent=19 // pred_region
          %p439 = scmp.lt.s32.totalorder %s28, 1
          %s440 = scalar_select %p439, %s28, 1
          %s441 = smul.addr %s440, 4
          %s442 = smul.addr %s441, 8
          %s443 = scalar_lea.vmem %s3, %s442
        $region32: #{tpu_custom_call.1} parent=19 // pred_fallthru
          _
        // Predicated region
        $region33: #{tpu_custom_call.1} parent=19 // pred_check
          %p444 = pneg %p156
        $region34: #{tpu_custom_call.1} parent=19 // pred_check_branch
          %446 = sbr.rel (%p444) target = $region36
        $region35: #{tpu_custom_call.1} parent=19 // pred_region
          %p447 = scmp.lt.s32.totalorder %s28, 1
          %s448 = scalar_select %p447, %s28, 1
          %s449 = scalar_lea.vmem %s4, %s448
        $region36: #{tpu_custom_call.1} parent=19 // pred_fallthru
          _
        // Predicated region
        $region37: #{tpu_custom_call.1} parent=19 // pred_check
          %p450 = pneg %p182
        $region38: #{tpu_custom_call.1} parent=19 // pred_check_branch
          %452 = sbr.rel (%p450) target = $region40
        $region39: #{tpu_custom_call.1} parent=19 // pred_region
          %p453 = scmp.lt.s32.totalorder %s28, 1
          %s454 = scalar_select %p453, %s28, 1
          %s455 = smul.addr %s454, 4
          %s456 = smul.addr %s455, 8
          %s457 = scalar_lea.vmem %s5, %s456
        $region40: #{tpu_custom_call.1} parent=19 // pred_fallthru
          _
        // Predicated region
        $region41: #{tpu_custom_call.1} parent=19 // pred_check
          %p458 = pneg %p208
        $region42: #{tpu_custom_call.1} parent=19 // pred_check_branch
          %460 = sbr.rel (%p458) target = $region44
        $region43: #{tpu_custom_call.1} parent=19 // pred_region
          %p461 = scmp.lt.s32.totalorder %s28, 1
          %s462 = scalar_select %p461, %s28, 1
          %s463 = scalar_lea.vmem %s6, %s462
        $region44: #{tpu_custom_call.1} parent=19 // pred_fallthru
          _
        // Predicated region
        $region45: #{tpu_custom_call.1} parent=19 // pred_check
          %p464 = pneg %p234
        $region46: #{tpu_custom_call.1} parent=19 // pred_check_branch
          %466 = sbr.rel (%p464) target = $region48
        $region47: #{tpu_custom_call.1} parent=19 // pred_region
          %p467 = scmp.lt.s32.totalorder %s28, 1
          %s468 = scalar_select %p467, %s28, 1
          %s469 = scalar_lea.vmem %s7, %s468
        $region48: #{tpu_custom_call.1} parent=19 // pred_fallthru
          _
        // Predicated region
        $region49: #{tpu_custom_call.1} parent=19 // pred_check
          %p470 = pneg %p260
        $region50: #{tpu_custom_call.1} parent=19 // pred_check_branch
          %472 = sbr.rel (%p470) target = $region52
        $region51: #{tpu_custom_call.1} parent=19 // pred_region
          %p473 = scmp.lt.s32.totalorder %s28, 1
          %s474 = scalar_select %p473, %s28, 1
          %s475 = scalar_lea.vmem %s8, %s474
        $region52: #{tpu_custom_call.1} parent=19 // pred_fallthru
          _
        // Predicated region
        $region53: #{tpu_custom_call.1} parent=19 // pred_check
          %p476 = pneg %p286
        $region54: #{tpu_custom_call.1} parent=19 // pred_check_branch
          %478 = sbr.rel (%p476) target = $region56
        $region55: #{tpu_custom_call.1} parent=19 // pred_region
          %p479 = scmp.lt.s32.totalorder %s28, 1
          %s480 = scalar_select %p479, %s28, 1
          %s481 = smul.addr %s480, 4
          %s482 = smul.addr %s481, 8
          %s483 = scalar_lea.vmem %s9, %s482
        $region56: #{tpu_custom_call.1} parent=19 // pred_fallthru
          _
        // Predicated region
        $region57: #{tpu_custom_call.1} parent=19 // pred_check
          %p484 = pneg %p312
        $region58: #{tpu_custom_call.1} parent=19 // pred_check_branch
          %486 = sbr.rel (%p484) target = $region60
        $region59: #{tpu_custom_call.1} parent=19 // pred_region
          %p487 = scmp.lt.s32.totalorder %s28, 1
          %s488 = scalar_select %p487, %s28, 1
          %s489 = scalar_lea.vmem %s10, %s488
        $region60: #{tpu_custom_call.1} parent=19 // pred_fallthru
          _
        // Predicated region
        $region61: #{tpu_custom_call.1} parent=19 // pred_check
          %p490 = pneg %p338
        $region62: #{tpu_custom_call.1} parent=19 // pred_check_branch
          %492 = sbr.rel (%p490) target = $region64
        $region63: #{tpu_custom_call.1} parent=19 // pred_region
          %p493 = scmp.lt.s32.totalorder %s28, 1
          %s494 = scalar_select %p493, %s28, 1
          %s495 = smul.addr %s494, 16
          %s496 = smul.addr %s495, 8
          %s497 = scalar_lea.vmem %s11, %s496
        $region64: #{tpu_custom_call.1} parent=19 // pred_fallthru
          _
        // Predicated region
        $region65: #{tpu_custom_call.1} parent=19 // pred_check
          %p498 = pneg %p364
        $region66: #{tpu_custom_call.1} parent=19 // pred_check_branch
          %500 = sbr.rel (%p498) target = $region68
        $region67: #{tpu_custom_call.1} parent=19 // pred_region
          %p501 = scmp.lt.s32.totalorder %s28, 1
          %s502 = scalar_select %p501, %s28, 1
          %s503 = scalar_lea.vmem %s12, %s502
        $region68: #{tpu_custom_call.1} parent=19 // pred_fallthru
          _
      $region20: #{tpu_custom_call.1} parent=5 // pred_fallthru
        _
      %p504 = scmp.le.s32.totalorder 1, %s20
      %p505 = scmp.lt.s32.totalorder %s20, 3
      %p506 = pnand %p504, %p505
      %p507 = pneg %p506
      // Predicated region
      $region69: #{tpu_custom_call.1} parent=5 // pred_check
        _
      $region70: #{tpu_custom_call.1} parent=5 // pred_check_branch
        %509 = sbr.rel (%p506) target = $region72
      $region71: #{tpu_custom_call.1} parent=5 // pred_region
        %s510 = ssub.s32 %s20, 1
        %s511 = smul.u32 2, %s29
        %p512 = scmp.lt.s32.totalorder %s511, 1
        %s513 = scalar_select %p512, %s511, 1
        %s514 = smul.addr %s513, 8
        %s515 = scalar_lea.vmem %s0, %s514
        %p516 = pneg %p58
        %p517 = pneg %p55
        %p518 = scmp.lt.s32.totalorder %s30, 1
        %s519 = scalar_select %p518, %s30, 1
        %s520 = scalar_lea.vmem %s1, %s519
        %p521 = pneg %p84
        %p522 = pneg %p81
        %p523 = scmp.lt.s32.totalorder %s30, 1
        %s524 = scalar_select %p523, %s30, 1
        %s525 = scalar_lea.vmem %s2, %s524
        %p526 = pneg %p110
        %p527 = pneg %p107
        %p528 = scmp.lt.s32.totalorder %s30, 1
        %s529 = scalar_select %p528, %s30, 1
        %s530 = smul.addr %s529, 4
        %s531 = smul.addr %s530, 8
        %s532 = scalar_lea.vmem %s3, %s531
        %p533 = pneg %p136
        %p534 = pneg %p133
        %p535 = scmp.lt.s32.totalorder %s30, 1
        %s536 = scalar_select %p535, %s30, 1
        %s537 = scalar_lea.vmem %s4, %s536
        %p538 = pneg %p162
        %p539 = pneg %p159
        %p540 = scmp.lt.s32.totalorder %s30, 1
        %s541 = scalar_select %p540, %s30, 1
        %s542 = smul.addr %s541, 4
        %s543 = smul.addr %s542, 8
        %s544 = scalar_lea.vmem %s5, %s543
        %p545 = pneg %p188
        %p546 = pneg %p185
        %p547 = scmp.lt.s32.totalorder %s30, 1
        %s548 = scalar_select %p547, %s30, 1
        %s549 = scalar_lea.vmem %s6, %s548
        %p550 = pneg %p214
        %p551 = pneg %p211
        %p552 = scmp.lt.s32.totalorder %s30, 1
        %s553 = scalar_select %p552, %s30, 1
        %s554 = scalar_lea.vmem %s7, %s553
        %p555 = pneg %p240
        %p556 = pneg %p237
        %p557 = scmp.lt.s32.totalorder %s30, 1
        %s558 = scalar_select %p557, %s30, 1
        %s559 = scalar_lea.vmem %s8, %s558
        %p560 = pneg %p266
        %p561 = pneg %p263
        %p562 = scmp.lt.s32.totalorder %s30, 1
        %s563 = scalar_select %p562, %s30, 1
        %s564 = smul.addr %s563, 4
        %s565 = smul.addr %s564, 8
        %s566 = scalar_lea.vmem %s9, %s565
        %p567 = pneg %p292
        %p568 = pneg %p289
        %p569 = scmp.lt.s32.totalorder %s30, 1
        %s570 = scalar_select %p569, %s30, 1
        %s571 = scalar_lea.vmem %s10, %s570
        %p572 = pneg %p318
        %p573 = pneg %p315
        %p574 = scmp.lt.s32.totalorder %s30, 1
        %s575 = scalar_select %p574, %s30, 1
        %s576 = smul.addr %s575, 16
        %s577 = smul.addr %s576, 8
        %s578 = scalar_lea.vmem %s11, %s577
        %p579 = pneg %p344
        %p580 = pneg %p341
        %p581 = scmp.lt.s32.totalorder %s30, 1
        %s582 = scalar_select %p581, %s30, 1
        %s583 = scalar_lea.vmem %s12, %s582
        %p584 = pneg %p370
        %p585 = pneg %p367
        %p586 = pneg %p396
        %p587 = pneg %p393
        %s588 = smul.u32 2, %s29
        %p589 = scmp.lt.s32.totalorder %s588, 1
        %s590 = scalar_select %p589, %s588, 1
        %s591 = smul.addr %s590, 8
        %s592 = scalar_lea.vmem %s0, %s591
        %s593 = smul.u32 2, %s29
        %p594 = scmp.lt.s32.totalorder %s30, 1
        %s595 = scalar_select %p594, %s30, 1
        %s596 = scalar_lea.vmem %s1, %s595
        %p597 = scmp.lt.s32.totalorder %s30, 1
        %s598 = scalar_select %p597, %s30, 1
        %s599 = scalar_lea.vmem %s2, %s598
        %p600 = scmp.lt.s32.totalorder %s30, 1
        %s601 = scalar_select %p600, %s30, 1
        %s602 = smul.addr %s601, 4
        %s603 = smul.addr %s602, 8
        %s604 = scalar_lea.vmem %s3, %s603
        %p605 = scmp.lt.s32.totalorder %s30, 1
        %s606 = scalar_select %p605, %s30, 1
        %s607 = scalar_lea.vmem %s4, %s606
        %p608 = scmp.lt.s32.totalorder %s30, 1
        %s609 = scalar_select %p608, %s30, 1
        %s610 = smul.addr %s609, 4
        %s611 = smul.addr %s610, 8
        %s612 = scalar_lea.vmem %s5, %s611
        %p613 = scmp.lt.s32.totalorder %s30, 1
        %s614 = scalar_select %p613, %s30, 1
        %s615 = scalar_lea.vmem %s6, %s614
        %p616 = scmp.lt.s32.totalorder %s30, 1
        %s617 = scalar_select %p616, %s30, 1
        %s618 = scalar_lea.vmem %s7, %s617
        %p619 = scmp.lt.s32.totalorder %s30, 1
        %s620 = scalar_select %p619, %s30, 1
        %s621 = scalar_lea.vmem %s8, %s620
        %p622 = scmp.lt.s32.totalorder %s30, 1
        %s623 = scalar_select %p622, %s30, 1
        %s624 = smul.addr %s623, 4
        %s625 = smul.addr %s624, 8
        %s626 = scalar_lea.vmem %s9, %s625
        %p627 = scmp.lt.s32.totalorder %s30, 1
        %s628 = scalar_select %p627, %s30, 1
        %s629 = scalar_lea.vmem %s10, %s628
        %p630 = scmp.lt.s32.totalorder %s30, 1
        %s631 = scalar_select %p630, %s30, 1
        %s632 = smul.addr %s631, 16
        %s633 = smul.addr %s632, 8
        %s634 = scalar_lea.vmem %s11, %s633
        %p635 = scmp.lt.s32.totalorder %s30, 1
        %s636 = scalar_select %p635, %s30, 1
        %s637 = scalar_lea.vmem %s12, %s636
        %s638 = smul.u32 2, %s29
        %p639 = scmp.eq.s32.totalorder %s30, 0
        // Predicated region
        $region73: #{tpu_custom_call.1} parent=71 // pred_check
          %p640 = pneg %p639
        $region74: #{tpu_custom_call.1} parent=71 // pred_check_branch
          %642 = sbr.rel (%p640) target = $region76
        $region75: #{tpu_custom_call.1} parent=71 // pred_region
          %v643 = vld [vmem:[%s592] sm:$0xff]
          %v644 = vld [vmem:[%s592 + $0x8] sm:$0xff]
          %vm645 = vcmask 261120
          %646 = vst.msk [vmem:[#allocation2] sm:$0xff] %vm645, %v643
          %647 = vst.msk [vmem:[#allocation2 + $0x8] sm:$0xff] %vm645, %v644
        $region76: #{tpu_custom_call.1} parent=71 // pred_fallthru
          _
        %v648 = vld [vmem:[#allocation2] sm:$0xff]
        %v649 = vld [vmem:[#allocation2 + $0x8] sm:$0xff]
        %v650 = vld [vmem:[%s596] sm:$0x1]
        %v651 = vld [vmem:[%s599] sm:$0x1]
        %vm652 = vcmask 261120
        %v653 = vsel %vm652, %v648, 0.0
        %654 = vadd.xlane.f32.xlu0 %v653
        %v655 = vpop.xlane.xlu0 %654
        %v656 = vsel %vm652, %v649, 0.0
        %657 = vadd.xlane.f32.xlu0 %v656
        %v658 = vpop.xlane.xlu0 %657
        %v659 = vrcp.pop 32.0
        %v660 = vmul.f32 %v655, %v659
        %v661 = vmul.f32 %v658, %v659
        %v662 = vsub.f32 %v648, %v660
        %v663 = vsub.f32 %v649, %v661
        %v664 = vmul.f32 %v662, %v662
        %v665 = vmul.f32 %v663, %v663
        %v666 = vsel %vm652, %v664, 0.0
        %667 = vadd.xlane.f32.xlu0 %v666
        %v668 = vpop.xlane.xlu0 %667
        %v669 = vsel %vm652, %v665, 0.0
        %670 = vadd.xlane.f32.xlu0 %v669
        %v671 = vpop.xlane.xlu0 %670
        %v672 = vmul.f32 %v668, %v659
        %v673 = vmul.f32 %v671, %v659
        %v674 = vadd.f32 %v672, 1e-06
        %v675 = vadd.f32 %v673, 1e-06
        %v676 = vrsqrt.pop %v674
        %v677 = vrsqrt.pop %v675
        %v678 = vmul.f32 %v662, %v676
        %v679 = vmul.f32 %v663, %v677
        %v681 = vlaneseq
        %v682 = vshrl.u32 %v681, 7
        %v683 = vsub.s32 0, %v682
        %v684 = vrot.slane %v650, %v683
        %v686 = vmul.f32 %v678, %v684
        %v687 = vmul.f32 %v679, %v684
        %v689 = vlaneseq
        %v690 = vshrl.u32 %v689, 7
        %v691 = vsub.s32 0, %v690
        %v692 = vrot.slane %v651, %v691
        %v694 = vadd.f32 %v686, %v692
        %v695 = vadd.f32 %v687, %v692
        %v696 = vld [vmem:[%s604] sm:$0xff]
        %v697 = vld [vmem:[%s604 + $0x8] sm:$0xff]
        %v698 = vld [vmem:[%s604 + $0x10] sm:$0xff]
        %v699 = vld [vmem:[%s604 + $0x18] sm:$0xff]
        %v700 = vld [vmem:[%s607] sm:$0x1]
        %v702 = vlaneseq
        %v703 = vshrl.u32 %v702, 7
        %v704 = vsub.s32 0, %v703
        %v705 = vrot.slane %v700, %v704
        %v708 = vsel %vm652, %v694, 0
        %v711 = vsel %vm652, %v695, 0
        %713 = vmatprep.subr.mxu0 0.0
        %714 = vmatpush1.msra.mxu0 0.0
        %715 = vmatprep.subr.mxu0 0.0
        %716 = vmatpush1.msra.mxu0 0.0
        %717 = vmatprep.subr.mxu0 0.0
        %718 = vmatpush1.msra.mxu0 0.0
        %719 = vmatprep.subr.mxu0 0.0
        %720 = vmatpush1.msra.mxu0 0.0
        %721 = vmatprep.subr.mxu0 0.0
        %722 = vmatpush1.msra.mxu0 0.0
        %723 = vmatprep.subr.mxu0 0.0
        %724 = vmatpush1.msra.mxu0 0.0
        %725 = vmatprep.subr.mxu0 0.0
        %726 = vmatpush1.msra.mxu0 0.0
        %727 = vmatprep.subr.mxu0 0.0
        %728 = vmatpush1.msra.mxu0 0.0
        %729 = vmatprep.subr.mxu0 0.0
        %730 = vmatpush1.msra.mxu0 0.0
        %731 = vmatprep.subr.mxu0 0.0
        %732 = vmatpush1.msra.mxu0 0.0
        %733 = vmatprep.subr.mxu0 0.0
        %734 = vmatpush1.msra.mxu0 0.0
        %735 = vmatprep.subr.mxu0 0.0
        %736 = vmatpush1.msra.mxu0 0.0
        %737 = vmatprep.subr.mxu0 0.0
        %738 = vmatpush1.msra.mxu0 %v699
        %739 = vmatprep.subr.mxu0 0.0
        %740 = vmatpush1.msra.mxu0 %v698
        %741 = vmatprep.subr.mxu0 0.0
        %742 = vmatpush1.msra.mxu0 %v697
        %743 = vmatprep.subr.mxu0 0.0
        %744 = vmatpush1.msra.mxu0 %v696
        %745 = vmatprep.subr.mxu0 0.0
        %746 = vmatpush2.msra.mxu0 0.0
        %747 = vmatprep.subr.mxu0 0.0
        %748 = vmatpush2.msra.mxu0 0.0
        %749 = vmatprep.subr.mxu0 0.0
        %750 = vmatpush2.msra.mxu0 0.0
        %751 = vmatprep.subr.mxu0 0.0
        %752 = vmatpush2.msra.mxu0 0.0
        %753 = vmatprep.subr.mxu0 0.0
        %754 = vmatpush2.msra.mxu0 0.0
        %755 = vmatprep.subr.mxu0 0.0
        %756 = vmatpush2.msra.mxu0 0.0
        %757 = vmatprep.subr.mxu0 0.0
        %758 = vmatpush2.msra.mxu0 0.0
        %759 = vmatprep.subr.mxu0 0.0
        %760 = vmatpush2.msra.mxu0 0.0
        %761 = vmatprep.subr.mxu0 0.0
        %762 = vmatpush2.msra.mxu0 0.0
        %763 = vmatprep.subr.mxu0 0.0
        %764 = vmatpush2.msra.mxu0 0.0
        %765 = vmatprep.subr.mxu0 0.0
        %766 = vmatpush2.msra.mxu0 0.0
        %767 = vmatprep.subr.mxu0 0.0
        %768 = vmatpush2.msra.mxu0 0.0
        %769 = vmatprep.subr.mxu0 0.0
        %770 = vmatpush2.msra.mxu0 0.0
        %771 = vmatprep.subr.mxu0 0.0
        %772 = vmatpush2.msra.mxu0 0.0
        %773 = vmatprep.subr.mxu0 0.0
        %774 = vmatpush2.msra.mxu0 0.0
        %775 = vmatprep.subr.mxu0 0.0
        %776 = vmatpush2.msra.mxu0 0.0
        %777 = vmatprep.mubr.f32.mxu0 0.0
        %778 = vmatmul.mubr.f32.gmra.mxu0 %v708
        %v779 = vpop.f32.mrf.mxu0
        %v780 = vadd.f32 %v705, %v779
        %v781 = vpop.f32.mrf.mxu0
        %782 = vmatprep.mubr.f32.mxu0 0.0
        %783 = vmatmul.mubr.f32.gmra.mxu0 %v711
        %v784 = vpop.f32.mrf.mxu0
        %v785 = vadd.f32 %v705, %v784
        %v786 = vpop.f32.mrf.mxu0
        %787 = vdwg.mxu0
        %790 = vrot.lane.b32.xlu0 %v780, 120
        %v791 = vpop.permute.xlu0 %790
        %792 = vrot.lane.b32.xlu0 %v785, 120
        %v793 = vpop.permute.xlu0 %792
        %796 = vrot.lane.b32.xlu0 %v780, 112
        %v797 = vpop.permute.xlu0 %796
        %798 = vrot.lane.b32.xlu0 %v785, 112
        %v799 = vpop.permute.xlu0 %798
        %802 = vrot.lane.b32.xlu0 %v780, 104
        %v803 = vpop.permute.xlu0 %802
        %804 = vrot.lane.b32.xlu0 %v785, 104
        %v805 = vpop.permute.xlu0 %804
        %v808 = vcombine.low %v780, %v797
        %v809 = vcombine.high %v780, %v797
        %v811 = vunpack.c.l.s4 1983009808
        %v812 = vunpack.c.0.s8 %v811
        %v813 = vlaneseq
        %v814 = vshrl.u32 %v813, 7
        %v815 = vsub.s32 %v812, %v814
        %v816 = vrot.slane %v808, %v815
        %v818 = vunpack.c.l.s4 1983009808
        %v819 = vunpack.c.0.s8 %v818
        %v820 = vlaneseq
        %v821 = vshrl.u32 %v820, 7
        %v822 = vsub.s32 %v819, %v821
        %v823 = vrot.slane %v809, %v822
        %v824 = vcombine.low %v791, %v803
        %v825 = vcombine.high %v791, %v803
        %v827 = vunpack.c.l.s4 1983009808
        %v828 = vunpack.c.0.s8 %v827
        %v829 = vlaneseq
        %v830 = vshrl.u32 %v829, 7
        %v831 = vsub.s32 %v828, %v830
        %v832 = vrot.slane %v824, %v831
        %v834 = vunpack.c.l.s4 1983009808
        %v835 = vunpack.c.0.s8 %v834
        %v836 = vlaneseq
        %v837 = vshrl.u32 %v836, 7
        %v838 = vsub.s32 %v835, %v837
        %v839 = vrot.slane %v825, %v838
        %v840 = vcombine.low %v816, %v832
        %v841 = vcombine.high %v816, %v832
        %v843 = vunpack.c.l.s4 1934713408
        %v844 = vunpack.c.0.s8 %v843
        %v845 = vlaneseq
        %v846 = vshrl.u32 %v845, 7
        %v847 = vsub.s32 %v844, %v846
        %v848 = vrot.slane %v840, %v847
        %v850 = vunpack.c.l.s4 1934713408
        %v851 = vunpack.c.0.s8 %v850
        %v852 = vlaneseq
        %v853 = vshrl.u32 %v852, 7
        %v854 = vsub.s32 %v851, %v853
        %v855 = vrot.slane %v841, %v854
        %v856 = vcombine.low %v823, %v839
        %v857 = vcombine.high %v823, %v839
        %v859 = vunpack.c.l.s4 1934713408
        %v860 = vunpack.c.0.s8 %v859
        %v861 = vlaneseq
        %v862 = vshrl.u32 %v861, 7
        %v863 = vsub.s32 %v860, %v862
        %v864 = vrot.slane %v856, %v863
        %v866 = vunpack.c.l.s4 1934713408
        %v867 = vunpack.c.0.s8 %v866
        %v868 = vlaneseq
        %v869 = vshrl.u32 %v868, 7
        %v870 = vsub.s32 %v867, %v869
        %v871 = vrot.slane %v857, %v870
        %v872 = vcombine.high %v848, 0.0
        %v873 = vcombine.high %v855, 0.0
        %v874 = vcombine.high %v864, 0.0
        %v875 = vcombine.high %v871, 0.0
        %v876 = vcombine.low %v785, %v799
        %v877 = vcombine.high %v785, %v799
        %v879 = vunpack.c.l.s4 1983009808
        %v880 = vunpack.c.0.s8 %v879
        %v881 = vlaneseq
        %v882 = vshrl.u32 %v881, 7
        %v883 = vsub.s32 %v880, %v882
        %v884 = vrot.slane %v876, %v883
        %v886 = vunpack.c.l.s4 1983009808
        %v887 = vunpack.c.0.s8 %v886
        %v888 = vlaneseq
        %v889 = vshrl.u32 %v888, 7
        %v890 = vsub.s32 %v887, %v889
        %v891 = vrot.slane %v877, %v890
        %v892 = vcombine.low %v793, %v805
        %v893 = vcombine.high %v793, %v805
        %v895 = vunpack.c.l.s4 1983009808
        %v896 = vunpack.c.0.s8 %v895
        %v897 = vlaneseq
        %v898 = vshrl.u32 %v897, 7
        %v899 = vsub.s32 %v896, %v898
        %v900 = vrot.slane %v892, %v899
        %v902 = vunpack.c.l.s4 1983009808
        %v903 = vunpack.c.0.s8 %v902
        %v904 = vlaneseq
        %v905 = vshrl.u32 %v904, 7
        %v906 = vsub.s32 %v903, %v905
        %v907 = vrot.slane %v893, %v906
        %v908 = vcombine.low %v884, %v900
        %v909 = vcombine.high %v884, %v900
        %v911 = vunpack.c.l.s4 1934713408
        %v912 = vunpack.c.0.s8 %v911
        %v913 = vlaneseq
        %v914 = vshrl.u32 %v913, 7
        %v915 = vsub.s32 %v912, %v914
        %v916 = vrot.slane %v908, %v915
        %v918 = vunpack.c.l.s4 1934713408
        %v919 = vunpack.c.0.s8 %v918
        %v920 = vlaneseq
        %v921 = vshrl.u32 %v920, 7
        %v922 = vsub.s32 %v919, %v921
        %v923 = vrot.slane %v909, %v922
        %v924 = vcombine.low %v891, %v907
        %v925 = vcombine.high %v891, %v907
        %v927 = vunpack.c.l.s4 1934713408
        %v928 = vunpack.c.0.s8 %v927
        %v929 = vlaneseq
        %v930 = vshrl.u32 %v929, 7
        %v931 = vsub.s32 %v928, %v930
        %v932 = vrot.slane %v924, %v931
        %v934 = vunpack.c.l.s4 1934713408
        %v935 = vunpack.c.0.s8 %v934
        %v936 = vlaneseq
        %v937 = vshrl.u32 %v936, 7
        %v938 = vsub.s32 %v935, %v937
        %v939 = vrot.slane %v925, %v938
        %v940 = vcombine.high %v916, 0.0
        %v941 = vcombine.high %v923, 0.0
        %v942 = vcombine.high %v932, 0.0
        %v943 = vcombine.high %v939, 0.0
        %v944 = vcombine.low %v848, %v855
        %v946 = vunpack.c.l.s4 1983009808
        %v947 = vunpack.c.0.s8 %v946
        %v948 = vlaneseq
        %v949 = vshrl.u32 %v948, 7
        %v950 = vsub.s32 %v947, %v949
        %v951 = vrot.slane %v944, %v950
        %v952 = vcombine.low %v872, %v873
        %v954 = vunpack.c.l.s4 1983009808
        %v955 = vunpack.c.0.s8 %v954
        %v956 = vlaneseq
        %v957 = vshrl.u32 %v956, 7
        %v958 = vsub.s32 %v955, %v957
        %v959 = vrot.slane %v952, %v958
        %v960 = vcombine.low %v864, %v871
        %v962 = vunpack.c.l.s4 1983009808
        %v963 = vunpack.c.0.s8 %v962
        %v964 = vlaneseq
        %v965 = vshrl.u32 %v964, 7
        %v966 = vsub.s32 %v963, %v965
        %v967 = vrot.slane %v960, %v966
        %v968 = vcombine.low %v874, %v875
        %v970 = vunpack.c.l.s4 1983009808
        %v971 = vunpack.c.0.s8 %v970
        %v972 = vlaneseq
        %v973 = vshrl.u32 %v972, 7
        %v974 = vsub.s32 %v971, %v973
        %v975 = vrot.slane %v968, %v974
        %v976 = vcombine.low %v951, %v959
        %v977 = vcombine.high %v951, %v959
        %v979 = vunpack.c.l.s4 1934713408
        %v980 = vunpack.c.0.s8 %v979
        %v981 = vlaneseq
        %v982 = vshrl.u32 %v981, 7
        %v983 = vsub.s32 %v980, %v982
        %v984 = vrot.slane %v976, %v983
        %v986 = vunpack.c.l.s4 1934713408
        %v987 = vunpack.c.0.s8 %v986
        %v988 = vlaneseq
        %v989 = vshrl.u32 %v988, 7
        %v990 = vsub.s32 %v987, %v989
        %v991 = vrot.slane %v977, %v990
        %v992 = vcombine.low %v967, %v975
        %v993 = vcombine.high %v967, %v975
        %v995 = vunpack.c.l.s4 1934713408
        %v996 = vunpack.c.0.s8 %v995
        %v997 = vlaneseq
        %v998 = vshrl.u32 %v997, 7
        %v999 = vsub.s32 %v996, %v998
        %v1000 = vrot.slane %v992, %v999
        %v1002 = vunpack.c.l.s4 1934713408
        %v1003 = vunpack.c.0.s8 %v1002
        %v1004 = vlaneseq
        %v1005 = vshrl.u32 %v1004, 7
        %v1006 = vsub.s32 %v1003, %v1005
        %v1007 = vrot.slane %v993, %v1006
        %v1008 = vcombine.low %v984, %v1000
        %v1009 = vcombine.high %v984, %v1000
        %v1010 = vcombine.low %v991, %v1007
        %v1011 = vcombine.high %v991, %v1007
        %v1012 = vcombine.low %v916, %v923
        %v1014 = vunpack.c.l.s4 1983009808
        %v1015 = vunpack.c.0.s8 %v1014
        %v1016 = vlaneseq
        %v1017 = vshrl.u32 %v1016, 7
        %v1018 = vsub.s32 %v1015, %v1017
        %v1019 = vrot.slane %v1012, %v1018
        %v1020 = vcombine.low %v940, %v941
        %v1022 = vunpack.c.l.s4 1983009808
        %v1023 = vunpack.c.0.s8 %v1022
        %v1024 = vlaneseq
        %v1025 = vshrl.u32 %v1024, 7
        %v1026 = vsub.s32 %v1023, %v1025
        %v1027 = vrot.slane %v1020, %v1026
        %v1028 = vcombine.low %v932, %v939
        %v1030 = vunpack.c.l.s4 1983009808
        %v1031 = vunpack.c.0.s8 %v1030
        %v1032 = vlaneseq
        %v1033 = vshrl.u32 %v1032, 7
        %v1034 = vsub.s32 %v1031, %v1033
        %v1035 = vrot.slane %v1028, %v1034
        %v1036 = vcombine.low %v942, %v943
        %v1038 = vunpack.c.l.s4 1983009808
        %v1039 = vunpack.c.0.s8 %v1038
        %v1040 = vlaneseq
        %v1041 = vshrl.u32 %v1040, 7
        %v1042 = vsub.s32 %v1039, %v1041
        %v1043 = vrot.slane %v1036, %v1042
        %v1044 = vcombine.low %v1019, %v1027
        %v1045 = vcombine.high %v1019, %v1027
        %v1047 = vunpack.c.l.s4 1934713408
        %v1048 = vunpack.c.0.s8 %v1047
        %v1049 = vlaneseq
        %v1050 = vshrl.u32 %v1049, 7
        %v1051 = vsub.s32 %v1048, %v1050
        %v1052 = vrot.slane %v1044, %v1051
        %v1054 = vunpack.c.l.s4 1934713408
        %v1055 = vunpack.c.0.s8 %v1054
        %v1056 = vlaneseq
        %v1057 = vshrl.u32 %v1056, 7
        %v1058 = vsub.s32 %v1055, %v1057
        %v1059 = vrot.slane %v1045, %v1058
        %v1060 = vcombine.low %v1035, %v1043
        %v1061 = vcombine.high %v1035, %v1043
        %v1063 = vunpack.c.l.s4 1934713408
        %v1064 = vunpack.c.0.s8 %v1063
        %v1065 = vlaneseq
        %v1066 = vshrl.u32 %v1065, 7
        %v1067 = vsub.s32 %v1064, %v1066
        %v1068 = vrot.slane %v1060, %v1067
        %v1070 = vunpack.c.l.s4 1934713408
        %v1071 = vunpack.c.0.s8 %v1070
        %v1072 = vlaneseq
        %v1073 = vshrl.u32 %v1072, 7
        %v1074 = vsub.s32 %v1071, %v1073
        %v1075 = vrot.slane %v1061, %v1074
        %v1076 = vcombine.low %v1052, %v1068
        %v1077 = vcombine.high %v1052, %v1068
        %v1078 = vcombine.low %v1059, %v1075
        %v1079 = vcombine.high %v1059, %v1075
        %1080 = vrot.lane.b32.xlu0 %v780, 96
        %v1081 = vpop.permute.xlu0 %1080
        %1082 = vrot.lane.b32.xlu0 %v785, 96
        %v1083 = vpop.permute.xlu0 %1082
        %1084 = vrot.lane.b32.xlu0 %v791, 96
        %v1085 = vpop.permute.xlu0 %1084
        %1086 = vrot.lane.b32.xlu0 %v793, 96
        %v1087 = vpop.permute.xlu0 %1086
        %1088 = vrot.lane.b32.xlu0 %v797, 96
        %v1089 = vpop.permute.xlu0 %1088
        %1090 = vrot.lane.b32.xlu0 %v799, 96
        %v1091 = vpop.permute.xlu0 %1090
        %1092 = vrot.lane.b32.xlu0 %v803, 96
        %v1093 = vpop.permute.xlu0 %1092
        %1094 = vrot.lane.b32.xlu0 %v805, 96
        %v1095 = vpop.permute.xlu0 %1094
        %v1104 = vcombine.low %v1081, %v1089
        %v1105 = vcombine.high %v1081, %v1089
        %v1107 = vunpack.c.l.s4 1983009808
        %v1108 = vunpack.c.0.s8 %v1107
        %v1109 = vlaneseq
        %v1110 = vshrl.u32 %v1109, 7
        %v1111 = vsub.s32 %v1108, %v1110
        %v1112 = vrot.slane %v1104, %v1111
        %v1114 = vunpack.c.l.s4 1983009808
        %v1115 = vunpack.c.0.s8 %v1114
        %v1116 = vlaneseq
        %v1117 = vshrl.u32 %v1116, 7
        %v1118 = vsub.s32 %v1115, %v1117
        %v1119 = vrot.slane %v1105, %v1118
        %v1120 = vcombine.low %v1085, %v1093
        %v1121 = vcombine.high %v1085, %v1093
        %v1123 = vunpack.c.l.s4 1983009808
        %v1124 = vunpack.c.0.s8 %v1123
        %v1125 = vlaneseq
        %v1126 = vshrl.u32 %v1125, 7
        %v1127 = vsub.s32 %v1124, %v1126
        %v1128 = vrot.slane %v1120, %v1127
        %v1130 = vunpack.c.l.s4 1983009808
        %v1131 = vunpack.c.0.s8 %v1130
        %v1132 = vlaneseq
        %v1133 = vshrl.u32 %v1132, 7
        %v1134 = vsub.s32 %v1131, %v1133
        %v1135 = vrot.slane %v1121, %v1134
        %v1136 = vcombine.low %v1112, %v1128
        %v1137 = vcombine.high %v1112, %v1128
        %v1139 = vunpack.c.l.s4 1934713408
        %v1140 = vunpack.c.0.s8 %v1139
        %v1141 = vlaneseq
        %v1142 = vshrl.u32 %v1141, 7
        %v1143 = vsub.s32 %v1140, %v1142
        %v1144 = vrot.slane %v1136, %v1143
        %v1146 = vunpack.c.l.s4 1934713408
        %v1147 = vunpack.c.0.s8 %v1146
        %v1148 = vlaneseq
        %v1149 = vshrl.u32 %v1148, 7
        %v1150 = vsub.s32 %v1147, %v1149
        %v1151 = vrot.slane %v1137, %v1150
        %v1152 = vcombine.low %v1119, %v1135
        %v1153 = vcombine.high %v1119, %v1135
        %v1155 = vunpack.c.l.s4 1934713408
        %v1156 = vunpack.c.0.s8 %v1155
        %v1157 = vlaneseq
        %v1158 = vshrl.u32 %v1157, 7
        %v1159 = vsub.s32 %v1156, %v1158
        %v1160 = vrot.slane %v1152, %v1159
        %v1162 = vunpack.c.l.s4 1934713408
        %v1163 = vunpack.c.0.s8 %v1162
        %v1164 = vlaneseq
        %v1165 = vshrl.u32 %v1164, 7
        %v1166 = vsub.s32 %v1163, %v1165
        %v1167 = vrot.slane %v1153, %v1166
        %v1168 = vcombine.high %v1144, 0.0
        %v1169 = vcombine.high %v1151, 0.0
        %v1170 = vcombine.high %v1160, 0.0
        %v1171 = vcombine.high %v1167, 0.0
        %v1172 = vcombine.low %v1083, %v1091
        %v1173 = vcombine.high %v1083, %v1091
        %v1175 = vunpack.c.l.s4 1983009808
        %v1176 = vunpack.c.0.s8 %v1175
        %v1177 = vlaneseq
        %v1178 = vshrl.u32 %v1177, 7
        %v1179 = vsub.s32 %v1176, %v1178
        %v1180 = vrot.slane %v1172, %v1179
        %v1182 = vunpack.c.l.s4 1983009808
        %v1183 = vunpack.c.0.s8 %v1182
        %v1184 = vlaneseq
        %v1185 = vshrl.u32 %v1184, 7
        %v1186 = vsub.s32 %v1183, %v1185
        %v1187 = vrot.slane %v1173, %v1186
        %v1188 = vcombine.low %v1087, %v1095
        %v1189 = vcombine.high %v1087, %v1095
        %v1191 = vunpack.c.l.s4 1983009808
        %v1192 = vunpack.c.0.s8 %v1191
        %v1193 = vlaneseq
        %v1194 = vshrl.u32 %v1193, 7
        %v1195 = vsub.s32 %v1192, %v1194
        %v1196 = vrot.slane %v1188, %v1195
        %v1198 = vunpack.c.l.s4 1983009808
        %v1199 = vunpack.c.0.s8 %v1198
        %v1200 = vlaneseq
        %v1201 = vshrl.u32 %v1200, 7
        %v1202 = vsub.s32 %v1199, %v1201
        %v1203 = vrot.slane %v1189, %v1202
        %v1204 = vcombine.low %v1180, %v1196
        %v1205 = vcombine.high %v1180, %v1196
        %v1207 = vunpack.c.l.s4 1934713408
        %v1208 = vunpack.c.0.s8 %v1207
        %v1209 = vlaneseq
        %v1210 = vshrl.u32 %v1209, 7
        %v1211 = vsub.s32 %v1208, %v1210
        %v1212 = vrot.slane %v1204, %v1211
        %v1214 = vunpack.c.l.s4 1934713408
        %v1215 = vunpack.c.0.s8 %v1214
        %v1216 = vlaneseq
        %v1217 = vshrl.u32 %v1216, 7
        %v1218 = vsub.s32 %v1215, %v1217
        %v1219 = vrot.slane %v1205, %v1218
        %v1220 = vcombine.low %v1187, %v1203
        %v1221 = vcombine.high %v1187, %v1203
        %v1223 = vunpack.c.l.s4 1934713408
        %v1224 = vunpack.c.0.s8 %v1223
        %v1225 = vlaneseq
        %v1226 = vshrl.u32 %v1225, 7
        %v1227 = vsub.s32 %v1224, %v1226
        %v1228 = vrot.slane %v1220, %v1227
        %v1230 = vunpack.c.l.s4 1934713408
        %v1231 = vunpack.c.0.s8 %v1230
        %v1232 = vlaneseq
        %v1233 = vshrl.u32 %v1232, 7
        %v1234 = vsub.s32 %v1231, %v1233
        %v1235 = vrot.slane %v1221, %v1234
        %v1236 = vcombine.high %v1212, 0.0
        %v1237 = vcombine.high %v1219, 0.0
        %v1238 = vcombine.high %v1228, 0.0
        %v1239 = vcombine.high %v1235, 0.0
        %v1240 = vcombine.low %v1144, %v1151
        %v1242 = vunpack.c.l.s4 1983009808
        %v1243 = vunpack.c.0.s8 %v1242
        %v1244 = vlaneseq
        %v1245 = vshrl.u32 %v1244, 7
        %v1246 = vsub.s32 %v1243, %v1245
        %v1247 = vrot.slane %v1240, %v1246
        %v1248 = vcombine.low %v1168, %v1169
        %v1250 = vunpack.c.l.s4 1983009808
        %v1251 = vunpack.c.0.s8 %v1250
        %v1252 = vlaneseq
        %v1253 = vshrl.u32 %v1252, 7
        %v1254 = vsub.s32 %v1251, %v1253
        %v1255 = vrot.slane %v1248, %v1254
        %v1256 = vcombine.low %v1160, %v1167
        %v1258 = vunpack.c.l.s4 1983009808
        %v1259 = vunpack.c.0.s8 %v1258
        %v1260 = vlaneseq
        %v1261 = vshrl.u32 %v1260, 7
        %v1262 = vsub.s32 %v1259, %v1261
        %v1263 = vrot.slane %v1256, %v1262
        %v1264 = vcombine.low %v1170, %v1171
        %v1266 = vunpack.c.l.s4 1983009808
        %v1267 = vunpack.c.0.s8 %v1266
        %v1268 = vlaneseq
        %v1269 = vshrl.u32 %v1268, 7
        %v1270 = vsub.s32 %v1267, %v1269
        %v1271 = vrot.slane %v1264, %v1270
        %v1272 = vcombine.low %v1247, %v1255
        %v1273 = vcombine.high %v1247, %v1255
        %v1275 = vunpack.c.l.s4 1934713408
        %v1276 = vunpack.c.0.s8 %v1275
        %v1277 = vlaneseq
        %v1278 = vshrl.u32 %v1277, 7
        %v1279 = vsub.s32 %v1276, %v1278
        %v1280 = vrot.slane %v1272, %v1279
        %v1282 = vunpack.c.l.s4 1934713408
        %v1283 = vunpack.c.0.s8 %v1282
        %v1284 = vlaneseq
        %v1285 = vshrl.u32 %v1284, 7
        %v1286 = vsub.s32 %v1283, %v1285
        %v1287 = vrot.slane %v1273, %v1286
        %v1288 = vcombine.low %v1263, %v1271
        %v1289 = vcombine.high %v1263, %v1271
        %v1291 = vunpack.c.l.s4 1934713408
        %v1292 = vunpack.c.0.s8 %v1291
        %v1293 = vlaneseq
        %v1294 = vshrl.u32 %v1293, 7
        %v1295 = vsub.s32 %v1292, %v1294
        %v1296 = vrot.slane %v1288, %v1295
        %v1298 = vunpack.c.l.s4 1934713408
        %v1299 = vunpack.c.0.s8 %v1298
        %v1300 = vlaneseq
        %v1301 = vshrl.u32 %v1300, 7
        %v1302 = vsub.s32 %v1299, %v1301
        %v1303 = vrot.slane %v1289, %v1302
        %v1304 = vcombine.low %v1280, %v1296
        %v1305 = vcombine.high %v1280, %v1296
        %v1306 = vcombine.low %v1287, %v1303
        %v1307 = vcombine.high %v1287, %v1303
        %v1308 = vcombine.low %v1212, %v1219
        %v1310 = vunpack.c.l.s4 1983009808
        %v1311 = vunpack.c.0.s8 %v1310
        %v1312 = vlaneseq
        %v1313 = vshrl.u32 %v1312, 7
        %v1314 = vsub.s32 %v1311, %v1313
        %v1315 = vrot.slane %v1308, %v1314
        %v1316 = vcombine.low %v1236, %v1237
        %v1318 = vunpack.c.l.s4 1983009808
        %v1319 = vunpack.c.0.s8 %v1318
        %v1320 = vlaneseq
        %v1321 = vshrl.u32 %v1320, 7
        %v1322 = vsub.s32 %v1319, %v1321
        %v1323 = vrot.slane %v1316, %v1322
        %v1324 = vcombine.low %v1228, %v1235
        %v1326 = vunpack.c.l.s4 1983009808
        %v1327 = vunpack.c.0.s8 %v1326
        %v1328 = vlaneseq
        %v1329 = vshrl.u32 %v1328, 7
        %v1330 = vsub.s32 %v1327, %v1329
        %v1331 = vrot.slane %v1324, %v1330
        %v1332 = vcombine.low %v1238, %v1239
        %v1334 = vunpack.c.l.s4 1983009808
        %v1335 = vunpack.c.0.s8 %v1334
        %v1336 = vlaneseq
        %v1337 = vshrl.u32 %v1336, 7
        %v1338 = vsub.s32 %v1335, %v1337
        %v1339 = vrot.slane %v1332, %v1338
        %v1340 = vcombine.low %v1315, %v1323
        %v1341 = vcombine.high %v1315, %v1323
        %v1343 = vunpack.c.l.s4 1934713408
        %v1344 = vunpack.c.0.s8 %v1343
        %v1345 = vlaneseq
        %v1346 = vshrl.u32 %v1345, 7
        %v1347 = vsub.s32 %v1344, %v1346
        %v1348 = vrot.slane %v1340, %v1347
        %v1350 = vunpack.c.l.s4 1934713408
        %v1351 = vunpack.c.0.s8 %v1350
        %v1352 = vlaneseq
        %v1353 = vshrl.u32 %v1352, 7
        %v1354 = vsub.s32 %v1351, %v1353
        %v1355 = vrot.slane %v1341, %v1354
        %v1356 = vcombine.low %v1331, %v1339
        %v1357 = vcombine.high %v1331, %v1339
        %v1359 = vunpack.c.l.s4 1934713408
        %v1360 = vunpack.c.0.s8 %v1359
        %v1361 = vlaneseq
        %v1362 = vshrl.u32 %v1361, 7
        %v1363 = vsub.s32 %v1360, %v1362
        %v1364 = vrot.slane %v1356, %v1363
        %v1366 = vunpack.c.l.s4 1934713408
        %v1367 = vunpack.c.0.s8 %v1366
        %v1368 = vlaneseq
        %v1369 = vshrl.u32 %v1368, 7
        %v1370 = vsub.s32 %v1367, %v1369
        %v1371 = vrot.slane %v1357, %v1370
        %v1372 = vcombine.low %v1348, %v1364
        %v1373 = vcombine.high %v1348, %v1364
        %v1374 = vcombine.low %v1355, %v1371
        %v1375 = vcombine.high %v1355, %v1371
        %1376 = vrot.lane.b32.xlu0 %v780, 64
        %v1377 = vpop.permute.xlu0 %1376
        %1378 = vrot.lane.b32.xlu0 %v785, 64
        %v1379 = vpop.permute.xlu0 %1378
        %1380 = vrot.lane.b32.xlu0 %v791, 64
        %v1381 = vpop.permute.xlu0 %1380
        %1382 = vrot.lane.b32.xlu0 %v793, 64
        %v1383 = vpop.permute.xlu0 %1382
        %1384 = vrot.lane.b32.xlu0 %v797, 64
        %v1385 = vpop.permute.xlu0 %1384
        %1386 = vrot.lane.b32.xlu0 %v799, 64
        %v1387 = vpop.permute.xlu0 %1386
        %1388 = vrot.lane.b32.xlu0 %v803, 64
        %v1389 = vpop.permute.xlu0 %1388
        %1390 = vrot.lane.b32.xlu0 %v805, 64
        %v1391 = vpop.permute.xlu0 %1390
        %v1400 = vcombine.low %v1377, %v1385
        %v1401 = vcombine.high %v1377, %v1385
        %v1403 = vunpack.c.l.s4 1983009808
        %v1404 = vunpack.c.0.s8 %v1403
        %v1405 = vlaneseq
        %v1406 = vshrl.u32 %v1405, 7
        %v1407 = vsub.s32 %v1404, %v1406
        %v1408 = vrot.slane %v1400, %v1407
        %v1410 = vunpack.c.l.s4 1983009808
        %v1411 = vunpack.c.0.s8 %v1410
        %v1412 = vlaneseq
        %v1413 = vshrl.u32 %v1412, 7
        %v1414 = vsub.s32 %v1411, %v1413
        %v1415 = vrot.slane %v1401, %v1414
        %v1416 = vcombine.low %v1381, %v1389
        %v1417 = vcombine.high %v1381, %v1389
        %v1419 = vunpack.c.l.s4 1983009808
        %v1420 = vunpack.c.0.s8 %v1419
        %v1421 = vlaneseq
        %v1422 = vshrl.u32 %v1421, 7
        %v1423 = vsub.s32 %v1420, %v1422
        %v1424 = vrot.slane %v1416, %v1423
        %v1426 = vunpack.c.l.s4 1983009808
        %v1427 = vunpack.c.0.s8 %v1426
        %v1428 = vlaneseq
        %v1429 = vshrl.u32 %v1428, 7
        %v1430 = vsub.s32 %v1427, %v1429
        %v1431 = vrot.slane %v1417, %v1430
        %v1432 = vcombine.low %v1408, %v1424
        %v1433 = vcombine.high %v1408, %v1424
        %v1435 = vunpack.c.l.s4 1934713408
        %v1436 = vunpack.c.0.s8 %v1435
        %v1437 = vlaneseq
        %v1438 = vshrl.u32 %v1437, 7
        %v1439 = vsub.s32 %v1436, %v1438
        %v1440 = vrot.slane %v1432, %v1439
        %v1442 = vunpack.c.l.s4 1934713408
        %v1443 = vunpack.c.0.s8 %v1442
        %v1444 = vlaneseq
        %v1445 = vshrl.u32 %v1444, 7
        %v1446 = vsub.s32 %v1443, %v1445
        %v1447 = vrot.slane %v1433, %v1446
        %v1448 = vcombine.low %v1415, %v1431
        %v1449 = vcombine.high %v1415, %v1431
        %v1451 = vunpack.c.l.s4 1934713408
        %v1452 = vunpack.c.0.s8 %v1451
        %v1453 = vlaneseq
        %v1454 = vshrl.u32 %v1453, 7
        %v1455 = vsub.s32 %v1452, %v1454
        %v1456 = vrot.slane %v1448, %v1455
        %v1458 = vunpack.c.l.s4 1934713408
        %v1459 = vunpack.c.0.s8 %v1458
        %v1460 = vlaneseq
        %v1461 = vshrl.u32 %v1460, 7
        %v1462 = vsub.s32 %v1459, %v1461
        %v1463 = vrot.slane %v1449, %v1462
        %v1464 = vcombine.high %v1440, 0.0
        %v1465 = vcombine.high %v1447, 0.0
        %v1466 = vcombine.high %v1456, 0.0
        %v1467 = vcombine.high %v1463, 0.0
        %v1468 = vcombine.low %v1379, %v1387
        %v1469 = vcombine.high %v1379, %v1387
        %v1471 = vunpack.c.l.s4 1983009808
        %v1472 = vunpack.c.0.s8 %v1471
        %v1473 = vlaneseq
        %v1474 = vshrl.u32 %v1473, 7
        %v1475 = vsub.s32 %v1472, %v1474
        %v1476 = vrot.slane %v1468, %v1475
        %v1478 = vunpack.c.l.s4 1983009808
        %v1479 = vunpack.c.0.s8 %v1478
        %v1480 = vlaneseq
        %v1481 = vshrl.u32 %v1480, 7
        %v1482 = vsub.s32 %v1479, %v1481
        %v1483 = vrot.slane %v1469, %v1482
        %v1484 = vcombine.low %v1383, %v1391
        %v1485 = vcombine.high %v1383, %v1391
        %v1487 = vunpack.c.l.s4 1983009808
        %v1488 = vunpack.c.0.s8 %v1487
        %v1489 = vlaneseq
        %v1490 = vshrl.u32 %v1489, 7
        %v1491 = vsub.s32 %v1488, %v1490
        %v1492 = vrot.slane %v1484, %v1491
        %v1494 = vunpack.c.l.s4 1983009808
        %v1495 = vunpack.c.0.s8 %v1494
        %v1496 = vlaneseq
        %v1497 = vshrl.u32 %v1496, 7
        %v1498 = vsub.s32 %v1495, %v1497
        %v1499 = vrot.slane %v1485, %v1498
        %v1500 = vcombine.low %v1476, %v1492
        %v1501 = vcombine.high %v1476, %v1492
        %v1503 = vunpack.c.l.s4 1934713408
        %v1504 = vunpack.c.0.s8 %v1503
        %v1505 = vlaneseq
        %v1506 = vshrl.u32 %v1505, 7
        %v1507 = vsub.s32 %v1504, %v1506
        %v1508 = vrot.slane %v1500, %v1507
        %v1510 = vunpack.c.l.s4 1934713408
        %v1511 = vunpack.c.0.s8 %v1510
        %v1512 = vlaneseq
        %v1513 = vshrl.u32 %v1512, 7
        %v1514 = vsub.s32 %v1511, %v1513
        %v1515 = vrot.slane %v1501, %v1514
        %v1516 = vcombine.low %v1483, %v1499
        %v1517 = vcombine.high %v1483, %v1499
        %v1519 = vunpack.c.l.s4 1934713408
        %v1520 = vunpack.c.0.s8 %v1519
        %v1521 = vlaneseq
        %v1522 = vshrl.u32 %v1521, 7
        %v1523 = vsub.s32 %v1520, %v1522
        %v1524 = vrot.slane %v1516, %v1523
        %v1526 = vunpack.c.l.s4 1934713408
        %v1527 = vunpack.c.0.s8 %v1526
        %v1528 = vlaneseq
        %v1529 = vshrl.u32 %v1528, 7
        %v1530 = vsub.s32 %v1527, %v1529
        %v1531 = vrot.slane %v1517, %v1530
        %v1532 = vcombine.high %v1508, 0.0
        %v1533 = vcombine.high %v1515, 0.0
        %v1534 = vcombine.high %v1524, 0.0
        %v1535 = vcombine.high %v1531, 0.0
        %v1536 = vcombine.low %v1440, %v1447
        %v1538 = vunpack.c.l.s4 1983009808
        %v1539 = vunpack.c.0.s8 %v1538
        %v1540 = vlaneseq
        %v1541 = vshrl.u32 %v1540, 7
        %v1542 = vsub.s32 %v1539, %v1541
        %v1543 = vrot.slane %v1536, %v1542
        %v1544 = vcombine.low %v1464, %v1465
        %v1546 = vunpack.c.l.s4 1983009808
        %v1547 = vunpack.c.0.s8 %v1546
        %v1548 = vlaneseq
        %v1549 = vshrl.u32 %v1548, 7
        %v1550 = vsub.s32 %v1547, %v1549
        %v1551 = vrot.slane %v1544, %v1550
        %v1552 = vcombine.low %v1456, %v1463
        %v1554 = vunpack.c.l.s4 1983009808
        %v1555 = vunpack.c.0.s8 %v1554
        %v1556 = vlaneseq
        %v1557 = vshrl.u32 %v1556, 7
        %v1558 = vsub.s32 %v1555, %v1557
        %v1559 = vrot.slane %v1552, %v1558
        %v1560 = vcombine.low %v1466, %v1467
        %v1562 = vunpack.c.l.s4 1983009808
        %v1563 = vunpack.c.0.s8 %v1562
        %v1564 = vlaneseq
        %v1565 = vshrl.u32 %v1564, 7
        %v1566 = vsub.s32 %v1563, %v1565
        %v1567 = vrot.slane %v1560, %v1566
        %v1568 = vcombine.low %v1543, %v1551
        %v1569 = vcombine.high %v1543, %v1551
        %v1571 = vunpack.c.l.s4 1934713408
        %v1572 = vunpack.c.0.s8 %v1571
        %v1573 = vlaneseq
        %v1574 = vshrl.u32 %v1573, 7
        %v1575 = vsub.s32 %v1572, %v1574
        %v1576 = vrot.slane %v1568, %v1575
        %v1578 = vunpack.c.l.s4 1934713408
        %v1579 = vunpack.c.0.s8 %v1578
        %v1580 = vlaneseq
        %v1581 = vshrl.u32 %v1580, 7
        %v1582 = vsub.s32 %v1579, %v1581
        %v1583 = vrot.slane %v1569, %v1582
        %v1584 = vcombine.low %v1559, %v1567
        %v1585 = vcombine.high %v1559, %v1567
        %v1587 = vunpack.c.l.s4 1934713408
        %v1588 = vunpack.c.0.s8 %v1587
        %v1589 = vlaneseq
        %v1590 = vshrl.u32 %v1589, 7
        %v1591 = vsub.s32 %v1588, %v1590
        %v1592 = vrot.slane %v1584, %v1591
        %v1594 = vunpack.c.l.s4 1934713408
        %v1595 = vunpack.c.0.s8 %v1594
        %v1596 = vlaneseq
        %v1597 = vshrl.u32 %v1596, 7
        %v1598 = vsub.s32 %v1595, %v1597
        %v1599 = vrot.slane %v1585, %v1598
        %v1600 = vcombine.low %v1576, %v1592
        %v1601 = vcombine.high %v1576, %v1592
        %v1602 = vcombine.low %v1583, %v1599
        %v1603 = vcombine.high %v1583, %v1599
        %v1604 = vcombine.low %v1508, %v1515
        %v1606 = vunpack.c.l.s4 1983009808
        %v1607 = vunpack.c.0.s8 %v1606
        %v1608 = vlaneseq
        %v1609 = vshrl.u32 %v1608, 7
        %v1610 = vsub.s32 %v1607, %v1609
        %v1611 = vrot.slane %v1604, %v1610
        %v1612 = vcombine.low %v1532, %v1533
        %v1614 = vunpack.c.l.s4 1983009808
        %v1615 = vunpack.c.0.s8 %v1614
        %v1616 = vlaneseq
        %v1617 = vshrl.u32 %v1616, 7
        %v1618 = vsub.s32 %v1615, %v1617
        %v1619 = vrot.slane %v1612, %v1618
        %v1620 = vcombine.low %v1524, %v1531
        %v1622 = vunpack.c.l.s4 1983009808
        %v1623 = vunpack.c.0.s8 %v1622
        %v1624 = vlaneseq
        %v1625 = vshrl.u32 %v1624, 7
        %v1626 = vsub.s32 %v1623, %v1625
        %v1627 = vrot.slane %v1620, %v1626
        %v1628 = vcombine.low %v1534, %v1535
        %v1630 = vunpack.c.l.s4 1983009808
        %v1631 = vunpack.c.0.s8 %v1630
        %v1632 = vlaneseq
        %v1633 = vshrl.u32 %v1632, 7
        %v1634 = vsub.s32 %v1631, %v1633
        %v1635 = vrot.slane %v1628, %v1634
        %v1636 = vcombine.low %v1611, %v1619
        %v1637 = vcombine.high %v1611, %v1619
        %v1639 = vunpack.c.l.s4 1934713408
        %v1640 = vunpack.c.0.s8 %v1639
        %v1641 = vlaneseq
        %v1642 = vshrl.u32 %v1641, 7
        %v1643 = vsub.s32 %v1640, %v1642
        %v1644 = vrot.slane %v1636, %v1643
        %v1646 = vunpack.c.l.s4 1934713408
        %v1647 = vunpack.c.0.s8 %v1646
        %v1648 = vlaneseq
        %v1649 = vshrl.u32 %v1648, 7
        %v1650 = vsub.s32 %v1647, %v1649
        %v1651 = vrot.slane %v1637, %v1650
        %v1652 = vcombine.low %v1627, %v1635
        %v1653 = vcombine.high %v1627, %v1635
        %v1655 = vunpack.c.l.s4 1934713408
        %v1656 = vunpack.c.0.s8 %v1655
        %v1657 = vlaneseq
        %v1658 = vshrl.u32 %v1657, 7
        %v1659 = vsub.s32 %v1656, %v1658
        %v1660 = vrot.slane %v1652, %v1659
        %v1662 = vunpack.c.l.s4 1934713408
        %v1663 = vunpack.c.0.s8 %v1662
        %v1664 = vlaneseq
        %v1665 = vshrl.u32 %v1664, 7
        %v1666 = vsub.s32 %v1663, %v1665
        %v1667 = vrot.slane %v1653, %v1666
        %v1668 = vcombine.low %v1644, %v1660
        %v1669 = vcombine.high %v1644, %v1660
        %v1670 = vcombine.low %v1651, %v1667
        %v1671 = vcombine.high %v1651, %v1667
        %vm1672 = vcmask 64512
        %v1674 = vsel %vm1672, %v1008, 0
        %v1677 = vsel %vm1672, %v1304, 0
        %1679 = vmatprep.subr.mxu0 0.0
        %1680 = vmatpush1.xpose.msra.mxu0 0.0
        %1681 = vmatprep.subr.mxu0 0.0
        %1682 = vmatpush1.xpose.msra.mxu0 0.0
        %1683 = vmatprep.subr.mxu0 0.0
        %1684 = vmatpush1.xpose.msra.mxu0 0.0
        %1685 = vmatprep.subr.mxu0 0.0
        %1686 = vmatpush1.xpose.msra.mxu0 0.0
        %1687 = vmatprep.subr.mxu0 0.0
        %1688 = vmatpush1.xpose.msra.mxu0 0.0
        %1689 = vmatprep.subr.mxu0 0.0
        %1690 = vmatpush1.xpose.msra.mxu0 0.0
        %1691 = vmatprep.subr.mxu0 0.0
        %1692 = vmatpush1.xpose.msra.mxu0 0.0
        %1693 = vmatprep.subr.mxu0 0.0
        %1694 = vmatpush1.xpose.msra.mxu0 0.0
        %1695 = vmatprep.subr.mxu0 0.0
        %1696 = vmatpush1.xpose.msra.mxu0 0.0
        %1697 = vmatprep.subr.mxu0 0.0
        %1698 = vmatpush1.xpose.msra.mxu0 0.0
        %1699 = vmatprep.subr.mxu0 0.0
        %1700 = vmatpush1.xpose.msra.mxu0 0.0
        %1701 = vmatprep.subr.mxu0 0.0
        %1702 = vmatpush1.xpose.msra.mxu0 0.0
        %1703 = vmatprep.subr.mxu0 0.0
        %1704 = vmatpush1.xpose.msra.mxu0 0.0
        %1705 = vmatprep.subr.mxu0 0.0
        %1706 = vmatpush1.xpose.msra.mxu0 0.0
        %1707 = vmatprep.subr.mxu0 0.0
        %1708 = vmatpush1.xpose.msra.mxu0 0.0
        %1709 = vmatprep.subr.mxu0 0.0
        %1710 = vmatpush1.xpose.msra.mxu0 %v1677
        %1711 = vmatprep.subr.mxu0 0.0
        %1712 = vmatpush2.xpose.msra.mxu0 0.0
        %1713 = vmatprep.subr.mxu0 0.0
        %1714 = vmatpush2.xpose.msra.mxu0 0.0
        %1715 = vmatprep.subr.mxu0 0.0
        %1716 = vmatpush2.xpose.msra.mxu0 0.0
        %1717 = vmatprep.subr.mxu0 0.0
        %1718 = vmatpush2.xpose.msra.mxu0 0.0
        %1719 = vmatprep.subr.mxu0 0.0
        %1720 = vmatpush2.xpose.msra.mxu0 0.0
        %1721 = vmatprep.subr.mxu0 0.0
        %1722 = vmatpush2.xpose.msra.mxu0 0.0
        %1723 = vmatprep.subr.mxu0 0.0
        %1724 = vmatpush2.xpose.msra.mxu0 0.0
        %1725 = vmatprep.subr.mxu0 0.0
        %1726 = vmatpush2.xpose.msra.mxu0 0.0
        %1727 = vmatprep.subr.mxu0 0.0
        %1728 = vmatpush2.xpose.msra.mxu0 0.0
        %1729 = vmatprep.subr.mxu0 0.0
        %1730 = vmatpush2.xpose.msra.mxu0 0.0
        %1731 = vmatprep.subr.mxu0 0.0
        %1732 = vmatpush2.xpose.msra.mxu0 0.0
        %1733 = vmatprep.subr.mxu0 0.0
        %1734 = vmatpush2.xpose.msra.mxu0 0.0
        %1735 = vmatprep.subr.mxu0 0.0
        %1736 = vmatpush2.xpose.msra.mxu0 0.0
        %1737 = vmatprep.subr.mxu0 0.0
        %1738 = vmatpush2.xpose.msra.mxu0 0.0
        %1739 = vmatprep.subr.mxu0 0.0
        %1740 = vmatpush2.xpose.msra.mxu0 0.0
        %1741 = vmatprep.subr.mxu0 0.0
        %1742 = vmatpush2.xpose.msra.mxu0 0.0
        %1743 = vmatprep.mubr.f32.mxu0 0.0
        %1744 = vmatmul.mubr.f32.gmra.mxu0 %v1674
        %v1745 = vpop.f32.mrf.mxu0
        %v1746 = vadd.f32 0.0, %v1745
        %v1747 = vpop.f32.mrf.mxu0
        %1748 = vdwg.mxu0
        %v1750 = vsel %vm1672, %v1009, 0
        %v1753 = vsel %vm1672, %v1305, 0
        %1755 = vmatprep.subr.mxu0 0.0
        %1756 = vmatpush1.xpose.msra.mxu0 0.0
        %1757 = vmatprep.subr.mxu0 0.0
        %1758 = vmatpush1.xpose.msra.mxu0 0.0
        %1759 = vmatprep.subr.mxu0 0.0
        %1760 = vmatpush1.xpose.msra.mxu0 0.0
        %1761 = vmatprep.subr.mxu0 0.0
        %1762 = vmatpush1.xpose.msra.mxu0 0.0
        %1763 = vmatprep.subr.mxu0 0.0
        %1764 = vmatpush1.xpose.msra.mxu0 0.0
        %1765 = vmatprep.subr.mxu0 0.0
        %1766 = vmatpush1.xpose.msra.mxu0 0.0
        %1767 = vmatprep.subr.mxu0 0.0
        %1768 = vmatpush1.xpose.msra.mxu0 0.0
        %1769 = vmatprep.subr.mxu0 0.0
        %1770 = vmatpush1.xpose.msra.mxu0 0.0
        %1771 = vmatprep.subr.mxu0 0.0
        %1772 = vmatpush1.xpose.msra.mxu0 0.0
        %1773 = vmatprep.subr.mxu0 0.0
        %1774 = vmatpush1.xpose.msra.mxu0 0.0
        %1775 = vmatprep.subr.mxu0 0.0
        %1776 = vmatpush1.xpose.msra.mxu0 0.0
        %1777 = vmatprep.subr.mxu0 0.0
        %1778 = vmatpush1.xpose.msra.mxu0 0.0
        %1779 = vmatprep.subr.mxu0 0.0
        %1780 = vmatpush1.xpose.msra.mxu0 0.0
        %1781 = vmatprep.subr.mxu0 0.0
        %1782 = vmatpush1.xpose.msra.mxu0 0.0
        %1783 = vmatprep.subr.mxu0 0.0
        %1784 = vmatpush1.xpose.msra.mxu0 0.0
        %1785 = vmatprep.subr.mxu0 0.0
        %1786 = vmatpush1.xpose.msra.mxu0 %v1753
        %1787 = vmatprep.subr.mxu0 0.0
        %1788 = vmatpush2.xpose.msra.mxu0 0.0
        %1789 = vmatprep.subr.mxu0 0.0
        %1790 = vmatpush2.xpose.msra.mxu0 0.0
        %1791 = vmatprep.subr.mxu0 0.0
        %1792 = vmatpush2.xpose.msra.mxu0 0.0
        %1793 = vmatprep.subr.mxu0 0.0
        %1794 = vmatpush2.xpose.msra.mxu0 0.0
        %1795 = vmatprep.subr.mxu0 0.0
        %1796 = vmatpush2.xpose.msra.mxu0 0.0
        %1797 = vmatprep.subr.mxu0 0.0
        %1798 = vmatpush2.xpose.msra.mxu0 0.0
        %1799 = vmatprep.subr.mxu0 0.0
        %1800 = vmatpush2.xpose.msra.mxu0 0.0
        %1801 = vmatprep.subr.mxu0 0.0
        %1802 = vmatpush2.xpose.msra.mxu0 0.0
        %1803 = vmatprep.subr.mxu0 0.0
        %1804 = vmatpush2.xpose.msra.mxu0 0.0
        %1805 = vmatprep.subr.mxu0 0.0
        %1806 = vmatpush2.xpose.msra.mxu0 0.0
        %1807 = vmatprep.subr.mxu0 0.0
        %1808 = vmatpush2.xpose.msra.mxu0 0.0
        %1809 = vmatprep.subr.mxu0 0.0
        %1810 = vmatpush2.xpose.msra.mxu0 0.0
        %1811 = vmatprep.subr.mxu0 0.0
        %1812 = vmatpush2.xpose.msra.mxu0 0.0
        %1813 = vmatprep.subr.mxu0 0.0
        %1814 = vmatpush2.xpose.msra.mxu0 0.0
        %1815 = vmatprep.subr.mxu0 0.0
        %1816 = vmatpush2.xpose.msra.mxu0 0.0
        %1817 = vmatprep.subr.mxu0 0.0
        %1818 = vmatpush2.xpose.msra.mxu0 0.0
        %1819 = vmatprep.mubr.f32.mxu0 0.0
        %1820 = vmatmul.mubr.f32.gmra.mxu0 %v1750
        %v1821 = vpop.f32.mrf.mxu0
        %v1822 = vadd.f32 0.0, %v1821
        %v1823 = vpop.f32.mrf.mxu0
        %1824 = vdwg.mxu0
        %v1826 = vsel %vm1672, %v1010, 0
        %v1829 = vsel %vm1672, %v1306, 0
        %1831 = vmatprep.subr.mxu0 0.0
        %1832 = vmatpush1.xpose.msra.mxu0 0.0
        %1833 = vmatprep.subr.mxu0 0.0
        %1834 = vmatpush1.xpose.msra.mxu0 0.0
        %1835 = vmatprep.subr.mxu0 0.0
        %1836 = vmatpush1.xpose.msra.mxu0 0.0
        %1837 = vmatprep.subr.mxu0 0.0
        %1838 = vmatpush1.xpose.msra.mxu0 0.0
        %1839 = vmatprep.subr.mxu0 0.0
        %1840 = vmatpush1.xpose.msra.mxu0 0.0
        %1841 = vmatprep.subr.mxu0 0.0
        %1842 = vmatpush1.xpose.msra.mxu0 0.0
        %1843 = vmatprep.subr.mxu0 0.0
        %1844 = vmatpush1.xpose.msra.mxu0 0.0
        %1845 = vmatprep.subr.mxu0 0.0
        %1846 = vmatpush1.xpose.msra.mxu0 0.0
        %1847 = vmatprep.subr.mxu0 0.0
        %1848 = vmatpush1.xpose.msra.mxu0 0.0
        %1849 = vmatprep.subr.mxu0 0.0
        %1850 = vmatpush1.xpose.msra.mxu0 0.0
        %1851 = vmatprep.subr.mxu0 0.0
        %1852 = vmatpush1.xpose.msra.mxu0 0.0
        %1853 = vmatprep.subr.mxu0 0.0
        %1854 = vmatpush1.xpose.msra.mxu0 0.0
        %1855 = vmatprep.subr.mxu0 0.0
        %1856 = vmatpush1.xpose.msra.mxu0 0.0
        %1857 = vmatprep.subr.mxu0 0.0
        %1858 = vmatpush1.xpose.msra.mxu0 0.0
        %1859 = vmatprep.subr.mxu0 0.0
        %1860 = vmatpush1.xpose.msra.mxu0 0.0
        %1861 = vmatprep.subr.mxu0 0.0
        %1862 = vmatpush1.xpose.msra.mxu0 %v1829
        %1863 = vmatprep.subr.mxu0 0.0
        %1864 = vmatpush2.xpose.msra.mxu0 0.0
        %1865 = vmatprep.subr.mxu0 0.0
        %1866 = vmatpush2.xpose.msra.mxu0 0.0
        %1867 = vmatprep.subr.mxu0 0.0
        %1868 = vmatpush2.xpose.msra.mxu0 0.0
        %1869 = vmatprep.subr.mxu0 0.0
        %1870 = vmatpush2.xpose.msra.mxu0 0.0
        %1871 = vmatprep.subr.mxu0 0.0
        %1872 = vmatpush2.xpose.msra.mxu0 0.0
        %1873 = vmatprep.subr.mxu0 0.0
        %1874 = vmatpush2.xpose.msra.mxu0 0.0
        %1875 = vmatprep.subr.mxu0 0.0
        %1876 = vmatpush2.xpose.msra.mxu0 0.0
        %1877 = vmatprep.subr.mxu0 0.0
        %1878 = vmatpush2.xpose.msra.mxu0 0.0
        %1879 = vmatprep.subr.mxu0 0.0
        %1880 = vmatpush2.xpose.msra.mxu0 0.0
        %1881 = vmatprep.subr.mxu0 0.0
        %1882 = vmatpush2.xpose.msra.mxu0 0.0
        %1883 = vmatprep.subr.mxu0 0.0
        %1884 = vmatpush2.xpose.msra.mxu0 0.0
        %1885 = vmatprep.subr.mxu0 0.0
        %1886 = vmatpush2.xpose.msra.mxu0 0.0
        %1887 = vmatprep.subr.mxu0 0.0
        %1888 = vmatpush2.xpose.msra.mxu0 0.0
        %1889 = vmatprep.subr.mxu0 0.0
        %1890 = vmatpush2.xpose.msra.mxu0 0.0
        %1891 = vmatprep.subr.mxu0 0.0
        %1892 = vmatpush2.xpose.msra.mxu0 0.0
        %1893 = vmatprep.subr.mxu0 0.0
        %1894 = vmatpush2.xpose.msra.mxu0 0.0
        %1895 = vmatprep.mubr.f32.mxu0 0.0
        %1896 = vmatmul.mubr.f32.gmra.mxu0 %v1826
        %v1897 = vpop.f32.mrf.mxu0
        %v1898 = vadd.f32 0.0, %v1897
        %v1899 = vpop.f32.mrf.mxu0
        %1900 = vdwg.mxu0
        %v1902 = vsel %vm1672, %v1011, 0
        %v1905 = vsel %vm1672, %v1307, 0
        %1907 = vmatprep.subr.mxu0 0.0
        %1908 = vmatpush1.xpose.msra.mxu0 0.0
        %1909 = vmatprep.subr.mxu0 0.0
        %1910 = vmatpush1.xpose.msra.mxu0 0.0
        %1911 = vmatprep.subr.mxu0 0.0
        %1912 = vmatpush1.xpose.msra.mxu0 0.0
        %1913 = vmatprep.subr.mxu0 0.0
        %1914 = vmatpush1.xpose.msra.mxu0 0.0
        %1915 = vmatprep.subr.mxu0 0.0
        %1916 = vmatpush1.xpose.msra.mxu0 0.0
        %1917 = vmatprep.subr.mxu0 0.0
        %1918 = vmatpush1.xpose.msra.mxu0 0.0
        %1919 = vmatprep.subr.mxu0 0.0
        %1920 = vmatpush1.xpose.msra.mxu0 0.0
        %1921 = vmatprep.subr.mxu0 0.0
        %1922 = vmatpush1.xpose.msra.mxu0 0.0
        %1923 = vmatprep.subr.mxu0 0.0
        %1924 = vmatpush1.xpose.msra.mxu0 0.0
        %1925 = vmatprep.subr.mxu0 0.0
        %1926 = vmatpush1.xpose.msra.mxu0 0.0
        %1927 = vmatprep.subr.mxu0 0.0
        %1928 = vmatpush1.xpose.msra.mxu0 0.0
        %1929 = vmatprep.subr.mxu0 0.0
        %1930 = vmatpush1.xpose.msra.mxu0 0.0
        %1931 = vmatprep.subr.mxu0 0.0
        %1932 = vmatpush1.xpose.msra.mxu0 0.0
        %1933 = vmatprep.subr.mxu0 0.0
        %1934 = vmatpush1.xpose.msra.mxu0 0.0
        %1935 = vmatprep.subr.mxu0 0.0
        %1936 = vmatpush1.xpose.msra.mxu0 0.0
        %1937 = vmatprep.subr.mxu0 0.0
        %1938 = vmatpush1.xpose.msra.mxu0 %v1905
        %1939 = vmatprep.subr.mxu0 0.0
        %1940 = vmatpush2.xpose.msra.mxu0 0.0
        %1941 = vmatprep.subr.mxu0 0.0
        %1942 = vmatpush2.xpose.msra.mxu0 0.0
        %1943 = vmatprep.subr.mxu0 0.0
        %1944 = vmatpush2.xpose.msra.mxu0 0.0
        %1945 = vmatprep.subr.mxu0 0.0
        %1946 = vmatpush2.xpose.msra.mxu0 0.0
        %1947 = vmatprep.subr.mxu0 0.0
        %1948 = vmatpush2.xpose.msra.mxu0 0.0
        %1949 = vmatprep.subr.mxu0 0.0
        %1950 = vmatpush2.xpose.msra.mxu0 0.0
        %1951 = vmatprep.subr.mxu0 0.0
        %1952 = vmatpush2.xpose.msra.mxu0 0.0
        %1953 = vmatprep.subr.mxu0 0.0
        %1954 = vmatpush2.xpose.msra.mxu0 0.0
        %1955 = vmatprep.subr.mxu0 0.0
        %1956 = vmatpush2.xpose.msra.mxu0 0.0
        %1957 = vmatprep.subr.mxu0 0.0
        %1958 = vmatpush2.xpose.msra.mxu0 0.0
        %1959 = vmatprep.subr.mxu0 0.0
        %1960 = vmatpush2.xpose.msra.mxu0 0.0
        %1961 = vmatprep.subr.mxu0 0.0
        %1962 = vmatpush2.xpose.msra.mxu0 0.0
        %1963 = vmatprep.subr.mxu0 0.0
        %1964 = vmatpush2.xpose.msra.mxu0 0.0
        %1965 = vmatprep.subr.mxu0 0.0
        %1966 = vmatpush2.xpose.msra.mxu0 0.0
        %1967 = vmatprep.subr.mxu0 0.0
        %1968 = vmatpush2.xpose.msra.mxu0 0.0
        %1969 = vmatprep.subr.mxu0 0.0
        %1970 = vmatpush2.xpose.msra.mxu0 0.0
        %1971 = vmatprep.mubr.f32.mxu0 0.0
        %1972 = vmatmul.mubr.f32.gmra.mxu0 %v1902
        %v1973 = vpop.f32.mrf.mxu0
        %v1974 = vadd.f32 0.0, %v1973
        %v1975 = vpop.f32.mrf.mxu0
        %1976 = vdwg.mxu0
        %v1978 = vsel %vm1672, %v1076, 0
        %v1981 = vsel %vm1672, %v1372, 0
        %1983 = vmatprep.subr.mxu0 0.0
        %1984 = vmatpush1.xpose.msra.mxu0 0.0
        %1985 = vmatprep.subr.mxu0 0.0
        %1986 = vmatpush1.xpose.msra.mxu0 0.0
        %1987 = vmatprep.subr.mxu0 0.0
        %1988 = vmatpush1.xpose.msra.mxu0 0.0
        %1989 = vmatprep.subr.mxu0 0.0
        %1990 = vmatpush1.xpose.msra.mxu0 0.0
        %1991 = vmatprep.subr.mxu0 0.0
        %1992 = vmatpush1.xpose.msra.mxu0 0.0
        %1993 = vmatprep.subr.mxu0 0.0
        %1994 = vmatpush1.xpose.msra.mxu0 0.0
        %1995 = vmatprep.subr.mxu0 0.0
        %1996 = vmatpush1.xpose.msra.mxu0 0.0
        %1997 = vmatprep.subr.mxu0 0.0
        %1998 = vmatpush1.xpose.msra.mxu0 0.0
        %1999 = vmatprep.subr.mxu0 0.0
        %2000 = vmatpush1.xpose.msra.mxu0 0.0
        %2001 = vmatprep.subr.mxu0 0.0
        %2002 = vmatpush1.xpose.msra.mxu0 0.0
        %2003 = vmatprep.subr.mxu0 0.0
        %2004 = vmatpush1.xpose.msra.mxu0 0.0
        %2005 = vmatprep.subr.mxu0 0.0
        %2006 = vmatpush1.xpose.msra.mxu0 0.0
        %2007 = vmatprep.subr.mxu0 0.0
        %2008 = vmatpush1.xpose.msra.mxu0 0.0
        %2009 = vmatprep.subr.mxu0 0.0
        %2010 = vmatpush1.xpose.msra.mxu0 0.0
        %2011 = vmatprep.subr.mxu0 0.0
        %2012 = vmatpush1.xpose.msra.mxu0 0.0
        %2013 = vmatprep.subr.mxu0 0.0
        %2014 = vmatpush1.xpose.msra.mxu0 %v1981
        %2015 = vmatprep.subr.mxu0 0.0
        %2016 = vmatpush2.xpose.msra.mxu0 0.0
        %2017 = vmatprep.subr.mxu0 0.0
        %2018 = vmatpush2.xpose.msra.mxu0 0.0
        %2019 = vmatprep.subr.mxu0 0.0
        %2020 = vmatpush2.xpose.msra.mxu0 0.0
        %2021 = vmatprep.subr.mxu0 0.0
        %2022 = vmatpush2.xpose.msra.mxu0 0.0
        %2023 = vmatprep.subr.mxu0 0.0
        %2024 = vmatpush2.xpose.msra.mxu0 0.0
        %2025 = vmatprep.subr.mxu0 0.0
        %2026 = vmatpush2.xpose.msra.mxu0 0.0
        %2027 = vmatprep.subr.mxu0 0.0
        %2028 = vmatpush2.xpose.msra.mxu0 0.0
        %2029 = vmatprep.subr.mxu0 0.0
        %2030 = vmatpush2.xpose.msra.mxu0 0.0
        %2031 = vmatprep.subr.mxu0 0.0
        %2032 = vmatpush2.xpose.msra.mxu0 0.0
        %2033 = vmatprep.subr.mxu0 0.0
        %2034 = vmatpush2.xpose.msra.mxu0 0.0
        %2035 = vmatprep.subr.mxu0 0.0
        %2036 = vmatpush2.xpose.msra.mxu0 0.0
        %2037 = vmatprep.subr.mxu0 0.0
        %2038 = vmatpush2.xpose.msra.mxu0 0.0
        %2039 = vmatprep.subr.mxu0 0.0
        %2040 = vmatpush2.xpose.msra.mxu0 0.0
        %2041 = vmatprep.subr.mxu0 0.0
        %2042 = vmatpush2.xpose.msra.mxu0 0.0
        %2043 = vmatprep.subr.mxu0 0.0
        %2044 = vmatpush2.xpose.msra.mxu0 0.0
        %2045 = vmatprep.subr.mxu0 0.0
        %2046 = vmatpush2.xpose.msra.mxu0 0.0
        %2047 = vmatprep.mubr.f32.mxu0 0.0
        %2048 = vmatmul.mubr.f32.gmra.mxu0 %v1978
        %v2049 = vpop.f32.mrf.mxu0
        %v2050 = vadd.f32 0.0, %v2049
        %v2051 = vpop.f32.mrf.mxu0
        %2052 = vdwg.mxu0
        %v2054 = vsel %vm1672, %v1077, 0
        %v2057 = vsel %vm1672, %v1373, 0
        %2059 = vmatprep.subr.mxu0 0.0
        %2060 = vmatpush1.xpose.msra.mxu0 0.0
        %2061 = vmatprep.subr.mxu0 0.0
        %2062 = vmatpush1.xpose.msra.mxu0 0.0
        %2063 = vmatprep.subr.mxu0 0.0
        %2064 = vmatpush1.xpose.msra.mxu0 0.0
        %2065 = vmatprep.subr.mxu0 0.0
        %2066 = vmatpush1.xpose.msra.mxu0 0.0
        %2067 = vmatprep.subr.mxu0 0.0
        %2068 = vmatpush1.xpose.msra.mxu0 0.0
        %2069 = vmatprep.subr.mxu0 0.0
        %2070 = vmatpush1.xpose.msra.mxu0 0.0
        %2071 = vmatprep.subr.mxu0 0.0
        %2072 = vmatpush1.xpose.msra.mxu0 0.0
        %2073 = vmatprep.subr.mxu0 0.0
        %2074 = vmatpush1.xpose.msra.mxu0 0.0
        %2075 = vmatprep.subr.mxu0 0.0
        %2076 = vmatpush1.xpose.msra.mxu0 0.0
        %2077 = vmatprep.subr.mxu0 0.0
        %2078 = vmatpush1.xpose.msra.mxu0 0.0
        %2079 = vmatprep.subr.mxu0 0.0
        %2080 = vmatpush1.xpose.msra.mxu0 0.0
        %2081 = vmatprep.subr.mxu0 0.0
        %2082 = vmatpush1.xpose.msra.mxu0 0.0
        %2083 = vmatprep.subr.mxu0 0.0
        %2084 = vmatpush1.xpose.msra.mxu0 0.0
        %2085 = vmatprep.subr.mxu0 0.0
        %2086 = vmatpush1.xpose.msra.mxu0 0.0
        %2087 = vmatprep.subr.mxu0 0.0
        %2088 = vmatpush1.xpose.msra.mxu0 0.0
        %2089 = vmatprep.subr.mxu0 0.0
        %2090 = vmatpush1.xpose.msra.mxu0 %v2057
        %2091 = vmatprep.subr.mxu0 0.0
        %2092 = vmatpush2.xpose.msra.mxu0 0.0
        %2093 = vmatprep.subr.mxu0 0.0
        %2094 = vmatpush2.xpose.msra.mxu0 0.0
        %2095 = vmatprep.subr.mxu0 0.0
        %2096 = vmatpush2.xpose.msra.mxu0 0.0
        %2097 = vmatprep.subr.mxu0 0.0
        %2098 = vmatpush2.xpose.msra.mxu0 0.0
        %2099 = vmatprep.subr.mxu0 0.0
        %2100 = vmatpush2.xpose.msra.mxu0 0.0
        %2101 = vmatprep.subr.mxu0 0.0
        %2102 = vmatpush2.xpose.msra.mxu0 0.0
        %2103 = vmatprep.subr.mxu0 0.0
        %2104 = vmatpush2.xpose.msra.mxu0 0.0
        %2105 = vmatprep.subr.mxu0 0.0
        %2106 = vmatpush2.xpose.msra.mxu0 0.0
        %2107 = vmatprep.subr.mxu0 0.0
        %2108 = vmatpush2.xpose.msra.mxu0 0.0
        %2109 = vmatprep.subr.mxu0 0.0
        %2110 = vmatpush2.xpose.msra.mxu0 0.0
        %2111 = vmatprep.subr.mxu0 0.0
        %2112 = vmatpush2.xpose.msra.mxu0 0.0
        %2113 = vmatprep.subr.mxu0 0.0
        %2114 = vmatpush2.xpose.msra.mxu0 0.0
        %2115 = vmatprep.subr.mxu0 0.0
        %2116 = vmatpush2.xpose.msra.mxu0 0.0
        %2117 = vmatprep.subr.mxu0 0.0
        %2118 = vmatpush2.xpose.msra.mxu0 0.0
        %2119 = vmatprep.subr.mxu0 0.0
        %2120 = vmatpush2.xpose.msra.mxu0 0.0
        %2121 = vmatprep.subr.mxu0 0.0
        %2122 = vmatpush2.xpose.msra.mxu0 0.0
        %2123 = vmatprep.mubr.f32.mxu0 0.0
        %2124 = vmatmul.mubr.f32.gmra.mxu0 %v2054
        %v2125 = vpop.f32.mrf.mxu0
        %v2126 = vadd.f32 0.0, %v2125
        %v2127 = vpop.f32.mrf.mxu0
        %2128 = vdwg.mxu0
        %v2130 = vsel %vm1672, %v1078, 0
        %v2133 = vsel %vm1672, %v1374, 0
        %2135 = vmatprep.subr.mxu0 0.0
        %2136 = vmatpush1.xpose.msra.mxu0 0.0
        %2137 = vmatprep.subr.mxu0 0.0
        %2138 = vmatpush1.xpose.msra.mxu0 0.0
        %2139 = vmatprep.subr.mxu0 0.0
        %2140 = vmatpush1.xpose.msra.mxu0 0.0
        %2141 = vmatprep.subr.mxu0 0.0
        %2142 = vmatpush1.xpose.msra.mxu0 0.0
        %2143 = vmatprep.subr.mxu0 0.0
        %2144 = vmatpush1.xpose.msra.mxu0 0.0
        %2145 = vmatprep.subr.mxu0 0.0
        %2146 = vmatpush1.xpose.msra.mxu0 0.0
        %2147 = vmatprep.subr.mxu0 0.0
        %2148 = vmatpush1.xpose.msra.mxu0 0.0
        %2149 = vmatprep.subr.mxu0 0.0
        %2150 = vmatpush1.xpose.msra.mxu0 0.0
        %2151 = vmatprep.subr.mxu0 0.0
        %2152 = vmatpush1.xpose.msra.mxu0 0.0
        %2153 = vmatprep.subr.mxu0 0.0
        %2154 = vmatpush1.xpose.msra.mxu0 0.0
        %2155 = vmatprep.subr.mxu0 0.0
        %2156 = vmatpush1.xpose.msra.mxu0 0.0
        %2157 = vmatprep.subr.mxu0 0.0
        %2158 = vmatpush1.xpose.msra.mxu0 0.0
        %2159 = vmatprep.subr.mxu0 0.0
        %2160 = vmatpush1.xpose.msra.mxu0 0.0
        %2161 = vmatprep.subr.mxu0 0.0
        %2162 = vmatpush1.xpose.msra.mxu0 0.0
        %2163 = vmatprep.subr.mxu0 0.0
        %2164 = vmatpush1.xpose.msra.mxu0 0.0
        %2165 = vmatprep.subr.mxu0 0.0
        %2166 = vmatpush1.xpose.msra.mxu0 %v2133
        %2167 = vmatprep.subr.mxu0 0.0
        %2168 = vmatpush2.xpose.msra.mxu0 0.0
        %2169 = vmatprep.subr.mxu0 0.0
        %2170 = vmatpush2.xpose.msra.mxu0 0.0
        %2171 = vmatprep.subr.mxu0 0.0
        %2172 = vmatpush2.xpose.msra.mxu0 0.0
        %2173 = vmatprep.subr.mxu0 0.0
        %2174 = vmatpush2.xpose.msra.mxu0 0.0
        %2175 = vmatprep.subr.mxu0 0.0
        %2176 = vmatpush2.xpose.msra.mxu0 0.0
        %2177 = vmatprep.subr.mxu0 0.0
        %2178 = vmatpush2.xpose.msra.mxu0 0.0
        %2179 = vmatprep.subr.mxu0 0.0
        %2180 = vmatpush2.xpose.msra.mxu0 0.0
        %2181 = vmatprep.subr.mxu0 0.0
        %2182 = vmatpush2.xpose.msra.mxu0 0.0
        %2183 = vmatprep.subr.mxu0 0.0
        %2184 = vmatpush2.xpose.msra.mxu0 0.0
        %2185 = vmatprep.subr.mxu0 0.0
        %2186 = vmatpush2.xpose.msra.mxu0 0.0
        %2187 = vmatprep.subr.mxu0 0.0
        %2188 = vmatpush2.xpose.msra.mxu0 0.0
        %2189 = vmatprep.subr.mxu0 0.0
        %2190 = vmatpush2.xpose.msra.mxu0 0.0
        %2191 = vmatprep.subr.mxu0 0.0
        %2192 = vmatpush2.xpose.msra.mxu0 0.0
        %2193 = vmatprep.subr.mxu0 0.0
        %2194 = vmatpush2.xpose.msra.mxu0 0.0
        %2195 = vmatprep.subr.mxu0 0.0
        %2196 = vmatpush2.xpose.msra.mxu0 0.0
        %2197 = vmatprep.subr.mxu0 0.0
        %2198 = vmatpush2.xpose.msra.mxu0 0.0
        %2199 = vmatprep.mubr.f32.mxu0 0.0
        %2200 = vmatmul.mubr.f32.gmra.mxu0 %v2130
        %v2201 = vpop.f32.mrf.mxu0
        %v2202 = vadd.f32 0.0, %v2201
        %v2203 = vpop.f32.mrf.mxu0
        %2204 = vdwg.mxu0
        %v2206 = vsel %vm1672, %v1079, 0
        %v2209 = vsel %vm1672, %v1375, 0
        %2211 = vmatprep.subr.mxu0 0.0
        %2212 = vmatpush1.xpose.msra.mxu0 0.0
        %2213 = vmatprep.subr.mxu0 0.0
        %2214 = vmatpush1.xpose.msra.mxu0 0.0
        %2215 = vmatprep.subr.mxu0 0.0
        %2216 = vmatpush1.xpose.msra.mxu0 0.0
        %2217 = vmatprep.subr.mxu0 0.0
        %2218 = vmatpush1.xpose.msra.mxu0 0.0
        %2219 = vmatprep.subr.mxu0 0.0
        %2220 = vmatpush1.xpose.msra.mxu0 0.0
        %2221 = vmatprep.subr.mxu0 0.0
        %2222 = vmatpush1.xpose.msra.mxu0 0.0
        %2223 = vmatprep.subr.mxu0 0.0
        %2224 = vmatpush1.xpose.msra.mxu0 0.0
        %2225 = vmatprep.subr.mxu0 0.0
        %2226 = vmatpush1.xpose.msra.mxu0 0.0
        %2227 = vmatprep.subr.mxu0 0.0
        %2228 = vmatpush1.xpose.msra.mxu0 0.0
        %2229 = vmatprep.subr.mxu0 0.0
        %2230 = vmatpush1.xpose.msra.mxu0 0.0
        %2231 = vmatprep.subr.mxu0 0.0
        %2232 = vmatpush1.xpose.msra.mxu0 0.0
        %2233 = vmatprep.subr.mxu0 0.0
        %2234 = vmatpush1.xpose.msra.mxu0 0.0
        %2235 = vmatprep.subr.mxu0 0.0
        %2236 = vmatpush1.xpose.msra.mxu0 0.0
        %2237 = vmatprep.subr.mxu0 0.0
        %2238 = vmatpush1.xpose.msra.mxu0 0.0
        %2239 = vmatprep.subr.mxu0 0.0
        %2240 = vmatpush1.xpose.msra.mxu0 0.0
        %2241 = vmatprep.subr.mxu0 0.0
        %2242 = vmatpush1.xpose.msra.mxu0 %v2209
        %2243 = vmatprep.subr.mxu0 0.0
        %2244 = vmatpush2.xpose.msra.mxu0 0.0
        %2245 = vmatprep.subr.mxu0 0.0
        %2246 = vmatpush2.xpose.msra.mxu0 0.0
        %2247 = vmatprep.subr.mxu0 0.0
        %2248 = vmatpush2.xpose.msra.mxu0 0.0
        %2249 = vmatprep.subr.mxu0 0.0
        %2250 = vmatpush2.xpose.msra.mxu0 0.0
        %2251 = vmatprep.subr.mxu0 0.0
        %2252 = vmatpush2.xpose.msra.mxu0 0.0
        %2253 = vmatprep.subr.mxu0 0.0
        %2254 = vmatpush2.xpose.msra.mxu0 0.0
        %2255 = vmatprep.subr.mxu0 0.0
        %2256 = vmatpush2.xpose.msra.mxu0 0.0
        %2257 = vmatprep.subr.mxu0 0.0
        %2258 = vmatpush2.xpose.msra.mxu0 0.0
        %2259 = vmatprep.subr.mxu0 0.0
        %2260 = vmatpush2.xpose.msra.mxu0 0.0
        %2261 = vmatprep.subr.mxu0 0.0
        %2262 = vmatpush2.xpose.msra.mxu0 0.0
        %2263 = vmatprep.subr.mxu0 0.0
        %2264 = vmatpush2.xpose.msra.mxu0 0.0
        %2265 = vmatprep.subr.mxu0 0.0
        %2266 = vmatpush2.xpose.msra.mxu0 0.0
        %2267 = vmatprep.subr.mxu0 0.0
        %2268 = vmatpush2.xpose.msra.mxu0 0.0
        %2269 = vmatprep.subr.mxu0 0.0
        %2270 = vmatpush2.xpose.msra.mxu0 0.0
        %2271 = vmatprep.subr.mxu0 0.0
        %2272 = vmatpush2.xpose.msra.mxu0 0.0
        %2273 = vmatprep.subr.mxu0 0.0
        %2274 = vmatpush2.xpose.msra.mxu0 0.0
        %2275 = vmatprep.mubr.f32.mxu0 0.0
        %2276 = vmatmul.mubr.f32.gmra.mxu0 %v2206
        %v2277 = vpop.f32.mrf.mxu0
        %v2278 = vadd.f32 0.0, %v2277
        %v2279 = vpop.f32.mrf.mxu0
        %2280 = vdwg.mxu0
        %v2281 = vsel %vm1672, %v1746, -inf
        %2282 = vmax.xlane.f32.xlu0 %v2281
        %v2283 = vpop.xlane.xlu0 %2282
        %v2284 = vsel %vm1672, %v1822, -inf
        %2285 = vmax.xlane.f32.xlu0 %v2284
        %v2286 = vpop.xlane.xlu0 %2285
        %v2287 = vsel %vm1672, %v1898, -inf
        %2288 = vmax.xlane.f32.xlu0 %v2287
        %v2289 = vpop.xlane.xlu0 %2288
        %v2290 = vsel %vm1672, %v1974, -inf
        %2291 = vmax.xlane.f32.xlu0 %v2290
        %v2292 = vpop.xlane.xlu0 %2291
        %v2293 = vsel %vm1672, %v2050, -inf
        %2294 = vmax.xlane.f32.xlu0 %v2293
        %v2295 = vpop.xlane.xlu0 %2294
        %v2296 = vsel %vm1672, %v2126, -inf
        %2297 = vmax.xlane.f32.xlu0 %v2296
        %v2298 = vpop.xlane.xlu0 %2297
        %v2299 = vsel %vm1672, %v2202, -inf
        %2300 = vmax.xlane.f32.xlu0 %v2299
        %v2301 = vpop.xlane.xlu0 %2300
        %v2302 = vsel %vm1672, %v2278, -inf
        %2303 = vmax.xlane.f32.xlu0 %v2302
        %v2304 = vpop.xlane.xlu0 %2303
        %v2305 = vsub.f32 -inf, %v2283
        %v2306 = vsub.f32 -inf, %v2286
        %v2307 = vsub.f32 -inf, %v2289
        %v2308 = vsub.f32 -inf, %v2292
        %v2309 = vsub.f32 -inf, %v2295
        %v2310 = vsub.f32 -inf, %v2298
        %v2311 = vsub.f32 -inf, %v2301
        %v2312 = vsub.f32 -inf, %v2304
        %v2313 = vmul.f32 %v2305, 1.442695
        %v2314 = vpow.pop %v2313
        %v2315 = vmul.f32 %v2306, 1.442695
        %v2316 = vpow.pop %v2315
        %v2317 = vmul.f32 %v2307, 1.442695
        %v2318 = vpow.pop %v2317
        %v2319 = vmul.f32 %v2308, 1.442695
        %v2320 = vpow.pop %v2319
        %v2321 = vmul.f32 %v2309, 1.442695
        %v2322 = vpow.pop %v2321
        %v2323 = vmul.f32 %v2310, 1.442695
        %v2324 = vpow.pop %v2323
        %v2325 = vmul.f32 %v2311, 1.442695
        %v2326 = vpow.pop %v2325
        %v2327 = vmul.f32 %v2312, 1.442695
        %v2328 = vpow.pop %v2327
        %v2329 = vsub.f32 %v1746, %v2283
        %v2330 = vsub.f32 %v1822, %v2286
        %v2331 = vsub.f32 %v1898, %v2289
        %v2332 = vsub.f32 %v1974, %v2292
        %v2333 = vsub.f32 %v2050, %v2295
        %v2334 = vsub.f32 %v2126, %v2298
        %v2335 = vsub.f32 %v2202, %v2301
        %v2336 = vsub.f32 %v2278, %v2304
        %v2337 = vmul.f32 %v2329, 1.442695
        %v2338 = vpow.pop %v2337
        %v2339 = vmul.f32 %v2330, 1.442695
        %v2340 = vpow.pop %v2339
        %v2341 = vmul.f32 %v2331, 1.442695
        %v2342 = vpow.pop %v2341
        %v2343 = vmul.f32 %v2332, 1.442695
        %v2344 = vpow.pop %v2343
        %v2345 = vmul.f32 %v2333, 1.442695
        %v2346 = vpow.pop %v2345
        %v2347 = vmul.f32 %v2334, 1.442695
        %v2348 = vpow.pop %v2347
        %v2349 = vmul.f32 %v2335, 1.442695
        %v2350 = vpow.pop %v2349
        %v2351 = vmul.f32 %v2336, 1.442695
        %v2352 = vpow.pop %v2351
        %v2353 = vmul.f32 %v2314, 0.0
        %v2354 = vmul.f32 %v2316, 0.0
        %v2355 = vmul.f32 %v2318, 0.0
        %v2356 = vmul.f32 %v2320, 0.0
        %v2357 = vmul.f32 %v2322, 0.0
        %v2358 = vmul.f32 %v2324, 0.0
        %v2359 = vmul.f32 %v2326, 0.0
        %v2360 = vmul.f32 %v2328, 0.0
        %v2361 = vsel %vm1672, %v2338, 0.0
        %2362 = vadd.xlane.f32.xlu0 %v2361
        %v2363 = vpop.xlane.xlu0 %2362
        %v2364 = vsel %vm1672, %v2340, 0.0
        %2365 = vadd.xlane.f32.xlu0 %v2364
        %v2366 = vpop.xlane.xlu0 %2365
        %v2367 = vsel %vm1672, %v2342, 0.0
        %2368 = vadd.xlane.f32.xlu0 %v2367
        %v2369 = vpop.xlane.xlu0 %2368
        %v2370 = vsel %vm1672, %v2344, 0.0
        %2371 = vadd.xlane.f32.xlu0 %v2370
        %v2372 = vpop.xlane.xlu0 %2371
        %v2373 = vsel %vm1672, %v2346, 0.0
        %2374 = vadd.xlane.f32.xlu0 %v2373
        %v2375 = vpop.xlane.xlu0 %2374
        %v2376 = vsel %vm1672, %v2348, 0.0
        %2377 = vadd.xlane.f32.xlu0 %v2376
        %v2378 = vpop.xlane.xlu0 %2377
        %v2379 = vsel %vm1672, %v2350, 0.0
        %2380 = vadd.xlane.f32.xlu0 %v2379
        %v2381 = vpop.xlane.xlu0 %2380
        %v2382 = vsel %vm1672, %v2352, 0.0
        %2383 = vadd.xlane.f32.xlu0 %v2382
        %v2384 = vpop.xlane.xlu0 %2383
        %v2385 = vadd.f32 %v2353, %v2363
        %v2386 = vadd.f32 %v2354, %v2366
        %v2387 = vadd.f32 %v2355, %v2369
        %v2388 = vadd.f32 %v2356, %v2372
        %v2389 = vadd.f32 %v2357, %v2375
        %v2390 = vadd.f32 %v2358, %v2378
        %v2391 = vadd.f32 %v2359, %v2381
        %v2392 = vadd.f32 %v2360, %v2384
        %v2394 = vsel %vm1672, %v2338, 0
        %2396 = vmatprep.subr.mxu0 0.0
        %2397 = vmatpush1.msra.mxu0 0.0
        %2398 = vmatprep.subr.mxu0 0.0
        %2399 = vmatpush1.msra.mxu0 0.0
        %2400 = vmatprep.subr.mxu0 0.0
        %2401 = vmatpush1.msra.mxu0 0.0
        %2402 = vmatprep.subr.mxu0 0.0
        %2403 = vmatpush1.msra.mxu0 0.0
        %2404 = vmatprep.subr.mxu0 0.0
        %2405 = vmatpush1.msra.mxu0 0.0
        %2406 = vmatprep.subr.mxu0 0.0
        %2407 = vmatpush1.msra.mxu0 0.0
        %2408 = vmatprep.subr.mxu0 0.0
        %2409 = vmatpush1.msra.mxu0 0.0
        %2410 = vmatprep.subr.mxu0 0.0
        %2411 = vmatpush1.msra.mxu0 0.0
        %2412 = vmatprep.subr.mxu0 0.0
        %2413 = vmatpush1.msra.mxu0 0.0
        %2414 = vmatprep.subr.mxu0 0.0
        %2415 = vmatpush1.msra.mxu0 0.0
        %2416 = vmatprep.subr.mxu0 0.0
        %2417 = vmatpush1.msra.mxu0 0.0
        %2418 = vmatprep.subr.mxu0 0.0
        %2419 = vmatpush1.msra.mxu0 0.0
        %2420 = vmatprep.subr.mxu0 0.0
        %2421 = vmatpush1.msra.mxu0 0.0
        %2422 = vmatprep.subr.mxu0 0.0
        %2423 = vmatpush1.msra.mxu0 0.0
        %2424 = vmatprep.subr.mxu0 0.0
        %2425 = vmatpush1.msra.mxu0 0.0
        %2426 = vmatprep.subr.mxu0 0.0
        %2427 = vmatpush1.msra.mxu0 %v1600
        %2428 = vmatprep.subr.mxu0 0.0
        %2429 = vmatpush2.msra.mxu0 0.0
        %2430 = vmatprep.subr.mxu0 0.0
        %2431 = vmatpush2.msra.mxu0 0.0
        %2432 = vmatprep.subr.mxu0 0.0
        %2433 = vmatpush2.msra.mxu0 0.0
        %2434 = vmatprep.subr.mxu0 0.0
        %2435 = vmatpush2.msra.mxu0 0.0
        %2436 = vmatprep.subr.mxu0 0.0
        %2437 = vmatpush2.msra.mxu0 0.0
        %2438 = vmatprep.subr.mxu0 0.0
        %2439 = vmatpush2.msra.mxu0 0.0
        %2440 = vmatprep.subr.mxu0 0.0
        %2441 = vmatpush2.msra.mxu0 0.0
        %2442 = vmatprep.subr.mxu0 0.0
        %2443 = vmatpush2.msra.mxu0 0.0
        %2444 = vmatprep.subr.mxu0 0.0
        %2445 = vmatpush2.msra.mxu0 0.0
        %2446 = vmatprep.subr.mxu0 0.0
        %2447 = vmatpush2.msra.mxu0 0.0
        %2448 = vmatprep.subr.mxu0 0.0
        %2449 = vmatpush2.msra.mxu0 0.0
        %2450 = vmatprep.subr.mxu0 0.0
        %2451 = vmatpush2.msra.mxu0 0.0
        %2452 = vmatprep.subr.mxu0 0.0
        %2453 = vmatpush2.msra.mxu0 0.0
        %2454 = vmatprep.subr.mxu0 0.0
        %2455 = vmatpush2.msra.mxu0 0.0
        %2456 = vmatprep.subr.mxu0 0.0
        %2457 = vmatpush2.msra.mxu0 0.0
        %2458 = vmatprep.subr.mxu0 0.0
        %2459 = vmatpush2.msra.mxu0 0.0
        %2460 = vmatprep.mubr.f32.mxu0 0.0
        %2461 = vmatmul.mubr.f32.gmra.mxu0 %v2394
        %v2462 = vpop.f32.mrf.mxu0
        %v2463 = vadd.f32 0.0, %v2462
        %v2464 = vpop.f32.mrf.mxu0
        %2465 = vdwg.mxu0
        %v2467 = vsel %vm1672, %v2340, 0
        %2469 = vmatprep.subr.mxu0 0.0
        %2470 = vmatpush1.msra.mxu0 0.0
        %2471 = vmatprep.subr.mxu0 0.0
        %2472 = vmatpush1.msra.mxu0 0.0
        %2473 = vmatprep.subr.mxu0 0.0
        %2474 = vmatpush1.msra.mxu0 0.0
        %2475 = vmatprep.subr.mxu0 0.0
        %2476 = vmatpush1.msra.mxu0 0.0
        %2477 = vmatprep.subr.mxu0 0.0
        %2478 = vmatpush1.msra.mxu0 0.0
        %2479 = vmatprep.subr.mxu0 0.0
        %2480 = vmatpush1.msra.mxu0 0.0
        %2481 = vmatprep.subr.mxu0 0.0
        %2482 = vmatpush1.msra.mxu0 0.0
        %2483 = vmatprep.subr.mxu0 0.0
        %2484 = vmatpush1.msra.mxu0 0.0
        %2485 = vmatprep.subr.mxu0 0.0
        %2486 = vmatpush1.msra.mxu0 0.0
        %2487 = vmatprep.subr.mxu0 0.0
        %2488 = vmatpush1.msra.mxu0 0.0
        %2489 = vmatprep.subr.mxu0 0.0
        %2490 = vmatpush1.msra.mxu0 0.0
        %2491 = vmatprep.subr.mxu0 0.0
        %2492 = vmatpush1.msra.mxu0 0.0
        %2493 = vmatprep.subr.mxu0 0.0
        %2494 = vmatpush1.msra.mxu0 0.0
        %2495 = vmatprep.subr.mxu0 0.0
        %2496 = vmatpush1.msra.mxu0 0.0
        %2497 = vmatprep.subr.mxu0 0.0
        %2498 = vmatpush1.msra.mxu0 0.0
        %2499 = vmatprep.subr.mxu0 0.0
        %2500 = vmatpush1.msra.mxu0 %v1601
        %2501 = vmatprep.subr.mxu0 0.0
        %2502 = vmatpush2.msra.mxu0 0.0
        %2503 = vmatprep.subr.mxu0 0.0
        %2504 = vmatpush2.msra.mxu0 0.0
        %2505 = vmatprep.subr.mxu0 0.0
        %2506 = vmatpush2.msra.mxu0 0.0
        %2507 = vmatprep.subr.mxu0 0.0
        %2508 = vmatpush2.msra.mxu0 0.0
        %2509 = vmatprep.subr.mxu0 0.0
        %2510 = vmatpush2.msra.mxu0 0.0
        %2511 = vmatprep.subr.mxu0 0.0
        %2512 = vmatpush2.msra.mxu0 0.0
        %2513 = vmatprep.subr.mxu0 0.0
        %2514 = vmatpush2.msra.mxu0 0.0
        %2515 = vmatprep.subr.mxu0 0.0
        %2516 = vmatpush2.msra.mxu0 0.0
        %2517 = vmatprep.subr.mxu0 0.0
        %2518 = vmatpush2.msra.mxu0 0.0
        %2519 = vmatprep.subr.mxu0 0.0
        %2520 = vmatpush2.msra.mxu0 0.0
        %2521 = vmatprep.subr.mxu0 0.0
        %2522 = vmatpush2.msra.mxu0 0.0
        %2523 = vmatprep.subr.mxu0 0.0
        %2524 = vmatpush2.msra.mxu0 0.0
        %2525 = vmatprep.subr.mxu0 0.0
        %2526 = vmatpush2.msra.mxu0 0.0
        %2527 = vmatprep.subr.mxu0 0.0
        %2528 = vmatpush2.msra.mxu0 0.0
        %2529 = vmatprep.subr.mxu0 0.0
        %2530 = vmatpush2.msra.mxu0 0.0
        %2531 = vmatprep.subr.mxu0 0.0
        %2532 = vmatpush2.msra.mxu0 0.0
        %2533 = vmatprep.mubr.f32.mxu0 0.0
        %2534 = vmatmul.mubr.f32.gmra.mxu0 %v2467
        %v2535 = vpop.f32.mrf.mxu0
        %v2536 = vadd.f32 0.0, %v2535
        %v2537 = vpop.f32.mrf.mxu0
        %2538 = vdwg.mxu0
        %v2540 = vsel %vm1672, %v2342, 0
        %2542 = vmatprep.subr.mxu0 0.0
        %2543 = vmatpush1.msra.mxu0 0.0
        %2544 = vmatprep.subr.mxu0 0.0
        %2545 = vmatpush1.msra.mxu0 0.0
        %2546 = vmatprep.subr.mxu0 0.0
        %2547 = vmatpush1.msra.mxu0 0.0
        %2548 = vmatprep.subr.mxu0 0.0
        %2549 = vmatpush1.msra.mxu0 0.0
        %2550 = vmatprep.subr.mxu0 0.0
        %2551 = vmatpush1.msra.mxu0 0.0
        %2552 = vmatprep.subr.mxu0 0.0
        %2553 = vmatpush1.msra.mxu0 0.0
        %2554 = vmatprep.subr.mxu0 0.0
        %2555 = vmatpush1.msra.mxu0 0.0
        %2556 = vmatprep.subr.mxu0 0.0
        %2557 = vmatpush1.msra.mxu0 0.0
        %2558 = vmatprep.subr.mxu0 0.0
        %2559 = vmatpush1.msra.mxu0 0.0
        %2560 = vmatprep.subr.mxu0 0.0
        %2561 = vmatpush1.msra.mxu0 0.0
        %2562 = vmatprep.subr.mxu0 0.0
        %2563 = vmatpush1.msra.mxu0 0.0
        %2564 = vmatprep.subr.mxu0 0.0
        %2565 = vmatpush1.msra.mxu0 0.0
        %2566 = vmatprep.subr.mxu0 0.0
        %2567 = vmatpush1.msra.mxu0 0.0
        %2568 = vmatprep.subr.mxu0 0.0
        %2569 = vmatpush1.msra.mxu0 0.0
        %2570 = vmatprep.subr.mxu0 0.0
        %2571 = vmatpush1.msra.mxu0 0.0
        %2572 = vmatprep.subr.mxu0 0.0
        %2573 = vmatpush1.msra.mxu0 %v1602
        %2574 = vmatprep.subr.mxu0 0.0
        %2575 = vmatpush2.msra.mxu0 0.0
        %2576 = vmatprep.subr.mxu0 0.0
        %2577 = vmatpush2.msra.mxu0 0.0
        %2578 = vmatprep.subr.mxu0 0.0
        %2579 = vmatpush2.msra.mxu0 0.0
        %2580 = vmatprep.subr.mxu0 0.0
        %2581 = vmatpush2.msra.mxu0 0.0
        %2582 = vmatprep.subr.mxu0 0.0
        %2583 = vmatpush2.msra.mxu0 0.0
        %2584 = vmatprep.subr.mxu0 0.0
        %2585 = vmatpush2.msra.mxu0 0.0
        %2586 = vmatprep.subr.mxu0 0.0
        %2587 = vmatpush2.msra.mxu0 0.0
        %2588 = vmatprep.subr.mxu0 0.0
        %2589 = vmatpush2.msra.mxu0 0.0
        %2590 = vmatprep.subr.mxu0 0.0
        %2591 = vmatpush2.msra.mxu0 0.0
        %2592 = vmatprep.subr.mxu0 0.0
        %2593 = vmatpush2.msra.mxu0 0.0
        %2594 = vmatprep.subr.mxu0 0.0
        %2595 = vmatpush2.msra.mxu0 0.0
        %2596 = vmatprep.subr.mxu0 0.0
        %2597 = vmatpush2.msra.mxu0 0.0
        %2598 = vmatprep.subr.mxu0 0.0
        %2599 = vmatpush2.msra.mxu0 0.0
        %2600 = vmatprep.subr.mxu0 0.0
        %2601 = vmatpush2.msra.mxu0 0.0
        %2602 = vmatprep.subr.mxu0 0.0
        %2603 = vmatpush2.msra.mxu0 0.0
        %2604 = vmatprep.subr.mxu0 0.0
        %2605 = vmatpush2.msra.mxu0 0.0
        %2606 = vmatprep.mubr.f32.mxu0 0.0
        %2607 = vmatmul.mubr.f32.gmra.mxu0 %v2540
        %v2608 = vpop.f32.mrf.mxu0
        %v2609 = vadd.f32 0.0, %v2608
        %v2610 = vpop.f32.mrf.mxu0
        %2611 = vdwg.mxu0
        %v2613 = vsel %vm1672, %v2344, 0
        %2615 = vmatprep.subr.mxu0 0.0
        %2616 = vmatpush1.msra.mxu0 0.0
        %2617 = vmatprep.subr.mxu0 0.0
        %2618 = vmatpush1.msra.mxu0 0.0
        %2619 = vmatprep.subr.mxu0 0.0
        %2620 = vmatpush1.msra.mxu0 0.0
        %2621 = vmatprep.subr.mxu0 0.0
        %2622 = vmatpush1.msra.mxu0 0.0
        %2623 = vmatprep.subr.mxu0 0.0
        %2624 = vmatpush1.msra.mxu0 0.0
        %2625 = vmatprep.subr.mxu0 0.0
        %2626 = vmatpush1.msra.mxu0 0.0
        %2627 = vmatprep.subr.mxu0 0.0
        %2628 = vmatpush1.msra.mxu0 0.0
        %2629 = vmatprep.subr.mxu0 0.0
        %2630 = vmatpush1.msra.mxu0 0.0
        %2631 = vmatprep.subr.mxu0 0.0
        %2632 = vmatpush1.msra.mxu0 0.0
        %2633 = vmatprep.subr.mxu0 0.0
        %2634 = vmatpush1.msra.mxu0 0.0
        %2635 = vmatprep.subr.mxu0 0.0
        %2636 = vmatpush1.msra.mxu0 0.0
        %2637 = vmatprep.subr.mxu0 0.0
        %2638 = vmatpush1.msra.mxu0 0.0
        %2639 = vmatprep.subr.mxu0 0.0
        %2640 = vmatpush1.msra.mxu0 0.0
        %2641 = vmatprep.subr.mxu0 0.0
        %2642 = vmatpush1.msra.mxu0 0.0
        %2643 = vmatprep.subr.mxu0 0.0
        %2644 = vmatpush1.msra.mxu0 0.0
        %2645 = vmatprep.subr.mxu0 0.0
        %2646 = vmatpush1.msra.mxu0 %v1603
        %2647 = vmatprep.subr.mxu0 0.0
        %2648 = vmatpush2.msra.mxu0 0.0
        %2649 = vmatprep.subr.mxu0 0.0
        %2650 = vmatpush2.msra.mxu0 0.0
        %2651 = vmatprep.subr.mxu0 0.0
        %2652 = vmatpush2.msra.mxu0 0.0
        %2653 = vmatprep.subr.mxu0 0.0
        %2654 = vmatpush2.msra.mxu0 0.0
        %2655 = vmatprep.subr.mxu0 0.0
        %2656 = vmatpush2.msra.mxu0 0.0
        %2657 = vmatprep.subr.mxu0 0.0
        %2658 = vmatpush2.msra.mxu0 0.0
        %2659 = vmatprep.subr.mxu0 0.0
        %2660 = vmatpush2.msra.mxu0 0.0
        %2661 = vmatprep.subr.mxu0 0.0
        %2662 = vmatpush2.msra.mxu0 0.0
        %2663 = vmatprep.subr.mxu0 0.0
        %2664 = vmatpush2.msra.mxu0 0.0
        %2665 = vmatprep.subr.mxu0 0.0
        %2666 = vmatpush2.msra.mxu0 0.0
        %2667 = vmatprep.subr.mxu0 0.0
        %2668 = vmatpush2.msra.mxu0 0.0
        %2669 = vmatprep.subr.mxu0 0.0
        %2670 = vmatpush2.msra.mxu0 0.0
        %2671 = vmatprep.subr.mxu0 0.0
        %2672 = vmatpush2.msra.mxu0 0.0
        %2673 = vmatprep.subr.mxu0 0.0
        %2674 = vmatpush2.msra.mxu0 0.0
        %2675 = vmatprep.subr.mxu0 0.0
        %2676 = vmatpush2.msra.mxu0 0.0
        %2677 = vmatprep.subr.mxu0 0.0
        %2678 = vmatpush2.msra.mxu0 0.0
        %2679 = vmatprep.mubr.f32.mxu0 0.0
        %2680 = vmatmul.mubr.f32.gmra.mxu0 %v2613
        %v2681 = vpop.f32.mrf.mxu0
        %v2682 = vadd.f32 0.0, %v2681
        %v2683 = vpop.f32.mrf.mxu0
        %2684 = vdwg.mxu0
        %v2686 = vsel %vm1672, %v2346, 0
        %2688 = vmatprep.subr.mxu0 0.0
        %2689 = vmatpush1.msra.mxu0 0.0
        %2690 = vmatprep.subr.mxu0 0.0
        %2691 = vmatpush1.msra.mxu0 0.0
        %2692 = vmatprep.subr.mxu0 0.0
        %2693 = vmatpush1.msra.mxu0 0.0
        %2694 = vmatprep.subr.mxu0 0.0
        %2695 = vmatpush1.msra.mxu0 0.0
        %2696 = vmatprep.subr.mxu0 0.0
        %2697 = vmatpush1.msra.mxu0 0.0
        %2698 = vmatprep.subr.mxu0 0.0
        %2699 = vmatpush1.msra.mxu0 0.0
        %2700 = vmatprep.subr.mxu0 0.0
        %2701 = vmatpush1.msra.mxu0 0.0
        %2702 = vmatprep.subr.mxu0 0.0
        %2703 = vmatpush1.msra.mxu0 0.0
        %2704 = vmatprep.subr.mxu0 0.0
        %2705 = vmatpush1.msra.mxu0 0.0
        %2706 = vmatprep.subr.mxu0 0.0
        %2707 = vmatpush1.msra.mxu0 0.0
        %2708 = vmatprep.subr.mxu0 0.0
        %2709 = vmatpush1.msra.mxu0 0.0
        %2710 = vmatprep.subr.mxu0 0.0
        %2711 = vmatpush1.msra.mxu0 0.0
        %2712 = vmatprep.subr.mxu0 0.0
        %2713 = vmatpush1.msra.mxu0 0.0
        %2714 = vmatprep.subr.mxu0 0.0
        %2715 = vmatpush1.msra.mxu0 0.0
        %2716 = vmatprep.subr.mxu0 0.0
        %2717 = vmatpush1.msra.mxu0 0.0
        %2718 = vmatprep.subr.mxu0 0.0
        %2719 = vmatpush1.msra.mxu0 %v1668
        %2720 = vmatprep.subr.mxu0 0.0
        %2721 = vmatpush2.msra.mxu0 0.0
        %2722 = vmatprep.subr.mxu0 0.0
        %2723 = vmatpush2.msra.mxu0 0.0
        %2724 = vmatprep.subr.mxu0 0.0
        %2725 = vmatpush2.msra.mxu0 0.0
        %2726 = vmatprep.subr.mxu0 0.0
        %2727 = vmatpush2.msra.mxu0 0.0
        %2728 = vmatprep.subr.mxu0 0.0
        %2729 = vmatpush2.msra.mxu0 0.0
        %2730 = vmatprep.subr.mxu0 0.0
        %2731 = vmatpush2.msra.mxu0 0.0
        %2732 = vmatprep.subr.mxu0 0.0
        %2733 = vmatpush2.msra.mxu0 0.0
        %2734 = vmatprep.subr.mxu0 0.0
        %2735 = vmatpush2.msra.mxu0 0.0
        %2736 = vmatprep.subr.mxu0 0.0
        %2737 = vmatpush2.msra.mxu0 0.0
        %2738 = vmatprep.subr.mxu0 0.0
        %2739 = vmatpush2.msra.mxu0 0.0
        %2740 = vmatprep.subr.mxu0 0.0
        %2741 = vmatpush2.msra.mxu0 0.0
        %2742 = vmatprep.subr.mxu0 0.0
        %2743 = vmatpush2.msra.mxu0 0.0
        %2744 = vmatprep.subr.mxu0 0.0
        %2745 = vmatpush2.msra.mxu0 0.0
        %2746 = vmatprep.subr.mxu0 0.0
        %2747 = vmatpush2.msra.mxu0 0.0
        %2748 = vmatprep.subr.mxu0 0.0
        %2749 = vmatpush2.msra.mxu0 0.0
        %2750 = vmatprep.subr.mxu0 0.0
        %2751 = vmatpush2.msra.mxu0 0.0
        %2752 = vmatprep.mubr.f32.mxu0 0.0
        %2753 = vmatmul.mubr.f32.gmra.mxu0 %v2686
        %v2754 = vpop.f32.mrf.mxu0
        %v2755 = vadd.f32 0.0, %v2754
        %v2756 = vpop.f32.mrf.mxu0
        %2757 = vdwg.mxu0
        %v2759 = vsel %vm1672, %v2348, 0
        %2761 = vmatprep.subr.mxu0 0.0
        %2762 = vmatpush1.msra.mxu0 0.0
        %2763 = vmatprep.subr.mxu0 0.0
        %2764 = vmatpush1.msra.mxu0 0.0
        %2765 = vmatprep.subr.mxu0 0.0
        %2766 = vmatpush1.msra.mxu0 0.0
        %2767 = vmatprep.subr.mxu0 0.0
        %2768 = vmatpush1.msra.mxu0 0.0
        %2769 = vmatprep.subr.mxu0 0.0
        %2770 = vmatpush1.msra.mxu0 0.0
        %2771 = vmatprep.subr.mxu0 0.0
        %2772 = vmatpush1.msra.mxu0 0.0
        %2773 = vmatprep.subr.mxu0 0.0
        %2774 = vmatpush1.msra.mxu0 0.0
        %2775 = vmatprep.subr.mxu0 0.0
        %2776 = vmatpush1.msra.mxu0 0.0
        %2777 = vmatprep.subr.mxu0 0.0
        %2778 = vmatpush1.msra.mxu0 0.0
        %2779 = vmatprep.subr.mxu0 0.0
        %2780 = vmatpush1.msra.mxu0 0.0
        %2781 = vmatprep.subr.mxu0 0.0
        %2782 = vmatpush1.msra.mxu0 0.0
        %2783 = vmatprep.subr.mxu0 0.0
        %2784 = vmatpush1.msra.mxu0 0.0
        %2785 = vmatprep.subr.mxu0 0.0
        %2786 = vmatpush1.msra.mxu0 0.0
        %2787 = vmatprep.subr.mxu0 0.0
        %2788 = vmatpush1.msra.mxu0 0.0
        %2789 = vmatprep.subr.mxu0 0.0
        %2790 = vmatpush1.msra.mxu0 0.0
        %2791 = vmatprep.subr.mxu0 0.0
        %2792 = vmatpush1.msra.mxu0 %v1669
        %2793 = vmatprep.subr.mxu0 0.0
        %2794 = vmatpush2.msra.mxu0 0.0
        %2795 = vmatprep.subr.mxu0 0.0
        %2796 = vmatpush2.msra.mxu0 0.0
        %2797 = vmatprep.subr.mxu0 0.0
        %2798 = vmatpush2.msra.mxu0 0.0
        %2799 = vmatprep.subr.mxu0 0.0
        %2800 = vmatpush2.msra.mxu0 0.0
        %2801 = vmatprep.subr.mxu0 0.0
        %2802 = vmatpush2.msra.mxu0 0.0
        %2803 = vmatprep.subr.mxu0 0.0
        %2804 = vmatpush2.msra.mxu0 0.0
        %2805 = vmatprep.subr.mxu0 0.0
        %2806 = vmatpush2.msra.mxu0 0.0
        %2807 = vmatprep.subr.mxu0 0.0
        %2808 = vmatpush2.msra.mxu0 0.0
        %2809 = vmatprep.subr.mxu0 0.0
        %2810 = vmatpush2.msra.mxu0 0.0
        %2811 = vmatprep.subr.mxu0 0.0
        %2812 = vmatpush2.msra.mxu0 0.0
        %2813 = vmatprep.subr.mxu0 0.0
        %2814 = vmatpush2.msra.mxu0 0.0
        %2815 = vmatprep.subr.mxu0 0.0
        %2816 = vmatpush2.msra.mxu0 0.0
        %2817 = vmatprep.subr.mxu0 0.0
        %2818 = vmatpush2.msra.mxu0 0.0
        %2819 = vmatprep.subr.mxu0 0.0
        %2820 = vmatpush2.msra.mxu0 0.0
        %2821 = vmatprep.subr.mxu0 0.0
        %2822 = vmatpush2.msra.mxu0 0.0
        %2823 = vmatprep.subr.mxu0 0.0
        %2824 = vmatpush2.msra.mxu0 0.0
        %2825 = vmatprep.mubr.f32.mxu0 0.0
        %2826 = vmatmul.mubr.f32.gmra.mxu0 %v2759
        %v2827 = vpop.f32.mrf.mxu0
        %v2828 = vadd.f32 0.0, %v2827
        %v2829 = vpop.f32.mrf.mxu0
        %2830 = vdwg.mxu0
        %v2832 = vsel %vm1672, %v2350, 0
        %2834 = vmatprep.subr.mxu0 0.0
        %2835 = vmatpush1.msra.mxu0 0.0
        %2836 = vmatprep.subr.mxu0 0.0
        %2837 = vmatpush1.msra.mxu0 0.0
        %2838 = vmatprep.subr.mxu0 0.0
        %2839 = vmatpush1.msra.mxu0 0.0
        %2840 = vmatprep.subr.mxu0 0.0
        %2841 = vmatpush1.msra.mxu0 0.0
        %2842 = vmatprep.subr.mxu0 0.0
        %2843 = vmatpush1.msra.mxu0 0.0
        %2844 = vmatprep.subr.mxu0 0.0
        %2845 = vmatpush1.msra.mxu0 0.0
        %2846 = vmatprep.subr.mxu0 0.0
        %2847 = vmatpush1.msra.mxu0 0.0
        %2848 = vmatprep.subr.mxu0 0.0
        %2849 = vmatpush1.msra.mxu0 0.0
        %2850 = vmatprep.subr.mxu0 0.0
        %2851 = vmatpush1.msra.mxu0 0.0
        %2852 = vmatprep.subr.mxu0 0.0
        %2853 = vmatpush1.msra.mxu0 0.0
        %2854 = vmatprep.subr.mxu0 0.0
        %2855 = vmatpush1.msra.mxu0 0.0
        %2856 = vmatprep.subr.mxu0 0.0
        %2857 = vmatpush1.msra.mxu0 0.0
        %2858 = vmatprep.subr.mxu0 0.0
        %2859 = vmatpush1.msra.mxu0 0.0
        %2860 = vmatprep.subr.mxu0 0.0
        %2861 = vmatpush1.msra.mxu0 0.0
        %2862 = vmatprep.subr.mxu0 0.0
        %2863 = vmatpush1.msra.mxu0 0.0
        %2864 = vmatprep.subr.mxu0 0.0
        %2865 = vmatpush1.msra.mxu0 %v1670
        %2866 = vmatprep.subr.mxu0 0.0
        %2867 = vmatpush2.msra.mxu0 0.0
        %2868 = vmatprep.subr.mxu0 0.0
        %2869 = vmatpush2.msra.mxu0 0.0
        %2870 = vmatprep.subr.mxu0 0.0
        %2871 = vmatpush2.msra.mxu0 0.0
        %2872 = vmatprep.subr.mxu0 0.0
        %2873 = vmatpush2.msra.mxu0 0.0
        %2874 = vmatprep.subr.mxu0 0.0
        %2875 = vmatpush2.msra.mxu0 0.0
        %2876 = vmatprep.subr.mxu0 0.0
        %2877 = vmatpush2.msra.mxu0 0.0
        %2878 = vmatprep.subr.mxu0 0.0
        %2879 = vmatpush2.msra.mxu0 0.0
        %2880 = vmatprep.subr.mxu0 0.0
        %2881 = vmatpush2.msra.mxu0 0.0
        %2882 = vmatprep.subr.mxu0 0.0
        %2883 = vmatpush2.msra.mxu0 0.0
        %2884 = vmatprep.subr.mxu0 0.0
        %2885 = vmatpush2.msra.mxu0 0.0
        %2886 = vmatprep.subr.mxu0 0.0
        %2887 = vmatpush2.msra.mxu0 0.0
        %2888 = vmatprep.subr.mxu0 0.0
        %2889 = vmatpush2.msra.mxu0 0.0
        %2890 = vmatprep.subr.mxu0 0.0
        %2891 = vmatpush2.msra.mxu0 0.0
        %2892 = vmatprep.subr.mxu0 0.0
        %2893 = vmatpush2.msra.mxu0 0.0
        %2894 = vmatprep.subr.mxu0 0.0
        %2895 = vmatpush2.msra.mxu0 0.0
        %2896 = vmatprep.subr.mxu0 0.0
        %2897 = vmatpush2.msra.mxu0 0.0
        %2898 = vmatprep.mubr.f32.mxu0 0.0
        %2899 = vmatmul.mubr.f32.gmra.mxu0 %v2832
        %v2900 = vpop.f32.mrf.mxu0
        %v2901 = vadd.f32 0.0, %v2900
        %v2902 = vpop.f32.mrf.mxu0
        %2903 = vdwg.mxu0
        %v2905 = vsel %vm1672, %v2352, 0
        %2907 = vmatprep.subr.mxu0 0.0
        %2908 = vmatpush1.msra.mxu0 0.0
        %2909 = vmatprep.subr.mxu0 0.0
        %2910 = vmatpush1.msra.mxu0 0.0
        %2911 = vmatprep.subr.mxu0 0.0
        %2912 = vmatpush1.msra.mxu0 0.0
        %2913 = vmatprep.subr.mxu0 0.0
        %2914 = vmatpush1.msra.mxu0 0.0
        %2915 = vmatprep.subr.mxu0 0.0
        %2916 = vmatpush1.msra.mxu0 0.0
        %2917 = vmatprep.subr.mxu0 0.0
        %2918 = vmatpush1.msra.mxu0 0.0
        %2919 = vmatprep.subr.mxu0 0.0
        %2920 = vmatpush1.msra.mxu0 0.0
        %2921 = vmatprep.subr.mxu0 0.0
        %2922 = vmatpush1.msra.mxu0 0.0
        %2923 = vmatprep.subr.mxu0 0.0
        %2924 = vmatpush1.msra.mxu0 0.0
        %2925 = vmatprep.subr.mxu0 0.0
        %2926 = vmatpush1.msra.mxu0 0.0
        %2927 = vmatprep.subr.mxu0 0.0
        %2928 = vmatpush1.msra.mxu0 0.0
        %2929 = vmatprep.subr.mxu0 0.0
        %2930 = vmatpush1.msra.mxu0 0.0
        %2931 = vmatprep.subr.mxu0 0.0
        %2932 = vmatpush1.msra.mxu0 0.0
        %2933 = vmatprep.subr.mxu0 0.0
        %2934 = vmatpush1.msra.mxu0 0.0
        %2935 = vmatprep.subr.mxu0 0.0
        %2936 = vmatpush1.msra.mxu0 0.0
        %2937 = vmatprep.subr.mxu0 0.0
        %2938 = vmatpush1.msra.mxu0 %v1671
        %2939 = vmatprep.subr.mxu0 0.0
        %2940 = vmatpush2.msra.mxu0 0.0
        %2941 = vmatprep.subr.mxu0 0.0
        %2942 = vmatpush2.msra.mxu0 0.0
        %2943 = vmatprep.subr.mxu0 0.0
        %2944 = vmatpush2.msra.mxu0 0.0
        %2945 = vmatprep.subr.mxu0 0.0
        %2946 = vmatpush2.msra.mxu0 0.0
        %2947 = vmatprep.subr.mxu0 0.0
        %2948 = vmatpush2.msra.mxu0 0.0
        %2949 = vmatprep.subr.mxu0 0.0
        %2950 = vmatpush2.msra.mxu0 0.0
        %2951 = vmatprep.subr.mxu0 0.0
        %2952 = vmatpush2.msra.mxu0 0.0
        %2953 = vmatprep.subr.mxu0 0.0
        %2954 = vmatpush2.msra.mxu0 0.0
        %2955 = vmatprep.subr.mxu0 0.0
        %2956 = vmatpush2.msra.mxu0 0.0
        %2957 = vmatprep.subr.mxu0 0.0
        %2958 = vmatpush2.msra.mxu0 0.0
        %2959 = vmatprep.subr.mxu0 0.0
        %2960 = vmatpush2.msra.mxu0 0.0
        %2961 = vmatprep.subr.mxu0 0.0
        %2962 = vmatpush2.msra.mxu0 0.0
        %2963 = vmatprep.subr.mxu0 0.0
        %2964 = vmatpush2.msra.mxu0 0.0
        %2965 = vmatprep.subr.mxu0 0.0
        %2966 = vmatpush2.msra.mxu0 0.0
        %2967 = vmatprep.subr.mxu0 0.0
        %2968 = vmatpush2.msra.mxu0 0.0
        %2969 = vmatprep.subr.mxu0 0.0
        %2970 = vmatpush2.msra.mxu0 0.0
        %2971 = vmatprep.mubr.f32.mxu0 0.0
        %2972 = vmatmul.mubr.f32.gmra.mxu0 %v2905
        %v2973 = vpop.f32.mrf.mxu0
        %v2974 = vadd.f32 0.0, %v2973
        %v2975 = vpop.f32.mrf.mxu0
        %2976 = vdwg.mxu0
        %v2977 = vadd.f32 %v2353, %v2463
        %v2978 = vadd.f32 %v2354, %v2536
        %v2979 = vadd.f32 %v2355, %v2609
        %v2980 = vadd.f32 %v2356, %v2682
        %v2981 = vadd.f32 %v2357, %v2755
        %v2982 = vadd.f32 %v2358, %v2828
        %v2983 = vadd.f32 %v2359, %v2901
        %v2984 = vadd.f32 %v2360, %v2974
        %v2985 = vrcp.pop %v2385
        %v2986 = vrcp.pop %v2386
        %v2987 = vrcp.pop %v2387
        %v2988 = vrcp.pop %v2388
        %v2989 = vrcp.pop %v2389
        %v2990 = vrcp.pop %v2390
        %v2991 = vrcp.pop %v2391
        %v2992 = vrcp.pop %v2392
        %v2993 = vmul.f32 %v2977, %v2985
        %v2994 = vmul.f32 %v2978, %v2986
        %v2995 = vmul.f32 %v2979, %v2987
        %v2996 = vmul.f32 %v2980, %v2988
        %v2997 = vmul.f32 %v2981, %v2989
        %v2998 = vmul.f32 %v2982, %v2990
        %v2999 = vmul.f32 %v2983, %v2991
        %v3000 = vmul.f32 %v2984, %v2992
        %v3001 = vcombine.low %v2993, %v2995
        %v3002 = vcombine.high %v2993, %v2995
        %v3004 = vunpack.c.l.s4 1983009808
        %v3005 = vunpack.c.0.s8 %v3004
        %v3006 = vlaneseq
        %v3007 = vshrl.u32 %v3006, 7
        %v3008 = vsub.s32 %v3005, %v3007
        %v3009 = vrot.slane %v3001, %v3008
        %v3011 = vunpack.c.l.s4 1983009808
        %v3012 = vunpack.c.0.s8 %v3011
        %v3013 = vlaneseq
        %v3014 = vshrl.u32 %v3013, 7
        %v3015 = vsub.s32 %v3012, %v3014
        %v3016 = vrot.slane %v3002, %v3015
        %v3017 = vcombine.low %v2994, %v2996
        %v3018 = vcombine.high %v2994, %v2996
        %v3020 = vunpack.c.l.s4 1983009808
        %v3021 = vunpack.c.0.s8 %v3020
        %v3022 = vlaneseq
        %v3023 = vshrl.u32 %v3022, 7
        %v3024 = vsub.s32 %v3021, %v3023
        %v3025 = vrot.slane %v3017, %v3024
        %v3027 = vunpack.c.l.s4 1983009808
        %v3028 = vunpack.c.0.s8 %v3027
        %v3029 = vlaneseq
        %v3030 = vshrl.u32 %v3029, 7
        %v3031 = vsub.s32 %v3028, %v3030
        %v3032 = vrot.slane %v3018, %v3031
        %v3033 = vcombine.low %v3009, %v3025
        %v3034 = vcombine.high %v3009, %v3025
        %v3036 = vunpack.c.l.s4 1934713408
        %v3037 = vunpack.c.0.s8 %v3036
        %v3038 = vlaneseq
        %v3039 = vshrl.u32 %v3038, 7
        %v3040 = vsub.s32 %v3037, %v3039
        %v3041 = vrot.slane %v3033, %v3040
        %v3043 = vunpack.c.l.s4 1934713408
        %v3044 = vunpack.c.0.s8 %v3043
        %v3045 = vlaneseq
        %v3046 = vshrl.u32 %v3045, 7
        %v3047 = vsub.s32 %v3044, %v3046
        %v3048 = vrot.slane %v3034, %v3047
        %v3049 = vcombine.low %v3016, %v3032
        %v3050 = vcombine.high %v3016, %v3032
        %v3052 = vunpack.c.l.s4 1934713408
        %v3053 = vunpack.c.0.s8 %v3052
        %v3054 = vlaneseq
        %v3055 = vshrl.u32 %v3054, 7
        %v3056 = vsub.s32 %v3053, %v3055
        %v3057 = vrot.slane %v3049, %v3056
        %v3059 = vunpack.c.l.s4 1934713408
        %v3060 = vunpack.c.0.s8 %v3059
        %v3061 = vlaneseq
        %v3062 = vshrl.u32 %v3061, 7
        %v3063 = vsub.s32 %v3060, %v3062
        %v3064 = vrot.slane %v3050, %v3063
        %v3065 = vcombine.high %v3041, 0.0
        %v3066 = vcombine.high %v3048, 0.0
        %v3067 = vcombine.high %v3057, 0.0
        %v3068 = vcombine.high %v3064, 0.0
        %v3069 = vcombine.low %v2997, %v2999
        %v3070 = vcombine.high %v2997, %v2999
        %v3072 = vunpack.c.l.s4 1983009808
        %v3073 = vunpack.c.0.s8 %v3072
        %v3074 = vlaneseq
        %v3075 = vshrl.u32 %v3074, 7
        %v3076 = vsub.s32 %v3073, %v3075
        %v3077 = vrot.slane %v3069, %v3076
        %v3079 = vunpack.c.l.s4 1983009808
        %v3080 = vunpack.c.0.s8 %v3079
        %v3081 = vlaneseq
        %v3082 = vshrl.u32 %v3081, 7
        %v3083 = vsub.s32 %v3080, %v3082
        %v3084 = vrot.slane %v3070, %v3083
        %v3085 = vcombine.low %v2998, %v3000
        %v3086 = vcombine.high %v2998, %v3000
        %v3088 = vunpack.c.l.s4 1983009808
        %v3089 = vunpack.c.0.s8 %v3088
        %v3090 = vlaneseq
        %v3091 = vshrl.u32 %v3090, 7
        %v3092 = vsub.s32 %v3089, %v3091
        %v3093 = vrot.slane %v3085, %v3092
        %v3095 = vunpack.c.l.s4 1983009808
        %v3096 = vunpack.c.0.s8 %v3095
        %v3097 = vlaneseq
        %v3098 = vshrl.u32 %v3097, 7
        %v3099 = vsub.s32 %v3096, %v3098
        %v3100 = vrot.slane %v3086, %v3099
        %v3101 = vcombine.low %v3077, %v3093
        %v3102 = vcombine.high %v3077, %v3093
        %v3104 = vunpack.c.l.s4 1934713408
        %v3105 = vunpack.c.0.s8 %v3104
        %v3106 = vlaneseq
        %v3107 = vshrl.u32 %v3106, 7
        %v3108 = vsub.s32 %v3105, %v3107
        %v3109 = vrot.slane %v3101, %v3108
        %v3111 = vunpack.c.l.s4 1934713408
        %v3112 = vunpack.c.0.s8 %v3111
        %v3113 = vlaneseq
        %v3114 = vshrl.u32 %v3113, 7
        %v3115 = vsub.s32 %v3112, %v3114
        %v3116 = vrot.slane %v3102, %v3115
        %v3117 = vcombine.low %v3084, %v3100
        %v3118 = vcombine.high %v3084, %v3100
        %v3120 = vunpack.c.l.s4 1934713408
        %v3121 = vunpack.c.0.s8 %v3120
        %v3122 = vlaneseq
        %v3123 = vshrl.u32 %v3122, 7
        %v3124 = vsub.s32 %v3121, %v3123
        %v3125 = vrot.slane %v3117, %v3124
        %v3127 = vunpack.c.l.s4 1934713408
        %v3128 = vunpack.c.0.s8 %v3127
        %v3129 = vlaneseq
        %v3130 = vshrl.u32 %v3129, 7
        %v3131 = vsub.s32 %v3128, %v3130
        %v3132 = vrot.slane %v3118, %v3131
        %v3133 = vcombine.high %v3109, 0.0
        %v3134 = vcombine.high %v3116, 0.0
        %v3135 = vcombine.high %v3125, 0.0
        %v3136 = vcombine.high %v3132, 0.0
        %v3137 = vcombine.low %v3041, %v3048
        %v3139 = vunpack.c.l.s4 1983009808
        %v3140 = vunpack.c.0.s8 %v3139
        %v3141 = vlaneseq
        %v3142 = vshrl.u32 %v3141, 7
        %v3143 = vsub.s32 %v3140, %v3142
        %v3144 = vrot.slane %v3137, %v3143
        %v3145 = vcombine.low %v3065, %v3066
        %v3147 = vunpack.c.l.s4 1983009808
        %v3148 = vunpack.c.0.s8 %v3147
        %v3149 = vlaneseq
        %v3150 = vshrl.u32 %v3149, 7
        %v3151 = vsub.s32 %v3148, %v3150
        %v3152 = vrot.slane %v3145, %v3151
        %v3153 = vcombine.low %v3057, %v3064
        %v3155 = vunpack.c.l.s4 1983009808
        %v3156 = vunpack.c.0.s8 %v3155
        %v3157 = vlaneseq
        %v3158 = vshrl.u32 %v3157, 7
        %v3159 = vsub.s32 %v3156, %v3158
        %v3160 = vrot.slane %v3153, %v3159
        %v3161 = vcombine.low %v3067, %v3068
        %v3163 = vunpack.c.l.s4 1983009808
        %v3164 = vunpack.c.0.s8 %v3163
        %v3165 = vlaneseq
        %v3166 = vshrl.u32 %v3165, 7
        %v3167 = vsub.s32 %v3164, %v3166
        %v3168 = vrot.slane %v3161, %v3167
        %v3169 = vcombine.low %v3144, %v3152
        %v3170 = vcombine.high %v3144, %v3152
        %v3172 = vunpack.c.l.s4 1934713408
        %v3173 = vunpack.c.0.s8 %v3172
        %v3174 = vlaneseq
        %v3175 = vshrl.u32 %v3174, 7
        %v3176 = vsub.s32 %v3173, %v3175
        %v3177 = vrot.slane %v3169, %v3176
        %v3179 = vunpack.c.l.s4 1934713408
        %v3180 = vunpack.c.0.s8 %v3179
        %v3181 = vlaneseq
        %v3182 = vshrl.u32 %v3181, 7
        %v3183 = vsub.s32 %v3180, %v3182
        %v3184 = vrot.slane %v3170, %v3183
        %v3185 = vcombine.low %v3160, %v3168
        %v3186 = vcombine.high %v3160, %v3168
        %v3188 = vunpack.c.l.s4 1934713408
        %v3189 = vunpack.c.0.s8 %v3188
        %v3190 = vlaneseq
        %v3191 = vshrl.u32 %v3190, 7
        %v3192 = vsub.s32 %v3189, %v3191
        %v3193 = vrot.slane %v3185, %v3192
        %v3195 = vunpack.c.l.s4 1934713408
        %v3196 = vunpack.c.0.s8 %v3195
        %v3197 = vlaneseq
        %v3198 = vshrl.u32 %v3197, 7
        %v3199 = vsub.s32 %v3196, %v3198
        %v3200 = vrot.slane %v3186, %v3199
        %v3201 = vcombine.low %v3177, %v3193
        %v3202 = vcombine.high %v3177, %v3193
        %v3203 = vcombine.low %v3184, %v3200
        %v3204 = vcombine.high %v3184, %v3200
        %v3205 = vcombine.low %v3109, %v3116
        %v3207 = vunpack.c.l.s4 1983009808
        %v3208 = vunpack.c.0.s8 %v3207
        %v3209 = vlaneseq
        %v3210 = vshrl.u32 %v3209, 7
        %v3211 = vsub.s32 %v3208, %v3210
        %v3212 = vrot.slane %v3205, %v3211
        %v3213 = vcombine.low %v3133, %v3134
        %v3215 = vunpack.c.l.s4 1983009808
        %v3216 = vunpack.c.0.s8 %v3215
        %v3217 = vlaneseq
        %v3218 = vshrl.u32 %v3217, 7
        %v3219 = vsub.s32 %v3216, %v3218
        %v3220 = vrot.slane %v3213, %v3219
        %v3221 = vcombine.low %v3125, %v3132
        %v3223 = vunpack.c.l.s4 1983009808
        %v3224 = vunpack.c.0.s8 %v3223
        %v3225 = vlaneseq
        %v3226 = vshrl.u32 %v3225, 7
        %v3227 = vsub.s32 %v3224, %v3226
        %v3228 = vrot.slane %v3221, %v3227
        %v3229 = vcombine.low %v3135, %v3136
        %v3231 = vunpack.c.l.s4 1983009808
        %v3232 = vunpack.c.0.s8 %v3231
        %v3233 = vlaneseq
        %v3234 = vshrl.u32 %v3233, 7
        %v3235 = vsub.s32 %v3232, %v3234
        %v3236 = vrot.slane %v3229, %v3235
        %v3237 = vcombine.low %v3212, %v3220
        %v3238 = vcombine.high %v3212, %v3220
        %v3240 = vunpack.c.l.s4 1934713408
        %v3241 = vunpack.c.0.s8 %v3240
        %v3242 = vlaneseq
        %v3243 = vshrl.u32 %v3242, 7
        %v3244 = vsub.s32 %v3241, %v3243
        %v3245 = vrot.slane %v3237, %v3244
        %v3247 = vunpack.c.l.s4 1934713408
        %v3248 = vunpack.c.0.s8 %v3247
        %v3249 = vlaneseq
        %v3250 = vshrl.u32 %v3249, 7
        %v3251 = vsub.s32 %v3248, %v3250
        %v3252 = vrot.slane %v3238, %v3251
        %v3253 = vcombine.low %v3228, %v3236
        %v3254 = vcombine.high %v3228, %v3236
        %v3256 = vunpack.c.l.s4 1934713408
        %v3257 = vunpack.c.0.s8 %v3256
        %v3258 = vlaneseq
        %v3259 = vshrl.u32 %v3258, 7
        %v3260 = vsub.s32 %v3257, %v3259
        %v3261 = vrot.slane %v3253, %v3260
        %v3263 = vunpack.c.l.s4 1934713408
        %v3264 = vunpack.c.0.s8 %v3263
        %v3265 = vlaneseq
        %v3266 = vshrl.u32 %v3265, 7
        %v3267 = vsub.s32 %v3264, %v3266
        %v3268 = vrot.slane %v3254, %v3267
        %v3269 = vcombine.low %v3245, %v3261
        %v3270 = vcombine.high %v3245, %v3261
        %v3271 = vcombine.low %v3252, %v3268
        %v3272 = vcombine.high %v3252, %v3268
        %3275 = vrot.lane.b32.xlu0 %v3202, 8
        %v3276 = vpop.permute.xlu0 %3275
        %3277 = vrot.lane.b32.xlu0 %v3270, 8
        %v3278 = vpop.permute.xlu0 %3277
        %3283 = vrot.lane.b32.xlu0 %v3203, 16
        %v3284 = vpop.permute.xlu0 %3283
        %3285 = vrot.lane.b32.xlu0 %v3271, 16
        %v3286 = vpop.permute.xlu0 %3285
        %3291 = vrot.lane.b32.xlu0 %v3204, 24
        %v3292 = vpop.permute.xlu0 %3291
        %3293 = vrot.lane.b32.xlu0 %v3272, 24
        %v3294 = vpop.permute.xlu0 %3293
        %v3297 = vsel %vm1672, %v3201, %v3276
        %v3298 = vsel %vm1672, %v3269, %v3278
        %vm3299 = vcmask 130048
        %v3300 = vsel %vm3299, %v3297, %v3284
        %v3301 = vsel %vm3299, %v3298, %v3286
        %vm3302 = vcmask 195584
        %v3303 = vsel %vm3302, %v3300, %v3292
        %v3304 = vsel %vm3302, %v3301, %v3294
        %v3305 = vld [vmem:[%s612] sm:$0xff]
        %v3306 = vld [vmem:[%s612 + $0x8] sm:$0xff]
        %v3307 = vld [vmem:[%s612 + $0x10] sm:$0xff]
        %v3308 = vld [vmem:[%s612 + $0x18] sm:$0xff]
        %v3309 = vld [vmem:[%s615] sm:$0x1]
        %v3311 = vlaneseq
        %v3312 = vshrl.u32 %v3311, 7
        %v3313 = vsub.s32 0, %v3312
        %v3314 = vrot.slane %v3309, %v3313
        %v3317 = vsel %vm652, %v3303, 0
        %v3320 = vsel %vm652, %v3304, 0
        %3322 = vmatprep.subr.mxu0 0.0
        %3323 = vmatpush1.msra.mxu0 0.0
        %3324 = vmatprep.subr.mxu0 0.0
        %3325 = vmatpush1.msra.mxu0 0.0
        %3326 = vmatprep.subr.mxu0 0.0
        %3327 = vmatpush1.msra.mxu0 0.0
        %3328 = vmatprep.subr.mxu0 0.0
        %3329 = vmatpush1.msra.mxu0 0.0
        %3330 = vmatprep.subr.mxu0 0.0
        %3331 = vmatpush1.msra.mxu0 0.0
        %3332 = vmatprep.subr.mxu0 0.0
        %3333 = vmatpush1.msra.mxu0 0.0
        %3334 = vmatprep.subr.mxu0 0.0
        %3335 = vmatpush1.msra.mxu0 0.0
        %3336 = vmatprep.subr.mxu0 0.0
        %3337 = vmatpush1.msra.mxu0 0.0
        %3338 = vmatprep.subr.mxu0 0.0
        %3339 = vmatpush1.msra.mxu0 0.0
        %3340 = vmatprep.subr.mxu0 0.0
        %3341 = vmatpush1.msra.mxu0 0.0
        %3342 = vmatprep.subr.mxu0 0.0
        %3343 = vmatpush1.msra.mxu0 0.0
        %3344 = vmatprep.subr.mxu0 0.0
        %3345 = vmatpush1.msra.mxu0 0.0
        %3346 = vmatprep.subr.mxu0 0.0
        %3347 = vmatpush1.msra.mxu0 %v3308
        %3348 = vmatprep.subr.mxu0 0.0
        %3349 = vmatpush1.msra.mxu0 %v3307
        %3350 = vmatprep.subr.mxu0 0.0
        %3351 = vmatpush1.msra.mxu0 %v3306
        %3352 = vmatprep.subr.mxu0 0.0
        %3353 = vmatpush1.msra.mxu0 %v3305
        %3354 = vmatprep.subr.mxu0 0.0
        %3355 = vmatpush2.msra.mxu0 0.0
        %3356 = vmatprep.subr.mxu0 0.0
        %3357 = vmatpush2.msra.mxu0 0.0
        %3358 = vmatprep.subr.mxu0 0.0
        %3359 = vmatpush2.msra.mxu0 0.0
        %3360 = vmatprep.subr.mxu0 0.0
        %3361 = vmatpush2.msra.mxu0 0.0
        %3362 = vmatprep.subr.mxu0 0.0
        %3363 = vmatpush2.msra.mxu0 0.0
        %3364 = vmatprep.subr.mxu0 0.0
        %3365 = vmatpush2.msra.mxu0 0.0
        %3366 = vmatprep.subr.mxu0 0.0
        %3367 = vmatpush2.msra.mxu0 0.0
        %3368 = vmatprep.subr.mxu0 0.0
        %3369 = vmatpush2.msra.mxu0 0.0
        %3370 = vmatprep.subr.mxu0 0.0
        %3371 = vmatpush2.msra.mxu0 0.0
        %3372 = vmatprep.subr.mxu0 0.0
        %3373 = vmatpush2.msra.mxu0 0.0
        %3374 = vmatprep.subr.mxu0 0.0
        %3375 = vmatpush2.msra.mxu0 0.0
        %3376 = vmatprep.subr.mxu0 0.0
        %3377 = vmatpush2.msra.mxu0 0.0
        %3378 = vmatprep.subr.mxu0 0.0
        %3379 = vmatpush2.msra.mxu0 0.0
        %3380 = vmatprep.subr.mxu0 0.0
        %3381 = vmatpush2.msra.mxu0 0.0
        %3382 = vmatprep.subr.mxu0 0.0
        %3383 = vmatpush2.msra.mxu0 0.0
        %3384 = vmatprep.subr.mxu0 0.0
        %3385 = vmatpush2.msra.mxu0 0.0
        %3386 = vmatprep.mubr.f32.mxu0 0.0
        %3387 = vmatmul.mubr.f32.gmra.mxu0 %v3317
        %v3388 = vpop.f32.mrf.mxu0
        %v3389 = vadd.f32 %v3314, %v3388
        %v3390 = vpop.f32.mrf.mxu0
        %3391 = vmatprep.mubr.f32.mxu0 0.0
        %3392 = vmatmul.mubr.f32.gmra.mxu0 %v3320
        %v3393 = vpop.f32.mrf.mxu0
        %v3394 = vadd.f32 %v3314, %v3393
        %v3395 = vpop.f32.mrf.mxu0
        %3396 = vdwg.mxu0
        %v3397 = vadd.f32 %v648, %v3389
        %v3398 = vadd.f32 %v649, %v3394
        %v3399 = vld [vmem:[%s618] sm:$0x1]
        %v3400 = vld [vmem:[%s621] sm:$0x1]
        %v3401 = vsel %vm652, %v3397, 0.0
        %3402 = vadd.xlane.f32.xlu0 %v3401
        %v3403 = vpop.xlane.xlu0 %3402
        %v3404 = vsel %vm652, %v3398, 0.0
        %3405 = vadd.xlane.f32.xlu0 %v3404
        %v3406 = vpop.xlane.xlu0 %3405
        %v3407 = vmul.f32 %v3403, %v659
        %v3408 = vmul.f32 %v3406, %v659
        %v3409 = vsub.f32 %v3397, %v3407
        %v3410 = vsub.f32 %v3398, %v3408
        %v3411 = vmul.f32 %v3409, %v3409
        %v3412 = vmul.f32 %v3410, %v3410
        %v3413 = vsel %vm652, %v3411, 0.0
        %3414 = vadd.xlane.f32.xlu0 %v3413
        %v3415 = vpop.xlane.xlu0 %3414
        %v3416 = vsel %vm652, %v3412, 0.0
        %3417 = vadd.xlane.f32.xlu0 %v3416
        %v3418 = vpop.xlane.xlu0 %3417
        %v3419 = vmul.f32 %v3415, %v659
        %v3420 = vmul.f32 %v3418, %v659
        %v3421 = vadd.f32 %v3419, 1e-06
        %v3422 = vadd.f32 %v3420, 1e-06
        %v3423 = vrsqrt.pop %v3421
        %v3424 = vrsqrt.pop %v3422
        %v3425 = vmul.f32 %v3409, %v3423
        %v3426 = vmul.f32 %v3410, %v3424
        %v3428 = vlaneseq
        %v3429 = vshrl.u32 %v3428, 7
        %v3430 = vsub.s32 0, %v3429
        %v3431 = vrot.slane %v3399, %v3430
        %v3433 = vmul.f32 %v3425, %v3431
        %v3434 = vmul.f32 %v3426, %v3431
        %v3436 = vlaneseq
        %v3437 = vshrl.u32 %v3436, 7
        %v3438 = vsub.s32 0, %v3437
        %v3439 = vrot.slane %v3400, %v3438
        %v3441 = vadd.f32 %v3433, %v3439
        %v3442 = vadd.f32 %v3434, %v3439
        %v3443 = vld [vmem:[%s637] sm:$0x1]
        %v3445 = vlaneseq
        %v3446 = vshrl.u32 %v3445, 7
        %v3447 = vsub.s32 0, %v3446
        %v3448 = vrot.slane %v3443, %v3447
        %v3450 = vadd.f32 %v3397, %v3448
        %v3451 = vadd.f32 %v3398, %v3448
        %v3452 = vld [vmem:[%s626] sm:$0xff]
        %v3453 = vld [vmem:[%s626 + $0x8] sm:$0xff]
        %v3454 = vld [vmem:[%s626 + $0x10] sm:$0xff]
        %v3455 = vld [vmem:[%s626 + $0x18] sm:$0xff]
        %v3456 = vld [vmem:[%s629] sm:$0x1]
        %v3458 = vlaneseq
        %v3459 = vshrl.u32 %v3458, 7
        %v3460 = vsub.s32 0, %v3459
        %v3461 = vrot.slane %v3456, %v3460
        %v3464 = vsel %vm652, %v3441, 0
        %v3467 = vsel %vm652, %v3442, 0
        %3469 = vmatprep.subr.mxu0 0.0
        %3470 = vmatpush1.msra.mxu0 0.0
        %3471 = vmatprep.subr.mxu0 0.0
        %3472 = vmatpush1.msra.mxu0 0.0
        %3473 = vmatprep.subr.mxu0 0.0
        %3474 = vmatpush1.msra.mxu0 0.0
        %3475 = vmatprep.subr.mxu0 0.0
        %3476 = vmatpush1.msra.mxu0 0.0
        %3477 = vmatprep.subr.mxu0 0.0
        %3478 = vmatpush1.msra.mxu0 0.0
        %3479 = vmatprep.subr.mxu0 0.0
        %3480 = vmatpush1.msra.mxu0 0.0
        %3481 = vmatprep.subr.mxu0 0.0
        %3482 = vmatpush1.msra.mxu0 0.0
        %3483 = vmatprep.subr.mxu0 0.0
        %3484 = vmatpush1.msra.mxu0 0.0
        %3485 = vmatprep.subr.mxu0 0.0
        %3486 = vmatpush1.msra.mxu0 0.0
        %3487 = vmatprep.subr.mxu0 0.0
        %3488 = vmatpush1.msra.mxu0 0.0
        %3489 = vmatprep.subr.mxu0 0.0
        %3490 = vmatpush1.msra.mxu0 0.0
        %3491 = vmatprep.subr.mxu0 0.0
        %3492 = vmatpush1.msra.mxu0 0.0
        %3493 = vmatprep.subr.mxu0 0.0
        %3494 = vmatpush1.msra.mxu0 %v3455
        %3495 = vmatprep.subr.mxu0 0.0
        %3496 = vmatpush1.msra.mxu0 %v3454
        %3497 = vmatprep.subr.mxu0 0.0
        %3498 = vmatpush1.msra.mxu0 %v3453
        %3499 = vmatprep.subr.mxu0 0.0
        %3500 = vmatpush1.msra.mxu0 %v3452
        %3501 = vmatprep.subr.mxu0 0.0
        %3502 = vmatpush2.msra.mxu0 0.0
        %3503 = vmatprep.subr.mxu0 0.0
        %3504 = vmatpush2.msra.mxu0 0.0
        %3505 = vmatprep.subr.mxu0 0.0
        %3506 = vmatpush2.msra.mxu0 0.0
        %3507 = vmatprep.subr.mxu0 0.0
        %3508 = vmatpush2.msra.mxu0 0.0
        %3509 = vmatprep.subr.mxu0 0.0
        %3510 = vmatpush2.msra.mxu0 0.0
        %3511 = vmatprep.subr.mxu0 0.0
        %3512 = vmatpush2.msra.mxu0 0.0
        %3513 = vmatprep.subr.mxu0 0.0
        %3514 = vmatpush2.msra.mxu0 0.0
        %3515 = vmatprep.subr.mxu0 0.0
        %3516 = vmatpush2.msra.mxu0 0.0
        %3517 = vmatprep.subr.mxu0 0.0
        %3518 = vmatpush2.msra.mxu0 0.0
        %3519 = vmatprep.subr.mxu0 0.0
        %3520 = vmatpush2.msra.mxu0 0.0
        %3521 = vmatprep.subr.mxu0 0.0
        %3522 = vmatpush2.msra.mxu0 0.0
        %3523 = vmatprep.subr.mxu0 0.0
        %3524 = vmatpush2.msra.mxu0 0.0
        %3525 = vmatprep.subr.mxu0 0.0
        %3526 = vmatpush2.msra.mxu0 0.0
        %3527 = vmatprep.subr.mxu0 0.0
        %3528 = vmatpush2.msra.mxu0 0.0
        %3529 = vmatprep.subr.mxu0 0.0
        %3530 = vmatpush2.msra.mxu0 0.0
        %3531 = vmatprep.subr.mxu0 0.0
        %3532 = vmatpush2.msra.mxu0 0.0
        %3533 = vmatprep.mubr.f32.mxu0 0.0
        %3534 = vmatmul.mubr.f32.gmra.mxu0 %v3464
        %v3535 = vpop.f32.mrf.mxu0
        %v3536 = vadd.f32 %v3461, %v3535
        %v3537 = vpop.f32.mrf.mxu0
        %3538 = vmatprep.mubr.f32.mxu0 0.0
        %3539 = vmatmul.mubr.f32.gmra.mxu0 %v3467
        %v3540 = vpop.f32.mrf.mxu0
        %v3541 = vadd.f32 %v3461, %v3540
        %v3542 = vpop.f32.mrf.mxu0
        %3543 = vdwg.mxu0
        %v3544 = vmul.f32 %v3536, 0.5
        %v3545 = vmul.f32 %v3541, 0.5
        %v3546 = vmul.f32 %v3536, 0.70710677
        %v3547 = vmul.f32 %v3541, 0.70710677
        %v3548 = verf.f32.pop %v3546
        %v3549 = verf.f32.pop %v3547
        %v3550 = vadd.f32 %v3548, 1.0
        %v3551 = vadd.f32 %v3549, 1.0
        %v3552 = vmul.f32 %v3544, %v3550
        %v3553 = vmul.f32 %v3545, %v3551
        %v3554 = vld [vmem:[%s634] sm:$0xff]
        %v3555 = vld [vmem:[%s634 + $0x8] sm:$0xff]
        %v3556 = vld [vmem:[%s634 + $0x10] sm:$0xff]
        %v3557 = vld [vmem:[%s634 + $0x18] sm:$0xff]
        %v3558 = vld [vmem:[%s634 + $0x20] sm:$0xff]
        %v3559 = vld [vmem:[%s634 + $0x28] sm:$0xff]
        %v3560 = vld [vmem:[%s634 + $0x30] sm:$0xff]
        %v3561 = vld [vmem:[%s634 + $0x38] sm:$0xff]
        %v3562 = vld [vmem:[%s634 + $0x40] sm:$0xff]
        %v3563 = vld [vmem:[%s634 + $0x48] sm:$0xff]
        %v3564 = vld [vmem:[%s634 + $0x50] sm:$0xff]
        %v3565 = vld [vmem:[%s634 + $0x58] sm:$0xff]
        %v3566 = vld [vmem:[%s634 + $0x60] sm:$0xff]
        %v3567 = vld [vmem:[%s634 + $0x68] sm:$0xff]
        %v3568 = vld [vmem:[%s634 + $0x70] sm:$0xff]
        %v3569 = vld [vmem:[%s634 + $0x78] sm:$0xff]
        %3570 = vmatprep.subr.mxu0 0.0
        %3571 = vmatpush1.msra.mxu0 %v3569
        %3572 = vmatprep.subr.mxu0 0.0
        %3573 = vmatpush1.msra.mxu0 %v3568
        %3574 = vmatprep.subr.mxu0 0.0
        %3575 = vmatpush1.msra.mxu0 %v3567
        %3576 = vmatprep.subr.mxu0 0.0
        %3577 = vmatpush1.msra.mxu0 %v3566
        %3578 = vmatprep.subr.mxu0 0.0
        %3579 = vmatpush1.msra.mxu0 %v3565
        %3580 = vmatprep.subr.mxu0 0.0
        %3581 = vmatpush1.msra.mxu0 %v3564
        %3582 = vmatprep.subr.mxu0 0.0
        %3583 = vmatpush1.msra.mxu0 %v3563
        %3584 = vmatprep.subr.mxu0 0.0
        %3585 = vmatpush1.msra.mxu0 %v3562
        %3586 = vmatprep.subr.mxu0 0.0
        %3587 = vmatpush1.msra.mxu0 %v3561
        %3588 = vmatprep.subr.mxu0 0.0
        %3589 = vmatpush1.msra.mxu0 %v3560
        %3590 = vmatprep.subr.mxu0 0.0
        %3591 = vmatpush1.msra.mxu0 %v3559
        %3592 = vmatprep.subr.mxu0 0.0
        %3593 = vmatpush1.msra.mxu0 %v3558
        %3594 = vmatprep.subr.mxu0 0.0
        %3595 = vmatpush1.msra.mxu0 %v3557
        %3596 = vmatprep.subr.mxu0 0.0
        %3597 = vmatpush1.msra.mxu0 %v3556
        %3598 = vmatprep.subr.mxu0 0.0
        %3599 = vmatpush1.msra.mxu0 %v3555
        %3600 = vmatprep.subr.mxu0 0.0
        %3601 = vmatpush1.msra.mxu0 %v3554
        %3602 = vmatprep.subr.mxu0 0.0
        %3603 = vmatpush2.msra.mxu0 0.0
        %3604 = vmatprep.subr.mxu0 0.0
        %3605 = vmatpush2.msra.mxu0 0.0
        %3606 = vmatprep.subr.mxu0 0.0
        %3607 = vmatpush2.msra.mxu0 0.0
        %3608 = vmatprep.subr.mxu0 0.0
        %3609 = vmatpush2.msra.mxu0 0.0
        %3610 = vmatprep.subr.mxu0 0.0
        %3611 = vmatpush2.msra.mxu0 0.0
        %3612 = vmatprep.subr.mxu0 0.0
        %3613 = vmatpush2.msra.mxu0 0.0
        %3614 = vmatprep.subr.mxu0 0.0
        %3615 = vmatpush2.msra.mxu0 0.0
        %3616 = vmatprep.subr.mxu0 0.0
        %3617 = vmatpush2.msra.mxu0 0.0
        %3618 = vmatprep.subr.mxu0 0.0
        %3619 = vmatpush2.msra.mxu0 0.0
        %3620 = vmatprep.subr.mxu0 0.0
        %3621 = vmatpush2.msra.mxu0 0.0
        %3622 = vmatprep.subr.mxu0 0.0
        %3623 = vmatpush2.msra.mxu0 0.0
        %3624 = vmatprep.subr.mxu0 0.0
        %3625 = vmatpush2.msra.mxu0 0.0
        %3626 = vmatprep.subr.mxu0 0.0
        %3627 = vmatpush2.msra.mxu0 0.0
        %3628 = vmatprep.subr.mxu0 0.0
        %3629 = vmatpush2.msra.mxu0 0.0
        %3630 = vmatprep.subr.mxu0 0.0
        %3631 = vmatpush2.msra.mxu0 0.0
        %3632 = vmatprep.subr.mxu0 0.0
        %3633 = vmatpush2.msra.mxu0 0.0
        %3634 = vmatprep.mubr.f32.mxu0 0.0
        %3635 = vmatmul.mubr.f32.gmra.mxu0 %v3552
        %v3636 = vpop.f32.mrf.mxu0
        %v3637 = vadd.f32 0.0, %v3636
        %v3638 = vpop.f32.mrf.mxu0
        %3639 = vmatprep.mubr.f32.mxu0 0.0
        %3640 = vmatmul.mubr.f32.gmra.mxu0 %v3553
        %v3641 = vpop.f32.mrf.mxu0
        %v3642 = vadd.f32 0.0, %v3641
        %v3643 = vpop.f32.mrf.mxu0
        %3644 = vdwg.mxu0
        %v3645 = vadd.f32 %v3450, %v3637
        %v3646 = vadd.f32 %v3451, %v3642
        %3647 = vst.msk [vmem:[#allocation2] sm:$0xff] %vm652, %v3645
        %3648 = vst.msk [vmem:[#allocation2 + $0x8] sm:$0xff] %vm652, %v3646
        %p3649 = scmp.eq.s32.totalorder %s30, 1
        // Predicated region
        $region77: #{tpu_custom_call.1} parent=71 // pred_check
          %p3650 = pneg %p3649
        $region78: #{tpu_custom_call.1} parent=71 // pred_check_branch
          %3652 = sbr.rel (%p3650) target = $region80
        $region79: #{tpu_custom_call.1} parent=71 // pred_region
          %3653 = vst.msk [vmem:[#allocation3] sm:$0xff] %vm652, %v3645
          %3654 = vst.msk [vmem:[#allocation3 + $0x8] sm:$0xff] %vm652, %v3646
        $region80: #{tpu_custom_call.1} parent=71 // pred_fallthru
          _
        // Predicated region
        $region81: #{tpu_custom_call.1} parent=71 // pred_check
          %p3655 = pneg %p393
        $region82: #{tpu_custom_call.1} parent=71 // pred_check_branch
          %3657 = sbr.rel (%p3655) target = $region84
        $region83: #{tpu_custom_call.1} parent=71 // pred_region
          %s3658 = smul.u32 2, %s29
          %s3660 = ssub.s32 256, 256
          %3661 = vsyncadd [#allocation4], %s3660
          %s3662 = smul.addr %s3658, 128
          %s3663 = scalar_lea.hbm %s13, %s3662
          %s3664 = sshll.u32 [#allocation3], 4
          %s3665 = int_to_ptr.vmem [resolvable:$true] %s3664
          %3670 = dma.vmem_to_hbm [thread:$0]  %s3665, 256, %s3663, [#allocation4], 128, 128, 8
        $region84: #{tpu_custom_call.1} parent=71 // pred_fallthru
          _
        // Predicated region
        $region85: #{tpu_custom_call.1} parent=71 // pred_check
          %p3671 = pneg %p393
        $region86: #{tpu_custom_call.1} parent=71 // pred_check_branch
          %3673 = sbr.rel (%p3671) target = $region88
        $region87: #{tpu_custom_call.1} parent=71 // pred_region
          %3674 = dma.done [#allocation4], 256
        $region88: #{tpu_custom_call.1} parent=71 // pred_fallthru
          _
      $region72: #{tpu_custom_call.1} parent=5 // pred_fallthru
        _
      %p3675 = scmp.le.s32.totalorder 2, %s20
      // Predicated region
      $region89: #{tpu_custom_call.1} parent=5 // pred_check
        %p3676 = pneg %p3675
      $region90: #{tpu_custom_call.1} parent=5 // pred_check_branch
        %3678 = sbr.rel (%p3676) target = $region92
      $region91: #{tpu_custom_call.1} parent=5 // pred_region
        %s3679 = ssub.s32 %s20, 2
      $region92: #{tpu_custom_call.1} parent=5 // pred_fallthru
        _
    $region6: #{tpu_custom_call.1} parent=1 // loop_footer
      %s24 = sadd.s32 1, %s20
    $region7: #{tpu_custom_call.1} parent=1 // loop_footer_branch
      %19 = sbr.rel target = $region3
    $region8: #{tpu_custom_call.1} parent=1 // loop_exit
      _
    %3680 = vsyncpa [#allocation4], 1
    %s3681 = scalar_lea.sflag [#allocation4], 1
    %3682 = vsyncpa %s3681, 1

</llo_original>
